<compile_context>
chip_gen: v5e
topology: v5e:2x2
jax: 0.10.0
libtpu: 0.0.40
codegen_flags: <defaults>
</compile_context>

<pallas_src>
import functools

import jax
import jax.numpy as jnp
from jax.experimental import pallas as pl
from jax.experimental.pallas import tpu as pltpu


# ---------------------------------------------------------------------------
# Kernel
# ---------------------------------------------------------------------------
def _nerf_guide_kernel(x_ref, w_ref, b_ref, ab_ref, o_ref, *,
                       D, skips, input_ch, W):
    """One lane-tile of rows through the full NeRF_guide MLP (transposed layout).

    x_ref : (input_ch, TN)        input points, rows on the 128-lane axis,
                                  already in compute dtype
    w_ref : (D, W, W + input_ch)  packed pts_linears weights (out, in), compute
                                  dtype; every used slice starts at lane 0
                                  (skip layer columns re-ordered to [h | x])
    b_ref : (D, W, 1)             packed pts_linears biases, f32, lane-0 planes
    ab_ref: (W, 2)                column 0 = alpha weight, [0, 1] = alpha bias
    o_ref : (1, TN)               alpha, lane-dense f32
    """
    cdt = x_ref.dtype
    x_c = x_ref[...]                                    # (input_ch, TN)

    # Loop-invariant alpha-head reads, hoisted above the layer loop.
    w_a = ab_ref[:, 0:1]                                # (W, 1) f32, lane 0
    b_a = ab_ref[0:1, 1:2]                              # (1, 1) f32

    h = None
    for i in range(D):                                  # static Python loop
        b_i = b_ref[i]                                  # (W, 1) f32, lane-0 plane
        if i == 0:
            w = w_ref[0, :, :input_ch]                  # (W, input_ch) @ lane 0
            pre = jnp.dot(w, x_c, preferred_element_type=jnp.float32)
        elif (i - 1) in skips:
            # Skip layer: single K = W + input_ch matmul.  Weight columns were
            # re-packed as [h | x] so the slice is lane-0 aligned; the operand
            # is a cheap sublane concat (both chunks sublane-tile aligned for
            # f32 and bf16).
            w = w_ref[i, :, :W + input_ch]              # (W, W+input_ch) @ lane 0
            hx = jnp.concatenate([h.astype(cdt), x_c], axis=0)   # (W+in, TN)
            pre = jnp.dot(w, hx, preferred_element_type=jnp.float32)
        else:
            w = w_ref[i, :, :W]                         # (W, W) @ lane 0
            pre = jnp.dot(w, h.astype(cdt), preferred_element_type=jnp.float32)
        h = jnp.maximum(pre + b_i, 0.0)                 # ReLU, f32 (W, TN)

    # alpha_linear: Linear(W, 1) as VPU multiply + cross-sublane (XLU) reduce,
    # producing a lane-dense (1, TN) row directly (no N=1 MXU matmul).
    alpha = jnp.sum(h * w_a, axis=0, keepdims=True) + b_a     # (1, TN) f32
    o_ref[...] = alpha.astype(o_ref.dtype)


# ---------------------------------------------------------------------------
# Tiling / packing helpers
# ---------------------------------------------------------------------------
def _round_up(v, m):
    return -(-v // m) * m


def _tensorcores_per_chip():
    """Best-effort TensorCore-per-chip count (v7x has 2; v5e/v6e have 1)."""
    try:
        kind = jax.devices()[0].device_kind.lower()
    except Exception:
        return 1
    return 2 if ("v7" in kind or "7x" in kind) else 1


def _pick_tile_n(N, tile_n):
    """Lane-tile size.  Large tiles amortize the ~0.35us/step pipeline overhead
    (the kernel is overhead/latency bound at W=32); multiples of 512 keep all
    four of v5e's 128x128 MXUs busy; on v7x clamp so the single 'parallel'
    grid axis has >= 2 steps and both TensorCores get work."""
    if tile_n is not None:
        assert tile_n % 128 == 0, "tile_n must be a multiple of 128 (lane width)"
        return tile_n
    cores = _tensorcores_per_chip()
    t = min(2048, _round_up(max(N, 1), 512))
    if cores > 1 and N > 512:
        t = min(t, _round_up(-(-N // cores), 512))
    return max(512, t)


def _pack_params(params, *, D, W, input_ch, skips, param_dtype):
    """Pack per-layer (w, b) [PyTorch (out, in) layout] into 3 resident arrays.

    Every weight slice the kernel takes starts at lane offset 0: the skip
    layer's K columns are re-ordered from PyTorch's cat([x, h]) order to
    [h(0:W), x(W:W+input_ch)], and biases are stored as (D, W, 1) planes so
    b_ref[i] is a lane-0-aligned static view (no per-step cross-lane shifts).
    """
    k_pad = W + input_ch
    w_all = jnp.zeros((D, W, k_pad), param_dtype)
    b_all = jnp.zeros((D, W, 1), jnp.float32)
    for i in range(D):
        w, b = params[i]                                # w: (W, in_dim), b: (W,)
        w = jnp.asarray(w, jnp.float32)
        if i > 0 and (i - 1) in skips:
            # re-order columns [x | h] -> [h | x]
            w = jnp.concatenate([w[:, input_ch:], w[:, :input_ch]], axis=1)
        w_all = w_all.at[i, :, :w.shape[1]].set(w.astype(param_dtype))
        b_all = b_all.at[i, :, 0].set(jnp.asarray(b, jnp.float32))
    w_alpha, b_alpha = params[D]                        # (1, W), (1,)
    ab = jnp.zeros((W, 2), jnp.float32)
    ab = ab.at[:, 0].set(jnp.asarray(w_alpha, jnp.float32)[0, :])
    ab = ab.at[0, 1].set(jnp.asarray(b_alpha, jnp.float32)[0])
    return w_all, b_all, ab


# ---------------------------------------------------------------------------
# Wrapper
# ---------------------------------------------------------------------------
def nerf_guide_forward(x, params, *, D, skips, input_ch, W, tile_n=None,
                       compute_dtype=jnp.bfloat16):
    """x: [N, input_ch] float32.  params: D (w, b) pairs then (w_alpha, b_alpha),
    with weights in PyTorch (out_features, in_features) layout.

    compute_dtype is used for x, the packed weights and the MXU operands
    (accumulation is always f32).  Use jnp.float32 for exact verification."""
    skips = tuple(skips)
    N = x.shape[0]
    tile_n = _pick_tile_n(N, tile_n)
    n_tiles = pl.cdiv(N, tile_n)
    n_pad = n_tiles * tile_n

    # rows -> lane axis, already in compute dtype (halves streamed HBM bytes on
    # the bf16 path; no in-kernel cast of x).
    # TODO(synk): on v5e, have the upstream producer emit x as (input_ch, N) to
    # avoid this pad+transpose HBM round trip entirely.
    x_t = jnp.pad(x, ((0, n_pad - N), (0, 0))).T.astype(compute_dtype)

    w_all, b_all, ab = _pack_params(params, D=D, W=W, input_ch=input_ch,
                                    skips=skips, param_dtype=compute_dtype)

    kernel = functools.partial(_nerf_guide_kernel, D=D, skips=skips,
                               input_ch=input_ch, W=W)

    in_dims = [input_ch] + [W + input_ch if (i - 1) in skips else W
                            for i in range(1, D)]
    flops = 2 * n_pad * (W * sum(in_dims) + W)          # layers + alpha head
    bytes_accessed = (x_t.size * x_t.dtype.itemsize + n_pad * 4
                      + w_all.size * w_all.dtype.itemsize
                      + b_all.size * 4 + ab.size * 4)

    out = pl.pallas_call(
        kernel,
        out_shape=jax.ShapeDtypeStruct((1, n_pad), jnp.float32),
        grid_spec=pltpu.PrefetchScalarGridSpec(
            num_scalar_prefetch=0,
            grid=(n_tiles,),
            in_specs=[
                # x tiled along the lane (rows) axis
                pl.BlockSpec((input_ch, tile_n), lambda i: (0, i)),
                # packed params: whole arrays resident in VMEM for all steps
                pl.BlockSpec(w_all.shape, lambda i: (0, 0, 0)),
                pl.BlockSpec(b_all.shape, lambda i: (0, 0, 0)),
                pl.BlockSpec(ab.shape, lambda i: (0, 0)),
            ],
            out_specs=pl.BlockSpec((1, tile_n), lambda i: (0, i)),
        ),
        compiler_params=pltpu.CompilerParams(
            dimension_semantics=("parallel",)),
        cost_estimate=pl.CostEstimate(flops=flops, transcendentals=0,
                                      bytes_accessed=bytes_accessed),
    )(x_t, w_all, b_all, ab)

    return out[0, :N][:, None]                          # (N, 1)


# ---------------------------------------------------------------------------
# Reference / init
# ---------------------------------------------------------------------------
def init_params(key, *, D, W, input_ch, skips):
    """Deterministic synthetic init; PyTorch layout: weights (out, in), biases (out,)."""
    params = []
    in_dims = [input_ch] + [W + input_ch if i in skips else W for i in range(D - 1)]
    for in_dim in in_dims:
        key, k1, k2 = jax.random.split(key, 3)
        w = jax.random.normal(k1, (W, in_dim), jnp.float32) * 0.1
        b = jax.random.normal(k2, (W,), jnp.float32) * 0.01
        params.append((w, b))
    key, k1, k2 = jax.random.split(key, 3)
    w_alpha = jax.random.normal(k1, (1, W), jnp.float32) * 0.1
    b_alpha = jax.random.normal(k2, (1,), jnp.float32) * 0.01
    params.append((w_alpha, b_alpha))
    return params


def reference_forward(x, params, *, D, skips, compute_dtype=jnp.float32):
    """Plain-JAX replica of the PyTorch forward.  With compute_dtype=bfloat16 it
    also mimics the kernel's quantization (bf16 MXU operands for x / weights /
    inter-layer activations, f32 accumulation, f32 bias/ReLU/alpha head)."""
    cdt = compute_dtype
    x_q = x.astype(cdt).astype(jnp.float32)
    h = x_q
    for i in range(D):
        w, b = params[i]
        pre = jnp.dot(h.astype(cdt), w.astype(cdt).T,
                      preferred_element_type=jnp.float32)
        h = jnp.maximum(pre + b.astype(jnp.float32), 0.0)
        if i in skips:
            h = jnp.concatenate([x_q, h], axis=-1)
    w_alpha, b_alpha = params[D]
    return (jnp.dot(h, w_alpha.astype(jnp.float32).T)
            + b_alpha.astype(jnp.float32))


# ---------------------------------------------------------------------------
# Demo / verification
# ---------------------------------------------------------------------------
if __name__ == "__main__":
    # Config consistent with the module: cfg.D = 6, cfg.W = 32, skips = [4]
    D, W = 6, 32
    input_ch = 16
    skips = (4,)
    N = 2000          # not a multiple of tile_n -> exercises the padding path

    key = jax.random.PRNGKey(0)
    key, kx = jax.random.split(key)
    x = jax.random.normal(kx, (N, input_ch), jnp.float32)
    params = init_params(key, D=D, W=W, input_ch=input_ch, skips=skips)

    # --- exact f32 path: tight check against the reference ---
    alpha_f32 = nerf_guide_forward(x, params, D=D, skips=skips, input_ch=input_ch,
                                   W=W, compute_dtype=jnp.float32)
    alpha_f32 = jax.block_until_ready(alpha_f32)
    ref_f32 = reference_forward(x, params, D=D, skips=skips,
                                compute_dtype=jnp.float32)
    assert alpha_f32.shape == (N, 1)
    assert jnp.allclose(alpha_f32, ref_f32, atol=1e-4, rtol=1e-4), \
        "f32 mismatch vs reference"

    # --- bf16 path (fast MXU path on v6e/v7x), f32 accumulation ---
    alpha_bf16 = nerf_guide_forward(x, params, D=D, skips=skips, input_ch=input_ch,
                                    W=W, compute_dtype=jnp.bfloat16)
    alpha_bf16 = jax.block_until_ready(alpha_bf16)
    ref_bf16 = reference_forward(x, params, D=D, skips=skips,
                                 compute_dtype=jnp.bfloat16)
    assert jnp.allclose(alpha_bf16, ref_bf16, atol=1e-2, rtol=1e-2), \
        "bf16 mismatch vs reference"

    print("KERNEL_OK")
</pallas_src>

<mosaic_0001>
module attributes {stable_mosaic.version = 11 : i64} {
  func.func @_nerf_guide_kernel(%arg0: i32, %arg1: memref<16x2048xf32, #tpu.memory_space<vmem>>, %arg2: memref<6x32x48xf32, #tpu.memory_space<vmem>>, %arg3: memref<6x32x1xf32, #tpu.memory_space<vmem>>, %arg4: memref<32x2xf32, #tpu.memory_space<vmem>>, %arg5: memref<1x2048xf32, #tpu.memory_space<vmem>>) attributes {dimension_semantics = [#tpu.dimension_semantics<parallel>], iteration_bounds = array<i64: 1>, scalar_prefetch = 0 : i64, scratch_operands = 0 : i64, tpu.core_type = #tpu.core_type<tc>, window_params = [{transform_indices = @transform_0, window_bounds = array<i64: 16, 2048>}, {pipeline_mode = #tpu.pipeline_mode<synchronous>, transform_indices = @transform_1, window_bounds = array<i64: 6, 32, 48>}, {pipeline_mode = #tpu.pipeline_mode<synchronous>, transform_indices = @transform_2, window_bounds = array<i64: 6, 32, 1>}, {pipeline_mode = #tpu.pipeline_mode<synchronous>, transform_indices = @transform_3, window_bounds = array<i64: 32, 2>}, {transform_indices = @transform_4, window_bounds = array<i64: 1, 2048>}]} {
    %c0 = arith.constant 0 : index
    %c0_0 = arith.constant 0 : index
    %0 = vector.load %arg1[%c0, %c0_0] : memref<16x2048xf32, #tpu.memory_space<vmem>>, vector<16x2048xf32>
    %c0_1 = arith.constant 0 : index
    %c0_2 = arith.constant 0 : index
    %1 = vector.load %arg4[%c0_1, %c0_2] : memref<32x2xf32, #tpu.memory_space<vmem>>, vector<32x1xf32>
    %c0_3 = arith.constant 0 : index
    %c1 = arith.constant 1 : index
    %2 = vector.load %arg4[%c0_3, %c1] : memref<32x2xf32, #tpu.memory_space<vmem>>, vector<1x1xf32>
    %c0_4 = arith.constant 0 : index
    %c0_5 = arith.constant 0 : index
    %c0_6 = arith.constant 0 : index
    %3 = vector.load %arg3[%c0_4, %c0_5, %c0_6] : memref<6x32x1xf32, #tpu.memory_space<vmem>>, vector<1x32x1xf32>
    %4 = vector.shape_cast %3 : vector<1x32x1xf32> to vector<32x1xf32>
    %c0_7 = arith.constant 0 : index
    %c0_8 = arith.constant 0 : index
    %c0_9 = arith.constant 0 : index
    %5 = vector.load %arg2[%c0_7, %c0_8, %c0_9] : memref<6x32x48xf32, #tpu.memory_space<vmem>>, vector<1x32x16xf32>
    %6 = vector.shape_cast %5 : vector<1x32x16xf32> to vector<32x16xf32>
    %cst = arith.constant dense<0.000000e+00> : vector<32x2048xf32>
    %7 = tpu.matmul %6, %0, %cst {dimension_numbers = #tpu.dot_dimension_numbers<[1], [0], [0], [1], [0, 0, 1, 1], [], []>} : vector<32x16xf32>, vector<16x2048xf32>, vector<32x2048xf32> -> vector<32x2048xf32>
    %8 = vector.broadcast %4 : vector<32x1xf32> to vector<32x2048xf32>
    %9 = arith.addf %7, %8 : vector<32x2048xf32>
    %cst_10 = arith.constant 0.000000e+00 : f32
    %10 = vector.broadcast %cst_10 : f32 to vector<32x2048xf32>
    %11 = arith.maximumf %9, %10 : vector<32x2048xf32>
    %c1_11 = arith.constant 1 : index
    %c0_12 = arith.constant 0 : index
    %c0_13 = arith.constant 0 : index
    %12 = vector.load %arg3[%c1_11, %c0_12, %c0_13] : memref<6x32x1xf32, #tpu.memory_space<vmem>>, vector<1x32x1xf32>
    %13 = vector.shape_cast %12 : vector<1x32x1xf32> to vector<32x1xf32>
    %c1_14 = arith.constant 1 : index
    %c0_15 = arith.constant 0 : index
    %c0_16 = arith.constant 0 : index
    %14 = vector.load %arg2[%c1_14, %c0_15, %c0_16] : memref<6x32x48xf32, #tpu.memory_space<vmem>>, vector<1x32x32xf32>
    %15 = vector.shape_cast %14 : vector<1x32x32xf32> to vector<32x32xf32>
    %cst_17 = arith.constant dense<0.000000e+00> : vector<32x2048xf32>
    %16 = tpu.matmul %15, %11, %cst_17 {dimension_numbers = #tpu.dot_dimension_numbers<[1], [0], [0], [1], [0, 0, 1, 1], [], []>} : vector<32x32xf32>, vector<32x2048xf32>, vector<32x2048xf32> -> vector<32x2048xf32>
    %17 = vector.broadcast %13 : vector<32x1xf32> to vector<32x2048xf32>
    %18 = arith.addf %16, %17 : vector<32x2048xf32>
    %cst_18 = arith.constant 0.000000e+00 : f32
    %19 = vector.broadcast %cst_18 : f32 to vector<32x2048xf32>
    %20 = arith.maximumf %18, %19 : vector<32x2048xf32>
    %c2 = arith.constant 2 : index
    %c0_19 = arith.constant 0 : index
    %c0_20 = arith.constant 0 : index
    %21 = vector.load %arg3[%c2, %c0_19, %c0_20] : memref<6x32x1xf32, #tpu.memory_space<vmem>>, vector<1x32x1xf32>
    %22 = vector.shape_cast %21 : vector<1x32x1xf32> to vector<32x1xf32>
    %c2_21 = arith.constant 2 : index
    %c0_22 = arith.constant 0 : index
    %c0_23 = arith.constant 0 : index
    %23 = vector.load %arg2[%c2_21, %c0_22, %c0_23] : memref<6x32x48xf32, #tpu.memory_space<vmem>>, vector<1x32x32xf32>
    %24 = vector.shape_cast %23 : vector<1x32x32xf32> to vector<32x32xf32>
    %cst_24 = arith.constant dense<0.000000e+00> : vector<32x2048xf32>
    %25 = tpu.matmul %24, %20, %cst_24 {dimension_numbers = #tpu.dot_dimension_numbers<[1], [0], [0], [1], [0, 0, 1, 1], [], []>} : vector<32x32xf32>, vector<32x2048xf32>, vector<32x2048xf32> -> vector<32x2048xf32>
    %26 = vector.broadcast %22 : vector<32x1xf32> to vector<32x2048xf32>
    %27 = arith.addf %25, %26 : vector<32x2048xf32>
    %cst_25 = arith.constant 0.000000e+00 : f32
    %28 = vector.broadcast %cst_25 : f32 to vector<32x2048xf32>
    %29 = arith.maximumf %27, %28 : vector<32x2048xf32>
    %c3 = arith.constant 3 : index
    %c0_26 = arith.constant 0 : index
    %c0_27 = arith.constant 0 : index
    %30 = vector.load %arg3[%c3, %c0_26, %c0_27] : memref<6x32x1xf32, #tpu.memory_space<vmem>>, vector<1x32x1xf32>
    %31 = vector.shape_cast %30 : vector<1x32x1xf32> to vector<32x1xf32>
    %c3_28 = arith.constant 3 : index
    %c0_29 = arith.constant 0 : index
    %c0_30 = arith.constant 0 : index
    %32 = vector.load %arg2[%c3_28, %c0_29, %c0_30] : memref<6x32x48xf32, #tpu.memory_space<vmem>>, vector<1x32x32xf32>
    %33 = vector.shape_cast %32 : vector<1x32x32xf32> to vector<32x32xf32>
    %cst_31 = arith.constant dense<0.000000e+00> : vector<32x2048xf32>
    %34 = tpu.matmul %33, %29, %cst_31 {dimension_numbers = #tpu.dot_dimension_numbers<[1], [0], [0], [1], [0, 0, 1, 1], [], []>} : vector<32x32xf32>, vector<32x2048xf32>, vector<32x2048xf32> -> vector<32x2048xf32>
    %35 = vector.broadcast %31 : vector<32x1xf32> to vector<32x2048xf32>
    %36 = arith.addf %34, %35 : vector<32x2048xf32>
    %cst_32 = arith.constant 0.000000e+00 : f32
    %37 = vector.broadcast %cst_32 : f32 to vector<32x2048xf32>
    %38 = arith.maximumf %36, %37 : vector<32x2048xf32>
    %c4 = arith.constant 4 : index
    %c0_33 = arith.constant 0 : index
    %c0_34 = arith.constant 0 : index
    %39 = vector.load %arg3[%c4, %c0_33, %c0_34] : memref<6x32x1xf32, #tpu.memory_space<vmem>>, vector<1x32x1xf32>
    %40 = vector.shape_cast %39 : vector<1x32x1xf32> to vector<32x1xf32>
    %c4_35 = arith.constant 4 : index
    %c0_36 = arith.constant 0 : index
    %c0_37 = arith.constant 0 : index
    %41 = vector.load %arg2[%c4_35, %c0_36, %c0_37] : memref<6x32x48xf32, #tpu.memory_space<vmem>>, vector<1x32x32xf32>
    %42 = vector.shape_cast %41 : vector<1x32x32xf32> to vector<32x32xf32>
    %cst_38 = arith.constant dense<0.000000e+00> : vector<32x2048xf32>
    %43 = tpu.matmul %42, %38, %cst_38 {dimension_numbers = #tpu.dot_dimension_numbers<[1], [0], [0], [1], [0, 0, 1, 1], [], []>} : vector<32x32xf32>, vector<32x2048xf32>, vector<32x2048xf32> -> vector<32x2048xf32>
    %44 = vector.broadcast %40 : vector<32x1xf32> to vector<32x2048xf32>
    %45 = arith.addf %43, %44 : vector<32x2048xf32>
    %cst_39 = arith.constant 0.000000e+00 : f32
    %46 = vector.broadcast %cst_39 : f32 to vector<32x2048xf32>
    %47 = arith.maximumf %45, %46 : vector<32x2048xf32>
    %c5 = arith.constant 5 : index
    %c0_40 = arith.constant 0 : index
    %c0_41 = arith.constant 0 : index
    %48 = vector.load %arg3[%c5, %c0_40, %c0_41] : memref<6x32x1xf32, #tpu.memory_space<vmem>>, vector<1x32x1xf32>
    %49 = vector.shape_cast %48 : vector<1x32x1xf32> to vector<32x1xf32>
    %c5_42 = arith.constant 5 : index
    %c0_43 = arith.constant 0 : index
    %c0_44 = arith.constant 0 : index
    %50 = vector.load %arg2[%c5_42, %c0_43, %c0_44] : memref<6x32x48xf32, #tpu.memory_space<vmem>>, vector<1x32x48xf32>
    %51 = vector.shape_cast %50 : vector<1x32x48xf32> to vector<32x48xf32>
    %52 = tpu.concatenate %47, %0 in 0 : vector<32x2048xf32>, vector<16x2048xf32> -> vector<48x2048xf32>
    %cst_45 = arith.constant dense<0.000000e+00> : vector<32x2048xf32>
    %53 = tpu.matmul %51, %52, %cst_45 {dimension_numbers = #tpu.dot_dimension_numbers<[1], [0], [0], [1], [0, 0, 1, 1], [], []>} : vector<32x48xf32>, vector<48x2048xf32>, vector<32x2048xf32> -> vector<32x2048xf32>
    %54 = vector.broadcast %49 : vector<32x1xf32> to vector<32x2048xf32>
    %55 = arith.addf %53, %54 : vector<32x2048xf32>
    %cst_46 = arith.constant 0.000000e+00 : f32
    %56 = vector.broadcast %cst_46 : f32 to vector<32x2048xf32>
    %57 = arith.maximumf %55, %56 : vector<32x2048xf32>
    %58 = vector.broadcast %1 : vector<32x1xf32> to vector<32x2048xf32>
    %59 = arith.mulf %57, %58 : vector<32x2048xf32>
    %cst_47 = arith.constant dense<0.000000e+00> : vector<2048xf32>
    %60 = vector.multi_reduction <add>, %59, %cst_47 [0] : vector<32x2048xf32> to vector<2048xf32>
    %61 = vector.shape_cast %60 : vector<2048xf32> to vector<1x2048xf32>
    %62 = vector.broadcast %2 : vector<1x1xf32> to vector<1x2048xf32>
    %63 = arith.addf %61, %62 : vector<1x2048xf32>
    %c0_48 = arith.constant 0 : index
    %c0_49 = arith.constant 0 : index
    %64 = vector.load %arg5[%c0_48, %c0_49] : memref<1x2048xf32, #tpu.memory_space<vmem>>, vector<1x2048xf32>
    tpu.vector_store %arg5[%c0_48, %c0_49], %63 {strides = array<i32>} : memref<1x2048xf32, #tpu.memory_space<vmem>>, vector<1x2048xf32>,
    return
  }
  func.func @transform_0(%arg0: i32) -> (i32, i32) {
    %c0_i32 = arith.constant 0 : i32
    %c0_i32_0 = arith.constant 0 : i32
    return %c0_i32, %arg0 : i32, i32
  }
  func.func @transform_1(%arg0: i32) -> (i32, i32, i32) {
    %c0_i32 = arith.constant 0 : i32
    %c0_i32_0 = arith.constant 0 : i32
    %c0_i32_1 = arith.constant 0 : i32
    %c0_i32_2 = arith.constant 0 : i32
    return %c0_i32, %c0_i32_0, %c0_i32_1 : i32, i32, i32
  }
  func.func @transform_2(%arg0: i32) -> (i32, i32, i32) {
    %c0_i32 = arith.constant 0 : i32
    %c0_i32_0 = arith.constant 0 : i32
    %c0_i32_1 = arith.constant 0 : i32
    %c0_i32_2 = arith.constant 0 : i32
    return %c0_i32, %c0_i32_0, %c0_i32_1 : i32, i32, i32
  }
  func.func @transform_3(%arg0: i32) -> (i32, i32) {
    %c0_i32 = arith.constant 0 : i32
    %c0_i32_0 = arith.constant 0 : i32
    %c0_i32_1 = arith.constant 0 : i32
    return %c0_i32, %c0_i32_0 : i32, i32
  }
  func.func @transform_4(%arg0: i32) -> (i32, i32) {
    %c0_i32 = arith.constant 0 : i32
    %c0_i32_0 = arith.constant 0 : i32
    return %c0_i32, %arg0 : i32, i32
  }
}

</mosaic_0001>

<llo_original>
// kernel: tpu_custom_call.1
$region0: #{tpu_custom_call.1}
  #allocation0 [shape = 'u32[]', space=smem, size = 0x4, offset = 0x4, fixed_abs, tag = 'smem constant byte address 0x4 - core index']
  #allocation1 [shape = 'u32[72,128]{1,0:T(1,128)}', space=vmem, size = 0x9000, scoped, tag = 'internal scratch']
  %s0 = inlined_call_operand.hbm [shape: f32[16,2048], index: 0, kind: input, shape index: {}]
  %s1 = inlined_call_operand.vmem [shape: f32[6,32,48], index: 1, kind: input, shape index: {}]
  %s2 = inlined_call_operand.vmem [shape: f32[6,32,1], index: 2, kind: input, shape index: {}]
  %s3 = inlined_call_operand.vmem [shape: f32[32,2], index: 3, kind: input, shape index: {}]
  %s4 = inlined_call_operand.hbm [shape: f32[1,2048], index: 4, kind: output, shape index: {}]
  %s5 = sld [smem:[#allocation0]]
  $region30: #{tpu_custom_call.1} parent=0
    _
  %s7 = ssub.s32 1, %s5
  %s8 = scalar_select 0, %s7, %s5
  $region1: #{tpu_custom_call.1} parent=0
    #allocation2 [shape = 'u8[131072]{0}', space=vmem, size = 0x20000, scoped, tag = 'input window, operand 0, single buffered']
    #allocation3 [shape = 's32[1]{0}', space=sflag, size = 0x4, scoped, tag = 'scoped memory for tpu_custom_call.1']
    #allocation4 [shape = 's32[1]{0}', space=sflag, size = 0x4, scoped, tag = 'scoped memory for tpu_custom_call.1']
    #allocation5 [shape = 'u8[8192]{0}', space=vmem, size = 0x2000, scoped, tag = 'output window, operand 0, single buffered']
    %9 = vsyncpa [#allocation3], 0
    %10 = vsyncpa [#allocation4], 0
    // Predicated region
    $region2: #{tpu_custom_call.1} parent=1 // pred_check
      _
    $region3: #{tpu_custom_call.1} parent=1 // pred_check_branch
      %12 = sbr.rel (0) target = $region5
    $region4: #{tpu_custom_call.1} parent=1 // pred_region
      %14 = vsyncadd [#allocation3], 0
      %s15 = sshll.u32 %s0, 4
      %s16 = int_to_ptr.hbm [resolvable:$true] %s15
      %s17 = sshll.u32 [#allocation2], 4
      %s18 = int_to_ptr.vmem [resolvable:$true] %s17
      %23 = dma.hbm_to_vmem [thread:$0]  %s16, 4096, %s18, [#allocation3], 2048, 2048, 128
    $region5: #{tpu_custom_call.1} parent=1 // pred_fallthru
      _
    // Predicated region
    $region6: #{tpu_custom_call.1} parent=1 // pred_check
      _
    $region7: #{tpu_custom_call.1} parent=1 // pred_check_branch
      %25 = sbr.rel (0) target = $region9
    $region8: #{tpu_custom_call.1} parent=1 // pred_region
      _
    $region9: #{tpu_custom_call.1} parent=1 // pred_fallthru
      _
    // Predicated region
    $region10: #{tpu_custom_call.1} parent=1 // pred_check
      _
    $region11: #{tpu_custom_call.1} parent=1 // pred_check_branch
      %27 = sbr.rel (0) target = $region13
    $region12: #{tpu_custom_call.1} parent=1 // pred_region
      _
    $region13: #{tpu_custom_call.1} parent=1 // pred_fallthru
      _
    // Predicated region
    $region14: #{tpu_custom_call.1} parent=1 // pred_check
      _
    $region15: #{tpu_custom_call.1} parent=1 // pred_check_branch
      %29 = sbr.rel (0) target = $region17
    $region16: #{tpu_custom_call.1} parent=1 // pred_region
      _
    $region17: #{tpu_custom_call.1} parent=1 // pred_fallthru
      _
    // Predicated region
    $region18: #{tpu_custom_call.1} parent=1 // pred_check
      _
    $region19: #{tpu_custom_call.1} parent=1 // pred_check_branch
      %31 = sbr.rel (0) target = $region21
    $region20: #{tpu_custom_call.1} parent=1 // pred_region
      %33 = dma.done [#allocation3], 4096
    $region21: #{tpu_custom_call.1} parent=1 // pred_fallthru
      _
    %v34 = vld [vmem:[#allocation2] sm:$0xff]
    %v35 = vld [vmem:[#allocation2 + $0x8] sm:$0xff]
    %v36 = vld [vmem:[#allocation2 + $0x10] sm:$0xff]
    %v37 = vld [vmem:[#allocation2 + $0x18] sm:$0xff]
    %v38 = vld [vmem:[#allocation2 + $0x20] sm:$0xff]
    %v39 = vld [vmem:[#allocation2 + $0x28] sm:$0xff]
    %v40 = vld [vmem:[#allocation2 + $0x30] sm:$0xff]
    %v41 = vld [vmem:[#allocation2 + $0x38] sm:$0xff]
    %v42 = vld [vmem:[#allocation2 + $0x40] sm:$0xff]
    %v43 = vld [vmem:[#allocation2 + $0x48] sm:$0xff]
    %v44 = vld [vmem:[#allocation2 + $0x50] sm:$0xff]
    %v45 = vld [vmem:[#allocation2 + $0x58] sm:$0xff]
    %v46 = vld [vmem:[#allocation2 + $0x60] sm:$0xff]
    %v47 = vld [vmem:[#allocation2 + $0x68] sm:$0xff]
    %v48 = vld [vmem:[#allocation2 + $0x70] sm:$0xff]
    %v49 = vld [vmem:[#allocation2 + $0x78] sm:$0xff]
    %v50 = vld [vmem:[#allocation2 + $0x80] sm:$0xff]
    %v51 = vld [vmem:[#allocation2 + $0x88] sm:$0xff]
    %v52 = vld [vmem:[#allocation2 + $0x90] sm:$0xff]
    %v53 = vld [vmem:[#allocation2 + $0x98] sm:$0xff]
    %v54 = vld [vmem:[#allocation2 + $0xa0] sm:$0xff]
    %v55 = vld [vmem:[#allocation2 + $0xa8] sm:$0xff]
    %v56 = vld [vmem:[#allocation2 + $0xb0] sm:$0xff]
    %v57 = vld [vmem:[#allocation2 + $0xb8] sm:$0xff]
    %v58 = vld [vmem:[#allocation2 + $0xc0] sm:$0xff]
    %v59 = vld [vmem:[#allocation2 + $0xc8] sm:$0xff]
    %v60 = vld [vmem:[#allocation2 + $0xd0] sm:$0xff]
    %v61 = vld [vmem:[#allocation2 + $0xd8] sm:$0xff]
    %v62 = vld [vmem:[#allocation2 + $0xe0] sm:$0xff]
    %v63 = vld [vmem:[#allocation2 + $0xe8] sm:$0xff]
    %v64 = vld [vmem:[#allocation2 + $0xf0] sm:$0xff]
    %v65 = vld [vmem:[#allocation2 + $0xf8] sm:$0xff]
    %v66 = vld [vmem:[%s3] sm:$0xff]
    %v67 = vld [vmem:[%s3 + $0x8] sm:$0xff]
    %v68 = vld [vmem:[%s3 + $0x10] sm:$0xff]
    %v69 = vld [vmem:[%s3 + $0x18] sm:$0xff]
    %v70 = vld [vmem:[%s3] sm:$0x1]
    %v71 = vld [vmem:[%s2] sm:$0xff]
    %v72 = vld [vmem:[%s2 + $0x8] sm:$0xff]
    %v73 = vld [vmem:[%s2 + $0x10] sm:$0xff]
    %v74 = vld [vmem:[%s2 + $0x18] sm:$0xff]
    %v75 = vld [vmem:[%s1] sm:$0xff]
    %v76 = vld [vmem:[%s1 + $0x8] sm:$0xff]
    %v77 = vld [vmem:[%s1 + $0x10] sm:$0xff]
    %v78 = vld [vmem:[%s1 + $0x18] sm:$0xff]
    %80 = vset.pattern.permute.xlu0 0
    %81 = vperm.xlu0 %80, %v71
    %v82 = vpop.permute.xlu0 %81
    %85 = vset.pattern.permute.xlu0 0
    %86 = vperm.xlu0 %85, %v72
    %v87 = vpop.permute.xlu0 %86
    %90 = vset.pattern.permute.xlu0 0
    %91 = vperm.xlu0 %90, %v73
    %v92 = vpop.permute.xlu0 %91
    %95 = vset.pattern.permute.xlu0 0
    %96 = vperm.xlu0 %95, %v74
    %v97 = vpop.permute.xlu0 %96
    %vm99 = vcmask 130048
    %v101 = vsel %vm99, %v75, 0
    %v104 = vsel %vm99, %v76, 0
    %v107 = vsel %vm99, %v77, 0
    %v110 = vsel %vm99, %v78, 0
    %112 = vmatpush.msra.mxu0 0.0
    %113 = vmatpush.msra.mxu0 0.0
    %114 = vmatpush.msra.mxu0 0.0
    %115 = vmatpush.msra.mxu0 0.0
    %116 = vmatpush.msra.mxu0 0.0
    %117 = vmatpush.msra.mxu0 0.0
    %118 = vmatpush.msra.mxu0 0.0
    %119 = vmatpush.msra.mxu0 0.0
    %120 = vmatpush.msra.mxu0 0.0
    %121 = vmatpush.msra.mxu0 0.0
    %122 = vmatpush.msra.mxu0 0.0
    %123 = vmatpush.msra.mxu0 0.0
    %124 = vmatpush.msra.mxu0 0.0
    %125 = vmatpush.msra.mxu0 0.0
    %126 = vmatpush.msra.mxu0 %v50
    %127 = vmatpush.msra.mxu0 %v34
    %128 = vmatmul.f32.gmra.mxu0 %v101
    %v129 = vpop.f32.mrf.mxu0
    %v130 = vadd.f32 %v82, %v129
    %131 = vmatmul.f32.gmra.mxu0 %v104
    %v132 = vpop.f32.mrf.mxu0
    %v133 = vadd.f32 %v87, %v132
    %134 = vmatmul.f32.gmra.mxu0 %v107
    %v135 = vpop.f32.mrf.mxu0
    %v136 = vadd.f32 %v92, %v135
    %137 = vmatmul.f32.gmra.mxu0 %v110
    %v138 = vpop.f32.mrf.mxu0
    %v139 = vadd.f32 %v97, %v138
    %140 = vdwg.mxu0
    %141 = vmatpush.msra.mxu0 0.0
    %142 = vmatpush.msra.mxu0 0.0
    %143 = vmatpush.msra.mxu0 0.0
    %144 = vmatpush.msra.mxu0 0.0
    %145 = vmatpush.msra.mxu0 0.0
    %146 = vmatpush.msra.mxu0 0.0
    %147 = vmatpush.msra.mxu0 0.0
    %148 = vmatpush.msra.mxu0 0.0
    %149 = vmatpush.msra.mxu0 0.0
    %150 = vmatpush.msra.mxu0 0.0
    %151 = vmatpush.msra.mxu0 0.0
    %152 = vmatpush.msra.mxu0 0.0
    %153 = vmatpush.msra.mxu0 0.0
    %154 = vmatpush.msra.mxu0 0.0
    %155 = vmatpush.msra.mxu0 %v51
    %156 = vmatpush.msra.mxu0 %v35
    %157 = vmatmul.f32.gmra.mxu0 %v101
    %v158 = vpop.f32.mrf.mxu0
    %v159 = vadd.f32 %v82, %v158
    %160 = vmatmul.f32.gmra.mxu0 %v104
    %v161 = vpop.f32.mrf.mxu0
    %v162 = vadd.f32 %v87, %v161
    %163 = vmatmul.f32.gmra.mxu0 %v107
    %v164 = vpop.f32.mrf.mxu0
    %v165 = vadd.f32 %v92, %v164
    %166 = vmatmul.f32.gmra.mxu0 %v110
    %v167 = vpop.f32.mrf.mxu0
    %v168 = vadd.f32 %v97, %v167
    %169 = vdwg.mxu0
    %170 = vmatpush.msra.mxu0 0.0
    %171 = vmatpush.msra.mxu0 0.0
    %172 = vmatpush.msra.mxu0 0.0
    %173 = vmatpush.msra.mxu0 0.0
    %174 = vmatpush.msra.mxu0 0.0
    %175 = vmatpush.msra.mxu0 0.0
    %176 = vmatpush.msra.mxu0 0.0
    %177 = vmatpush.msra.mxu0 0.0
    %178 = vmatpush.msra.mxu0 0.0
    %179 = vmatpush.msra.mxu0 0.0
    %180 = vmatpush.msra.mxu0 0.0
    %181 = vmatpush.msra.mxu0 0.0
    %182 = vmatpush.msra.mxu0 0.0
    %183 = vmatpush.msra.mxu0 0.0
    %184 = vmatpush.msra.mxu0 %v52
    %185 = vmatpush.msra.mxu0 %v36
    %186 = vmatmul.f32.gmra.mxu0 %v101
    %v187 = vpop.f32.mrf.mxu0
    %v188 = vadd.f32 %v82, %v187
    %189 = vmatmul.f32.gmra.mxu0 %v104
    %v190 = vpop.f32.mrf.mxu0
    %v191 = vadd.f32 %v87, %v190
    %192 = vmatmul.f32.gmra.mxu0 %v107
    %v193 = vpop.f32.mrf.mxu0
    %v194 = vadd.f32 %v92, %v193
    %195 = vmatmul.f32.gmra.mxu0 %v110
    %v196 = vpop.f32.mrf.mxu0
    %v197 = vadd.f32 %v97, %v196
    %198 = vdwg.mxu0
    %199 = vmatpush.msra.mxu0 0.0
    %200 = vmatpush.msra.mxu0 0.0
    %201 = vmatpush.msra.mxu0 0.0
    %202 = vmatpush.msra.mxu0 0.0
    %203 = vmatpush.msra.mxu0 0.0
    %204 = vmatpush.msra.mxu0 0.0
    %205 = vmatpush.msra.mxu0 0.0
    %206 = vmatpush.msra.mxu0 0.0
    %207 = vmatpush.msra.mxu0 0.0
    %208 = vmatpush.msra.mxu0 0.0
    %209 = vmatpush.msra.mxu0 0.0
    %210 = vmatpush.msra.mxu0 0.0
    %211 = vmatpush.msra.mxu0 0.0
    %212 = vmatpush.msra.mxu0 0.0
    %213 = vmatpush.msra.mxu0 %v53
    %214 = vmatpush.msra.mxu0 %v37
    %215 = vmatmul.f32.gmra.mxu0 %v101
    %v216 = vpop.f32.mrf.mxu0
    %v217 = vadd.f32 %v82, %v216
    %218 = vmatmul.f32.gmra.mxu0 %v104
    %v219 = vpop.f32.mrf.mxu0
    %v220 = vadd.f32 %v87, %v219
    %221 = vmatmul.f32.gmra.mxu0 %v107
    %v222 = vpop.f32.mrf.mxu0
    %v223 = vadd.f32 %v92, %v222
    %224 = vmatmul.f32.gmra.mxu0 %v110
    %v225 = vpop.f32.mrf.mxu0
    %v226 = vadd.f32 %v97, %v225
    %227 = vdwg.mxu0
    %228 = vmatpush.msra.mxu0 0.0
    %229 = vmatpush.msra.mxu0 0.0
    %230 = vmatpush.msra.mxu0 0.0
    %231 = vmatpush.msra.mxu0 0.0
    %232 = vmatpush.msra.mxu0 0.0
    %233 = vmatpush.msra.mxu0 0.0
    %234 = vmatpush.msra.mxu0 0.0
    %235 = vmatpush.msra.mxu0 0.0
    %236 = vmatpush.msra.mxu0 0.0
    %237 = vmatpush.msra.mxu0 0.0
    %238 = vmatpush.msra.mxu0 0.0
    %239 = vmatpush.msra.mxu0 0.0
    %240 = vmatpush.msra.mxu0 0.0
    %241 = vmatpush.msra.mxu0 0.0
    %242 = vmatpush.msra.mxu0 %v54
    %243 = vmatpush.msra.mxu0 %v38
    %244 = vmatmul.f32.gmra.mxu0 %v101
    %v245 = vpop.f32.mrf.mxu0
    %v246 = vadd.f32 %v82, %v245
    %247 = vmatmul.f32.gmra.mxu0 %v104
    %v248 = vpop.f32.mrf.mxu0
    %v249 = vadd.f32 %v87, %v248
    %250 = vmatmul.f32.gmra.mxu0 %v107
    %v251 = vpop.f32.mrf.mxu0
    %v252 = vadd.f32 %v92, %v251
    %253 = vmatmul.f32.gmra.mxu0 %v110
    %v254 = vpop.f32.mrf.mxu0
    %v255 = vadd.f32 %v97, %v254
    %256 = vdwg.mxu0
    %257 = vmatpush.msra.mxu0 0.0
    %258 = vmatpush.msra.mxu0 0.0
    %259 = vmatpush.msra.mxu0 0.0
    %260 = vmatpush.msra.mxu0 0.0
    %261 = vmatpush.msra.mxu0 0.0
    %262 = vmatpush.msra.mxu0 0.0
    %263 = vmatpush.msra.mxu0 0.0
    %264 = vmatpush.msra.mxu0 0.0
    %265 = vmatpush.msra.mxu0 0.0
    %266 = vmatpush.msra.mxu0 0.0
    %267 = vmatpush.msra.mxu0 0.0
    %268 = vmatpush.msra.mxu0 0.0
    %269 = vmatpush.msra.mxu0 0.0
    %270 = vmatpush.msra.mxu0 0.0
    %271 = vmatpush.msra.mxu0 %v55
    %272 = vmatpush.msra.mxu0 %v39
    %273 = vmatmul.f32.gmra.mxu0 %v101
    %v274 = vpop.f32.mrf.mxu0
    %v275 = vadd.f32 %v82, %v274
    %276 = vmatmul.f32.gmra.mxu0 %v104
    %v277 = vpop.f32.mrf.mxu0
    %v278 = vadd.f32 %v87, %v277
    %279 = vmatmul.f32.gmra.mxu0 %v107
    %v280 = vpop.f32.mrf.mxu0
    %v281 = vadd.f32 %v92, %v280
    %282 = vmatmul.f32.gmra.mxu0 %v110
    %v283 = vpop.f32.mrf.mxu0
    %v284 = vadd.f32 %v97, %v283
    %285 = vdwg.mxu0
    %286 = vmatpush.msra.mxu0 0.0
    %287 = vmatpush.msra.mxu0 0.0
    %288 = vmatpush.msra.mxu0 0.0
    %289 = vmatpush.msra.mxu0 0.0
    %290 = vmatpush.msra.mxu0 0.0
    %291 = vmatpush.msra.mxu0 0.0
    %292 = vmatpush.msra.mxu0 0.0
    %293 = vmatpush.msra.mxu0 0.0
    %294 = vmatpush.msra.mxu0 0.0
    %295 = vmatpush.msra.mxu0 0.0
    %296 = vmatpush.msra.mxu0 0.0
    %297 = vmatpush.msra.mxu0 0.0
    %298 = vmatpush.msra.mxu0 0.0
    %299 = vmatpush.msra.mxu0 0.0
    %300 = vmatpush.msra.mxu0 %v56
    %301 = vmatpush.msra.mxu0 %v40
    %302 = vmatmul.f32.gmra.mxu0 %v101
    %v303 = vpop.f32.mrf.mxu0
    %v304 = vadd.f32 %v82, %v303
    %305 = vmatmul.f32.gmra.mxu0 %v104
    %v306 = vpop.f32.mrf.mxu0
    %v307 = vadd.f32 %v87, %v306
    %308 = vmatmul.f32.gmra.mxu0 %v107
    %v309 = vpop.f32.mrf.mxu0
    %v310 = vadd.f32 %v92, %v309
    %311 = vmatmul.f32.gmra.mxu0 %v110
    %v312 = vpop.f32.mrf.mxu0
    %v313 = vadd.f32 %v97, %v312
    %314 = vdwg.mxu0
    %315 = vmatpush.msra.mxu0 0.0
    %316 = vmatpush.msra.mxu0 0.0
    %317 = vmatpush.msra.mxu0 0.0
    %318 = vmatpush.msra.mxu0 0.0
    %319 = vmatpush.msra.mxu0 0.0
    %320 = vmatpush.msra.mxu0 0.0
    %321 = vmatpush.msra.mxu0 0.0
    %322 = vmatpush.msra.mxu0 0.0
    %323 = vmatpush.msra.mxu0 0.0
    %324 = vmatpush.msra.mxu0 0.0
    %325 = vmatpush.msra.mxu0 0.0
    %326 = vmatpush.msra.mxu0 0.0
    %327 = vmatpush.msra.mxu0 0.0
    %328 = vmatpush.msra.mxu0 0.0
    %329 = vmatpush.msra.mxu0 %v57
    %330 = vmatpush.msra.mxu0 %v41
    %331 = vmatmul.f32.gmra.mxu0 %v101
    %v332 = vpop.f32.mrf.mxu0
    %v333 = vadd.f32 %v82, %v332
    %334 = vmatmul.f32.gmra.mxu0 %v104
    %v335 = vpop.f32.mrf.mxu0
    %v336 = vadd.f32 %v87, %v335
    %337 = vmatmul.f32.gmra.mxu0 %v107
    %v338 = vpop.f32.mrf.mxu0
    %v339 = vadd.f32 %v92, %v338
    %340 = vmatmul.f32.gmra.mxu0 %v110
    %v341 = vpop.f32.mrf.mxu0
    %v342 = vadd.f32 %v97, %v341
    %343 = vdwg.mxu0
    %344 = vmatpush.msra.mxu0 0.0
    %345 = vmatpush.msra.mxu0 0.0
    %346 = vmatpush.msra.mxu0 0.0
    %347 = vmatpush.msra.mxu0 0.0
    %348 = vmatpush.msra.mxu0 0.0
    %349 = vmatpush.msra.mxu0 0.0
    %350 = vmatpush.msra.mxu0 0.0
    %351 = vmatpush.msra.mxu0 0.0
    %352 = vmatpush.msra.mxu0 0.0
    %353 = vmatpush.msra.mxu0 0.0
    %354 = vmatpush.msra.mxu0 0.0
    %355 = vmatpush.msra.mxu0 0.0
    %356 = vmatpush.msra.mxu0 0.0
    %357 = vmatpush.msra.mxu0 0.0
    %358 = vmatpush.msra.mxu0 %v58
    %359 = vmatpush.msra.mxu0 %v42
    %360 = vmatmul.f32.gmra.mxu0 %v101
    %v361 = vpop.f32.mrf.mxu0
    %v362 = vadd.f32 %v82, %v361
    %363 = vmatmul.f32.gmra.mxu0 %v104
    %v364 = vpop.f32.mrf.mxu0
    %v365 = vadd.f32 %v87, %v364
    %366 = vmatmul.f32.gmra.mxu0 %v107
    %v367 = vpop.f32.mrf.mxu0
    %v368 = vadd.f32 %v92, %v367
    %369 = vmatmul.f32.gmra.mxu0 %v110
    %v370 = vpop.f32.mrf.mxu0
    %v371 = vadd.f32 %v97, %v370
    %372 = vdwg.mxu0
    %373 = vmatpush.msra.mxu0 0.0
    %374 = vmatpush.msra.mxu0 0.0
    %375 = vmatpush.msra.mxu0 0.0
    %376 = vmatpush.msra.mxu0 0.0
    %377 = vmatpush.msra.mxu0 0.0
    %378 = vmatpush.msra.mxu0 0.0
    %379 = vmatpush.msra.mxu0 0.0
    %380 = vmatpush.msra.mxu0 0.0
    %381 = vmatpush.msra.mxu0 0.0
    %382 = vmatpush.msra.mxu0 0.0
    %383 = vmatpush.msra.mxu0 0.0
    %384 = vmatpush.msra.mxu0 0.0
    %385 = vmatpush.msra.mxu0 0.0
    %386 = vmatpush.msra.mxu0 0.0
    %387 = vmatpush.msra.mxu0 %v59
    %388 = vmatpush.msra.mxu0 %v43
    %389 = vmatmul.f32.gmra.mxu0 %v101
    %v390 = vpop.f32.mrf.mxu0
    %v391 = vadd.f32 %v82, %v390
    %392 = vmatmul.f32.gmra.mxu0 %v104
    %v393 = vpop.f32.mrf.mxu0
    %v394 = vadd.f32 %v87, %v393
    %395 = vmatmul.f32.gmra.mxu0 %v107
    %v396 = vpop.f32.mrf.mxu0
    %v397 = vadd.f32 %v92, %v396
    %398 = vmatmul.f32.gmra.mxu0 %v110
    %v399 = vpop.f32.mrf.mxu0
    %v400 = vadd.f32 %v97, %v399
    %401 = vdwg.mxu0
    %402 = vmatpush.msra.mxu0 0.0
    %403 = vmatpush.msra.mxu0 0.0
    %404 = vmatpush.msra.mxu0 0.0
    %405 = vmatpush.msra.mxu0 0.0
    %406 = vmatpush.msra.mxu0 0.0
    %407 = vmatpush.msra.mxu0 0.0
    %408 = vmatpush.msra.mxu0 0.0
    %409 = vmatpush.msra.mxu0 0.0
    %410 = vmatpush.msra.mxu0 0.0
    %411 = vmatpush.msra.mxu0 0.0
    %412 = vmatpush.msra.mxu0 0.0
    %413 = vmatpush.msra.mxu0 0.0
    %414 = vmatpush.msra.mxu0 0.0
    %415 = vmatpush.msra.mxu0 0.0
    %416 = vmatpush.msra.mxu0 %v60
    %417 = vmatpush.msra.mxu0 %v44
    %418 = vmatmul.f32.gmra.mxu0 %v101
    %v419 = vpop.f32.mrf.mxu0
    %v420 = vadd.f32 %v82, %v419
    %421 = vmatmul.f32.gmra.mxu0 %v104
    %v422 = vpop.f32.mrf.mxu0
    %v423 = vadd.f32 %v87, %v422
    %424 = vmatmul.f32.gmra.mxu0 %v107
    %v425 = vpop.f32.mrf.mxu0
    %v426 = vadd.f32 %v92, %v425
    %427 = vmatmul.f32.gmra.mxu0 %v110
    %v428 = vpop.f32.mrf.mxu0
    %v429 = vadd.f32 %v97, %v428
    %430 = vdwg.mxu0
    %431 = vmatpush.msra.mxu0 0.0
    %432 = vmatpush.msra.mxu0 0.0
    %433 = vmatpush.msra.mxu0 0.0
    %434 = vmatpush.msra.mxu0 0.0
    %435 = vmatpush.msra.mxu0 0.0
    %436 = vmatpush.msra.mxu0 0.0
    %437 = vmatpush.msra.mxu0 0.0
    %438 = vmatpush.msra.mxu0 0.0
    %439 = vmatpush.msra.mxu0 0.0
    %440 = vmatpush.msra.mxu0 0.0
    %441 = vmatpush.msra.mxu0 0.0
    %442 = vmatpush.msra.mxu0 0.0
    %443 = vmatpush.msra.mxu0 0.0
    %444 = vmatpush.msra.mxu0 0.0
    %445 = vmatpush.msra.mxu0 %v61
    %446 = vmatpush.msra.mxu0 %v45
    %447 = vmatmul.f32.gmra.mxu0 %v101
    %v448 = vpop.f32.mrf.mxu0
    %v449 = vadd.f32 %v82, %v448
    %450 = vmatmul.f32.gmra.mxu0 %v104
    %v451 = vpop.f32.mrf.mxu0
    %v452 = vadd.f32 %v87, %v451
    %453 = vmatmul.f32.gmra.mxu0 %v107
    %v454 = vpop.f32.mrf.mxu0
    %v455 = vadd.f32 %v92, %v454
    %456 = vmatmul.f32.gmra.mxu0 %v110
    %v457 = vpop.f32.mrf.mxu0
    %v458 = vadd.f32 %v97, %v457
    %459 = vdwg.mxu0
    %460 = vmatpush.msra.mxu0 0.0
    %461 = vmatpush.msra.mxu0 0.0
    %462 = vmatpush.msra.mxu0 0.0
    %463 = vmatpush.msra.mxu0 0.0
    %464 = vmatpush.msra.mxu0 0.0
    %465 = vmatpush.msra.mxu0 0.0
    %466 = vmatpush.msra.mxu0 0.0
    %467 = vmatpush.msra.mxu0 0.0
    %468 = vmatpush.msra.mxu0 0.0
    %469 = vmatpush.msra.mxu0 0.0
    %470 = vmatpush.msra.mxu0 0.0
    %471 = vmatpush.msra.mxu0 0.0
    %472 = vmatpush.msra.mxu0 0.0
    %473 = vmatpush.msra.mxu0 0.0
    %474 = vmatpush.msra.mxu0 %v62
    %475 = vmatpush.msra.mxu0 %v46
    %476 = vmatmul.f32.gmra.mxu0 %v101
    %v477 = vpop.f32.mrf.mxu0
    %v478 = vadd.f32 %v82, %v477
    %479 = vmatmul.f32.gmra.mxu0 %v104
    %v480 = vpop.f32.mrf.mxu0
    %v481 = vadd.f32 %v87, %v480
    %482 = vmatmul.f32.gmra.mxu0 %v107
    %v483 = vpop.f32.mrf.mxu0
    %v484 = vadd.f32 %v92, %v483
    %485 = vmatmul.f32.gmra.mxu0 %v110
    %v486 = vpop.f32.mrf.mxu0
    %v487 = vadd.f32 %v97, %v486
    %488 = vdwg.mxu0
    %489 = vmatpush.msra.mxu0 0.0
    %490 = vmatpush.msra.mxu0 0.0
    %491 = vmatpush.msra.mxu0 0.0
    %492 = vmatpush.msra.mxu0 0.0
    %493 = vmatpush.msra.mxu0 0.0
    %494 = vmatpush.msra.mxu0 0.0
    %495 = vmatpush.msra.mxu0 0.0
    %496 = vmatpush.msra.mxu0 0.0
    %497 = vmatpush.msra.mxu0 0.0
    %498 = vmatpush.msra.mxu0 0.0
    %499 = vmatpush.msra.mxu0 0.0
    %500 = vmatpush.msra.mxu0 0.0
    %501 = vmatpush.msra.mxu0 0.0
    %502 = vmatpush.msra.mxu0 0.0
    %503 = vmatpush.msra.mxu0 %v63
    %504 = vmatpush.msra.mxu0 %v47
    %505 = vmatmul.f32.gmra.mxu0 %v101
    %v506 = vpop.f32.mrf.mxu0
    %v507 = vadd.f32 %v82, %v506
    %508 = vmatmul.f32.gmra.mxu0 %v104
    %v509 = vpop.f32.mrf.mxu0
    %v510 = vadd.f32 %v87, %v509
    %511 = vmatmul.f32.gmra.mxu0 %v107
    %v512 = vpop.f32.mrf.mxu0
    %v513 = vadd.f32 %v92, %v512
    %514 = vmatmul.f32.gmra.mxu0 %v110
    %v515 = vpop.f32.mrf.mxu0
    %v516 = vadd.f32 %v97, %v515
    %517 = vdwg.mxu0
    %518 = vmatpush.msra.mxu0 0.0
    %519 = vmatpush.msra.mxu0 0.0
    %520 = vmatpush.msra.mxu0 0.0
    %521 = vmatpush.msra.mxu0 0.0
    %522 = vmatpush.msra.mxu0 0.0
    %523 = vmatpush.msra.mxu0 0.0
    %524 = vmatpush.msra.mxu0 0.0
    %525 = vmatpush.msra.mxu0 0.0
    %526 = vmatpush.msra.mxu0 0.0
    %527 = vmatpush.msra.mxu0 0.0
    %528 = vmatpush.msra.mxu0 0.0
    %529 = vmatpush.msra.mxu0 0.0
    %530 = vmatpush.msra.mxu0 0.0
    %531 = vmatpush.msra.mxu0 0.0
    %532 = vmatpush.msra.mxu0 %v64
    %533 = vmatpush.msra.mxu0 %v48
    %534 = vmatmul.f32.gmra.mxu0 %v101
    %v535 = vpop.f32.mrf.mxu0
    %v536 = vadd.f32 %v82, %v535
    %537 = vmatmul.f32.gmra.mxu0 %v104
    %v538 = vpop.f32.mrf.mxu0
    %v539 = vadd.f32 %v87, %v538
    %540 = vmatmul.f32.gmra.mxu0 %v107
    %v541 = vpop.f32.mrf.mxu0
    %v542 = vadd.f32 %v92, %v541
    %543 = vmatmul.f32.gmra.mxu0 %v110
    %v544 = vpop.f32.mrf.mxu0
    %v545 = vadd.f32 %v97, %v544
    %546 = vdwg.mxu0
    %547 = vmatpush.msra.mxu0 0.0
    %548 = vmatpush.msra.mxu0 0.0
    %549 = vmatpush.msra.mxu0 0.0
    %550 = vmatpush.msra.mxu0 0.0
    %551 = vmatpush.msra.mxu0 0.0
    %552 = vmatpush.msra.mxu0 0.0
    %553 = vmatpush.msra.mxu0 0.0
    %554 = vmatpush.msra.mxu0 0.0
    %555 = vmatpush.msra.mxu0 0.0
    %556 = vmatpush.msra.mxu0 0.0
    %557 = vmatpush.msra.mxu0 0.0
    %558 = vmatpush.msra.mxu0 0.0
    %559 = vmatpush.msra.mxu0 0.0
    %560 = vmatpush.msra.mxu0 0.0
    %561 = vmatpush.msra.mxu0 %v65
    %562 = vmatpush.msra.mxu0 %v49
    %563 = vmatmul.f32.gmra.mxu0 %v101
    %v564 = vpop.f32.mrf.mxu0
    %v565 = vadd.f32 %v82, %v564
    %566 = vmatmul.f32.gmra.mxu0 %v104
    %v567 = vpop.f32.mrf.mxu0
    %v568 = vadd.f32 %v87, %v567
    %569 = vmatmul.f32.gmra.mxu0 %v107
    %v570 = vpop.f32.mrf.mxu0
    %v571 = vadd.f32 %v92, %v570
    %572 = vmatmul.f32.gmra.mxu0 %v110
    %v573 = vpop.f32.mrf.mxu0
    %v574 = vadd.f32 %v97, %v573
    %575 = vdwg.mxu0
    %v576 = vmax.f32 %v130, 0.0
    %v577 = vmax.f32 %v159, 0.0
    %v578 = vmax.f32 %v188, 0.0
    %v579 = vmax.f32 %v217, 0.0
    %v580 = vmax.f32 %v246, 0.0
    %v581 = vmax.f32 %v275, 0.0
    %v582 = vmax.f32 %v304, 0.0
    %v583 = vmax.f32 %v333, 0.0
    %v584 = vmax.f32 %v362, 0.0
    %v585 = vmax.f32 %v391, 0.0
    %v586 = vmax.f32 %v420, 0.0
    %v587 = vmax.f32 %v449, 0.0
    %v588 = vmax.f32 %v478, 0.0
    %v589 = vmax.f32 %v507, 0.0
    %v590 = vmax.f32 %v536, 0.0
    %v591 = vmax.f32 %v565, 0.0
    %v592 = vmax.f32 %v133, 0.0
    %v593 = vmax.f32 %v162, 0.0
    %v594 = vmax.f32 %v191, 0.0
    %v595 = vmax.f32 %v220, 0.0
    %v596 = vmax.f32 %v249, 0.0
    %v597 = vmax.f32 %v278, 0.0
    %v598 = vmax.f32 %v307, 0.0
    %v599 = vmax.f32 %v336, 0.0
    %v600 = vmax.f32 %v365, 0.0
    %v601 = vmax.f32 %v394, 0.0
    %v602 = vmax.f32 %v423, 0.0
    %v603 = vmax.f32 %v452, 0.0
    %v604 = vmax.f32 %v481, 0.0
    %v605 = vmax.f32 %v510, 0.0
    %v606 = vmax.f32 %v539, 0.0
    %v607 = vmax.f32 %v568, 0.0
    %v608 = vmax.f32 %v136, 0.0
    %v609 = vmax.f32 %v165, 0.0
    %v610 = vmax.f32 %v194, 0.0
    %v611 = vmax.f32 %v223, 0.0
    %v612 = vmax.f32 %v252, 0.0
    %v613 = vmax.f32 %v281, 0.0
    %v614 = vmax.f32 %v310, 0.0
    %v615 = vmax.f32 %v339, 0.0
    %v616 = vmax.f32 %v368, 0.0
    %v617 = vmax.f32 %v397, 0.0
    %v618 = vmax.f32 %v426, 0.0
    %v619 = vmax.f32 %v455, 0.0
    %v620 = vmax.f32 %v484, 0.0
    %v621 = vmax.f32 %v513, 0.0
    %v622 = vmax.f32 %v542, 0.0
    %v623 = vmax.f32 %v571, 0.0
    %v624 = vmax.f32 %v139, 0.0
    %v625 = vmax.f32 %v168, 0.0
    %v626 = vmax.f32 %v197, 0.0
    %v627 = vmax.f32 %v226, 0.0
    %v628 = vmax.f32 %v255, 0.0
    %v629 = vmax.f32 %v284, 0.0
    %v630 = vmax.f32 %v313, 0.0
    %v631 = vmax.f32 %v342, 0.0
    %v632 = vmax.f32 %v371, 0.0
    %v633 = vmax.f32 %v400, 0.0
    %v634 = vmax.f32 %v429, 0.0
    %v635 = vmax.f32 %v458, 0.0
    %v636 = vmax.f32 %v487, 0.0
    %v637 = vmax.f32 %v516, 0.0
    %v638 = vmax.f32 %v545, 0.0
    %v639 = vmax.f32 %v574, 0.0
    %s640 = scalar_lea.vmem %s2, 32
    %v641 = vld [vmem:[%s640] sm:$0xff]
    %v642 = vld [vmem:[%s640 + $0x8] sm:$0xff]
    %v643 = vld [vmem:[%s640 + $0x10] sm:$0xff]
    %v644 = vld [vmem:[%s640 + $0x18] sm:$0xff]
    %s645 = scalar_lea.vmem %s1, 32
    %v646 = vld [vmem:[%s645] sm:$0xff]
    %v647 = vld [vmem:[%s645 + $0x8] sm:$0xff]
    %v648 = vld [vmem:[%s645 + $0x10] sm:$0xff]
    %v649 = vld [vmem:[%s645 + $0x18] sm:$0xff]
    %651 = vset.pattern.permute.xlu0 0
    %652 = vperm.xlu0 %651, %v641
    %v653 = vpop.permute.xlu0 %652
    %656 = vset.pattern.permute.xlu0 0
    %657 = vperm.xlu0 %656, %v642
    %v658 = vpop.permute.xlu0 %657
    %661 = vset.pattern.permute.xlu0 0
    %662 = vperm.xlu0 %661, %v643
    %v663 = vpop.permute.xlu0 %662
    %666 = vset.pattern.permute.xlu0 0
    %667 = vperm.xlu0 %666, %v644
    %v668 = vpop.permute.xlu0 %667
    %vm670 = vcmask 261120
    %v672 = vsel %vm670, %v646, 0
    %v675 = vsel %vm670, %v647, 0
    %v678 = vsel %vm670, %v648, 0
    %v681 = vsel %vm670, %v649, 0
    %683 = vmatpush.msra.mxu0 0.0
    %684 = vmatpush.msra.mxu0 0.0
    %685 = vmatpush.msra.mxu0 0.0
    %686 = vmatpush.msra.mxu0 0.0
    %687 = vmatpush.msra.mxu0 0.0
    %688 = vmatpush.msra.mxu0 0.0
    %689 = vmatpush.msra.mxu0 0.0
    %690 = vmatpush.msra.mxu0 0.0
    %691 = vmatpush.msra.mxu0 0.0
    %692 = vmatpush.msra.mxu0 0.0
    %693 = vmatpush.msra.mxu0 0.0
    %694 = vmatpush.msra.mxu0 0.0
    %695 = vmatpush.msra.mxu0 %v624
    %696 = vmatpush.msra.mxu0 %v608
    %697 = vmatpush.msra.mxu0 %v592
    %698 = vmatpush.msra.mxu0 %v576
    %699 = vmatmul.f32.gmra.mxu0 %v672
    %v700 = vpop.f32.mrf.mxu0
    %v701 = vadd.f32 %v653, %v700
    %702 = vmatmul.f32.gmra.mxu0 %v675
    %v703 = vpop.f32.mrf.mxu0
    %v704 = vadd.f32 %v658, %v703
    %705 = vmatmul.f32.gmra.mxu0 %v678
    %v706 = vpop.f32.mrf.mxu0
    %v707 = vadd.f32 %v663, %v706
    %708 = vmatmul.f32.gmra.mxu0 %v681
    %v709 = vpop.f32.mrf.mxu0
    %v710 = vadd.f32 %v668, %v709
    %711 = vdwg.mxu0
    %712 = vmatpush.msra.mxu0 0.0
    %713 = vmatpush.msra.mxu0 0.0
    %714 = vmatpush.msra.mxu0 0.0
    %715 = vmatpush.msra.mxu0 0.0
    %716 = vmatpush.msra.mxu0 0.0
    %717 = vmatpush.msra.mxu0 0.0
    %718 = vmatpush.msra.mxu0 0.0
    %719 = vmatpush.msra.mxu0 0.0
    %720 = vmatpush.msra.mxu0 0.0
    %721 = vmatpush.msra.mxu0 0.0
    %722 = vmatpush.msra.mxu0 0.0
    %723 = vmatpush.msra.mxu0 0.0
    %724 = vmatpush.msra.mxu0 %v625
    %725 = vmatpush.msra.mxu0 %v609
    %726 = vmatpush.msra.mxu0 %v593
    %727 = vmatpush.msra.mxu0 %v577
    %728 = vmatmul.f32.gmra.mxu0 %v672
    %v729 = vpop.f32.mrf.mxu0
    %v730 = vadd.f32 %v653, %v729
    %731 = vmatmul.f32.gmra.mxu0 %v675
    %v732 = vpop.f32.mrf.mxu0
    %v733 = vadd.f32 %v658, %v732
    %734 = vmatmul.f32.gmra.mxu0 %v678
    %v735 = vpop.f32.mrf.mxu0
    %v736 = vadd.f32 %v663, %v735
    %737 = vmatmul.f32.gmra.mxu0 %v681
    %v738 = vpop.f32.mrf.mxu0
    %v739 = vadd.f32 %v668, %v738
    %740 = vdwg.mxu0
    %741 = vmatpush.msra.mxu0 0.0
    %742 = vmatpush.msra.mxu0 0.0
    %743 = vmatpush.msra.mxu0 0.0
    %744 = vmatpush.msra.mxu0 0.0
    %745 = vmatpush.msra.mxu0 0.0
    %746 = vmatpush.msra.mxu0 0.0
    %747 = vmatpush.msra.mxu0 0.0
    %748 = vmatpush.msra.mxu0 0.0
    %749 = vmatpush.msra.mxu0 0.0
    %750 = vmatpush.msra.mxu0 0.0
    %751 = vmatpush.msra.mxu0 0.0
    %752 = vmatpush.msra.mxu0 0.0
    %753 = vmatpush.msra.mxu0 %v626
    %754 = vmatpush.msra.mxu0 %v610
    %755 = vmatpush.msra.mxu0 %v594
    %756 = vmatpush.msra.mxu0 %v578
    %757 = vmatmul.f32.gmra.mxu0 %v672
    %v758 = vpop.f32.mrf.mxu0
    %v759 = vadd.f32 %v653, %v758
    %760 = vmatmul.f32.gmra.mxu0 %v675
    %v761 = vpop.f32.mrf.mxu0
    %v762 = vadd.f32 %v658, %v761
    %763 = vmatmul.f32.gmra.mxu0 %v678
    %v764 = vpop.f32.mrf.mxu0
    %v765 = vadd.f32 %v663, %v764
    %766 = vmatmul.f32.gmra.mxu0 %v681
    %v767 = vpop.f32.mrf.mxu0
    %v768 = vadd.f32 %v668, %v767
    %769 = vdwg.mxu0
    %770 = vmatpush.msra.mxu0 0.0
    %771 = vmatpush.msra.mxu0 0.0
    %772 = vmatpush.msra.mxu0 0.0
    %773 = vmatpush.msra.mxu0 0.0
    %774 = vmatpush.msra.mxu0 0.0
    %775 = vmatpush.msra.mxu0 0.0
    %776 = vmatpush.msra.mxu0 0.0
    %777 = vmatpush.msra.mxu0 0.0
    %778 = vmatpush.msra.mxu0 0.0
    %779 = vmatpush.msra.mxu0 0.0
    %780 = vmatpush.msra.mxu0 0.0
    %781 = vmatpush.msra.mxu0 0.0
    %782 = vmatpush.msra.mxu0 %v627
    %783 = vmatpush.msra.mxu0 %v611
    %784 = vmatpush.msra.mxu0 %v595
    %785 = vmatpush.msra.mxu0 %v579
    %786 = vmatmul.f32.gmra.mxu0 %v672
    %v787 = vpop.f32.mrf.mxu0
    %v788 = vadd.f32 %v653, %v787
    %789 = vmatmul.f32.gmra.mxu0 %v675
    %v790 = vpop.f32.mrf.mxu0
    %v791 = vadd.f32 %v658, %v790
    %792 = vmatmul.f32.gmra.mxu0 %v678
    %v793 = vpop.f32.mrf.mxu0
    %v794 = vadd.f32 %v663, %v793
    %795 = vmatmul.f32.gmra.mxu0 %v681
    %v796 = vpop.f32.mrf.mxu0
    %v797 = vadd.f32 %v668, %v796
    %798 = vdwg.mxu0
    %799 = vmatpush.msra.mxu0 0.0
    %800 = vmatpush.msra.mxu0 0.0
    %801 = vmatpush.msra.mxu0 0.0
    %802 = vmatpush.msra.mxu0 0.0
    %803 = vmatpush.msra.mxu0 0.0
    %804 = vmatpush.msra.mxu0 0.0
    %805 = vmatpush.msra.mxu0 0.0
    %806 = vmatpush.msra.mxu0 0.0
    %807 = vmatpush.msra.mxu0 0.0
    %808 = vmatpush.msra.mxu0 0.0
    %809 = vmatpush.msra.mxu0 0.0
    %810 = vmatpush.msra.mxu0 0.0
    %811 = vmatpush.msra.mxu0 %v628
    %812 = vmatpush.msra.mxu0 %v612
    %813 = vmatpush.msra.mxu0 %v596
    %814 = vmatpush.msra.mxu0 %v580
    %815 = vmatmul.f32.gmra.mxu0 %v672
    %v816 = vpop.f32.mrf.mxu0
    %v817 = vadd.f32 %v653, %v816
    %818 = vmatmul.f32.gmra.mxu0 %v675
    %v819 = vpop.f32.mrf.mxu0
    %v820 = vadd.f32 %v658, %v819
    %821 = vmatmul.f32.gmra.mxu0 %v678
    %v822 = vpop.f32.mrf.mxu0
    %v823 = vadd.f32 %v663, %v822
    %824 = vmatmul.f32.gmra.mxu0 %v681
    %v825 = vpop.f32.mrf.mxu0
    %v826 = vadd.f32 %v668, %v825
    %827 = vdwg.mxu0
    %828 = vmatpush.msra.mxu0 0.0
    %829 = vmatpush.msra.mxu0 0.0
    %830 = vmatpush.msra.mxu0 0.0
    %831 = vmatpush.msra.mxu0 0.0
    %832 = vmatpush.msra.mxu0 0.0
    %833 = vmatpush.msra.mxu0 0.0
    %834 = vmatpush.msra.mxu0 0.0
    %835 = vmatpush.msra.mxu0 0.0
    %836 = vmatpush.msra.mxu0 0.0
    %837 = vmatpush.msra.mxu0 0.0
    %838 = vmatpush.msra.mxu0 0.0
    %839 = vmatpush.msra.mxu0 0.0
    %840 = vmatpush.msra.mxu0 %v629
    %841 = vmatpush.msra.mxu0 %v613
    %842 = vmatpush.msra.mxu0 %v597
    %843 = vmatpush.msra.mxu0 %v581
    %844 = vmatmul.f32.gmra.mxu0 %v672
    %v845 = vpop.f32.mrf.mxu0
    %v846 = vadd.f32 %v653, %v845
    %847 = vmatmul.f32.gmra.mxu0 %v675
    %v848 = vpop.f32.mrf.mxu0
    %v849 = vadd.f32 %v658, %v848
    %850 = vmatmul.f32.gmra.mxu0 %v678
    %v851 = vpop.f32.mrf.mxu0
    %v852 = vadd.f32 %v663, %v851
    %853 = vmatmul.f32.gmra.mxu0 %v681
    %v854 = vpop.f32.mrf.mxu0
    %v855 = vadd.f32 %v668, %v854
    %856 = vdwg.mxu0
    %857 = vmatpush.msra.mxu0 0.0
    %858 = vmatpush.msra.mxu0 0.0
    %859 = vmatpush.msra.mxu0 0.0
    %860 = vmatpush.msra.mxu0 0.0
    %861 = vmatpush.msra.mxu0 0.0
    %862 = vmatpush.msra.mxu0 0.0
    %863 = vmatpush.msra.mxu0 0.0
    %864 = vmatpush.msra.mxu0 0.0
    %865 = vmatpush.msra.mxu0 0.0
    %866 = vmatpush.msra.mxu0 0.0
    %867 = vmatpush.msra.mxu0 0.0
    %868 = vmatpush.msra.mxu0 0.0
    %869 = vmatpush.msra.mxu0 %v630
    %870 = vmatpush.msra.mxu0 %v614
    %871 = vmatpush.msra.mxu0 %v598
    %872 = vmatpush.msra.mxu0 %v582
    %873 = vmatmul.f32.gmra.mxu0 %v672
    %v874 = vpop.f32.mrf.mxu0
    %v875 = vadd.f32 %v653, %v874
    %876 = vmatmul.f32.gmra.mxu0 %v675
    %v877 = vpop.f32.mrf.mxu0
    %v878 = vadd.f32 %v658, %v877
    %879 = vmatmul.f32.gmra.mxu0 %v678
    %v880 = vpop.f32.mrf.mxu0
    %v881 = vadd.f32 %v663, %v880
    %882 = vmatmul.f32.gmra.mxu0 %v681
    %v883 = vpop.f32.mrf.mxu0
    %v884 = vadd.f32 %v668, %v883
    %885 = vdwg.mxu0
    %886 = vmatpush.msra.mxu0 0.0
    %887 = vmatpush.msra.mxu0 0.0
    %888 = vmatpush.msra.mxu0 0.0
    %889 = vmatpush.msra.mxu0 0.0
    %890 = vmatpush.msra.mxu0 0.0
    %891 = vmatpush.msra.mxu0 0.0
    %892 = vmatpush.msra.mxu0 0.0
    %893 = vmatpush.msra.mxu0 0.0
    %894 = vmatpush.msra.mxu0 0.0
    %895 = vmatpush.msra.mxu0 0.0
    %896 = vmatpush.msra.mxu0 0.0
    %897 = vmatpush.msra.mxu0 0.0
    %898 = vmatpush.msra.mxu0 %v631
    %899 = vmatpush.msra.mxu0 %v615
    %900 = vmatpush.msra.mxu0 %v599
    %901 = vmatpush.msra.mxu0 %v583
    %902 = vmatmul.f32.gmra.mxu0 %v672
    %v903 = vpop.f32.mrf.mxu0
    %v904 = vadd.f32 %v653, %v903
    %905 = vmatmul.f32.gmra.mxu0 %v675
    %v906 = vpop.f32.mrf.mxu0
    %v907 = vadd.f32 %v658, %v906
    %908 = vmatmul.f32.gmra.mxu0 %v678
    %v909 = vpop.f32.mrf.mxu0
    %v910 = vadd.f32 %v663, %v909
    %911 = vmatmul.f32.gmra.mxu0 %v681
    %v912 = vpop.f32.mrf.mxu0
    %v913 = vadd.f32 %v668, %v912
    %914 = vdwg.mxu0
    %915 = vmatpush.msra.mxu0 0.0
    %916 = vmatpush.msra.mxu0 0.0
    %917 = vmatpush.msra.mxu0 0.0
    %918 = vmatpush.msra.mxu0 0.0
    %919 = vmatpush.msra.mxu0 0.0
    %920 = vmatpush.msra.mxu0 0.0
    %921 = vmatpush.msra.mxu0 0.0
    %922 = vmatpush.msra.mxu0 0.0
    %923 = vmatpush.msra.mxu0 0.0
    %924 = vmatpush.msra.mxu0 0.0
    %925 = vmatpush.msra.mxu0 0.0
    %926 = vmatpush.msra.mxu0 0.0
    %927 = vmatpush.msra.mxu0 %v632
    %928 = vmatpush.msra.mxu0 %v616
    %929 = vmatpush.msra.mxu0 %v600
    %930 = vmatpush.msra.mxu0 %v584
    %931 = vmatmul.f32.gmra.mxu0 %v672
    %v932 = vpop.f32.mrf.mxu0
    %v933 = vadd.f32 %v653, %v932
    %934 = vmatmul.f32.gmra.mxu0 %v675
    %v935 = vpop.f32.mrf.mxu0
    %v936 = vadd.f32 %v658, %v935
    %937 = vmatmul.f32.gmra.mxu0 %v678
    %v938 = vpop.f32.mrf.mxu0
    %v939 = vadd.f32 %v663, %v938
    %940 = vmatmul.f32.gmra.mxu0 %v681
    %v941 = vpop.f32.mrf.mxu0
    %v942 = vadd.f32 %v668, %v941
    %943 = vdwg.mxu0
    %944 = vmatpush.msra.mxu0 0.0
    %945 = vmatpush.msra.mxu0 0.0
    %946 = vmatpush.msra.mxu0 0.0
    %947 = vmatpush.msra.mxu0 0.0
    %948 = vmatpush.msra.mxu0 0.0
    %949 = vmatpush.msra.mxu0 0.0
    %950 = vmatpush.msra.mxu0 0.0
    %951 = vmatpush.msra.mxu0 0.0
    %952 = vmatpush.msra.mxu0 0.0
    %953 = vmatpush.msra.mxu0 0.0
    %954 = vmatpush.msra.mxu0 0.0
    %955 = vmatpush.msra.mxu0 0.0
    %956 = vmatpush.msra.mxu0 %v633
    %957 = vmatpush.msra.mxu0 %v617
    %958 = vmatpush.msra.mxu0 %v601
    %959 = vmatpush.msra.mxu0 %v585
    %960 = vmatmul.f32.gmra.mxu0 %v672
    %v961 = vpop.f32.mrf.mxu0
    %v962 = vadd.f32 %v653, %v961
    %963 = vmatmul.f32.gmra.mxu0 %v675
    %v964 = vpop.f32.mrf.mxu0
    %v965 = vadd.f32 %v658, %v964
    %966 = vmatmul.f32.gmra.mxu0 %v678
    %v967 = vpop.f32.mrf.mxu0
    %v968 = vadd.f32 %v663, %v967
    %969 = vmatmul.f32.gmra.mxu0 %v681
    %v970 = vpop.f32.mrf.mxu0
    %v971 = vadd.f32 %v668, %v970
    %972 = vdwg.mxu0
    %973 = vmatpush.msra.mxu0 0.0
    %974 = vmatpush.msra.mxu0 0.0
    %975 = vmatpush.msra.mxu0 0.0
    %976 = vmatpush.msra.mxu0 0.0
    %977 = vmatpush.msra.mxu0 0.0
    %978 = vmatpush.msra.mxu0 0.0
    %979 = vmatpush.msra.mxu0 0.0
    %980 = vmatpush.msra.mxu0 0.0
    %981 = vmatpush.msra.mxu0 0.0
    %982 = vmatpush.msra.mxu0 0.0
    %983 = vmatpush.msra.mxu0 0.0
    %984 = vmatpush.msra.mxu0 0.0
    %985 = vmatpush.msra.mxu0 %v634
    %986 = vmatpush.msra.mxu0 %v618
    %987 = vmatpush.msra.mxu0 %v602
    %988 = vmatpush.msra.mxu0 %v586
    %989 = vmatmul.f32.gmra.mxu0 %v672
    %v990 = vpop.f32.mrf.mxu0
    %v991 = vadd.f32 %v653, %v990
    %992 = vmatmul.f32.gmra.mxu0 %v675
    %v993 = vpop.f32.mrf.mxu0
    %v994 = vadd.f32 %v658, %v993
    %995 = vmatmul.f32.gmra.mxu0 %v678
    %v996 = vpop.f32.mrf.mxu0
    %v997 = vadd.f32 %v663, %v996
    %998 = vmatmul.f32.gmra.mxu0 %v681
    %v999 = vpop.f32.mrf.mxu0
    %v1000 = vadd.f32 %v668, %v999
    %1001 = vdwg.mxu0
    %1002 = vmatpush.msra.mxu0 0.0
    %1003 = vmatpush.msra.mxu0 0.0
    %1004 = vmatpush.msra.mxu0 0.0
    %1005 = vmatpush.msra.mxu0 0.0
    %1006 = vmatpush.msra.mxu0 0.0
    %1007 = vmatpush.msra.mxu0 0.0
    %1008 = vmatpush.msra.mxu0 0.0
    %1009 = vmatpush.msra.mxu0 0.0
    %1010 = vmatpush.msra.mxu0 0.0
    %1011 = vmatpush.msra.mxu0 0.0
    %1012 = vmatpush.msra.mxu0 0.0
    %1013 = vmatpush.msra.mxu0 0.0
    %1014 = vmatpush.msra.mxu0 %v635
    %1015 = vmatpush.msra.mxu0 %v619
    %1016 = vmatpush.msra.mxu0 %v603
    %1017 = vmatpush.msra.mxu0 %v587
    %1018 = vmatmul.f32.gmra.mxu0 %v672
    %v1019 = vpop.f32.mrf.mxu0
    %v1020 = vadd.f32 %v653, %v1019
    %1021 = vmatmul.f32.gmra.mxu0 %v675
    %v1022 = vpop.f32.mrf.mxu0
    %v1023 = vadd.f32 %v658, %v1022
    %1024 = vmatmul.f32.gmra.mxu0 %v678
    %v1025 = vpop.f32.mrf.mxu0
    %v1026 = vadd.f32 %v663, %v1025
    %1027 = vmatmul.f32.gmra.mxu0 %v681
    %v1028 = vpop.f32.mrf.mxu0
    %v1029 = vadd.f32 %v668, %v1028
    %1030 = vdwg.mxu0
    %1031 = vmatpush.msra.mxu0 0.0
    %1032 = vmatpush.msra.mxu0 0.0
    %1033 = vmatpush.msra.mxu0 0.0
    %1034 = vmatpush.msra.mxu0 0.0
    %1035 = vmatpush.msra.mxu0 0.0
    %1036 = vmatpush.msra.mxu0 0.0
    %1037 = vmatpush.msra.mxu0 0.0
    %1038 = vmatpush.msra.mxu0 0.0
    %1039 = vmatpush.msra.mxu0 0.0
    %1040 = vmatpush.msra.mxu0 0.0
    %1041 = vmatpush.msra.mxu0 0.0
    %1042 = vmatpush.msra.mxu0 0.0
    %1043 = vmatpush.msra.mxu0 %v636
    %1044 = vmatpush.msra.mxu0 %v620
    %1045 = vmatpush.msra.mxu0 %v604
    %1046 = vmatpush.msra.mxu0 %v588
    %1047 = vmatmul.f32.gmra.mxu0 %v672
    %v1048 = vpop.f32.mrf.mxu0
    %v1049 = vadd.f32 %v653, %v1048
    %1050 = vmatmul.f32.gmra.mxu0 %v675
    %v1051 = vpop.f32.mrf.mxu0
    %v1052 = vadd.f32 %v658, %v1051
    %1053 = vmatmul.f32.gmra.mxu0 %v678
    %v1054 = vpop.f32.mrf.mxu0
    %v1055 = vadd.f32 %v663, %v1054
    %1056 = vmatmul.f32.gmra.mxu0 %v681
    %v1057 = vpop.f32.mrf.mxu0
    %v1058 = vadd.f32 %v668, %v1057
    %1059 = vdwg.mxu0
    %1060 = vmatpush.msra.mxu0 0.0
    %1061 = vmatpush.msra.mxu0 0.0
    %1062 = vmatpush.msra.mxu0 0.0
    %1063 = vmatpush.msra.mxu0 0.0
    %1064 = vmatpush.msra.mxu0 0.0
    %1065 = vmatpush.msra.mxu0 0.0
    %1066 = vmatpush.msra.mxu0 0.0
    %1067 = vmatpush.msra.mxu0 0.0
    %1068 = vmatpush.msra.mxu0 0.0
    %1069 = vmatpush.msra.mxu0 0.0
    %1070 = vmatpush.msra.mxu0 0.0
    %1071 = vmatpush.msra.mxu0 0.0
    %1072 = vmatpush.msra.mxu0 %v637
    %1073 = vmatpush.msra.mxu0 %v621
    %1074 = vmatpush.msra.mxu0 %v605
    %1075 = vmatpush.msra.mxu0 %v589
    %1076 = vmatmul.f32.gmra.mxu0 %v672
    %v1077 = vpop.f32.mrf.mxu0
    %v1078 = vadd.f32 %v653, %v1077
    %1079 = vmatmul.f32.gmra.mxu0 %v675
    %v1080 = vpop.f32.mrf.mxu0
    %v1081 = vadd.f32 %v658, %v1080
    %1082 = vmatmul.f32.gmra.mxu0 %v678
    %v1083 = vpop.f32.mrf.mxu0
    %v1084 = vadd.f32 %v663, %v1083
    %1085 = vmatmul.f32.gmra.mxu0 %v681
    %v1086 = vpop.f32.mrf.mxu0
    %v1087 = vadd.f32 %v668, %v1086
    %1088 = vdwg.mxu0
    %1089 = vmatpush.msra.mxu0 0.0
    %1090 = vmatpush.msra.mxu0 0.0
    %1091 = vmatpush.msra.mxu0 0.0
    %1092 = vmatpush.msra.mxu0 0.0
    %1093 = vmatpush.msra.mxu0 0.0
    %1094 = vmatpush.msra.mxu0 0.0
    %1095 = vmatpush.msra.mxu0 0.0
    %1096 = vmatpush.msra.mxu0 0.0
    %1097 = vmatpush.msra.mxu0 0.0
    %1098 = vmatpush.msra.mxu0 0.0
    %1099 = vmatpush.msra.mxu0 0.0
    %1100 = vmatpush.msra.mxu0 0.0
    %1101 = vmatpush.msra.mxu0 %v638
    %1102 = vmatpush.msra.mxu0 %v622
    %1103 = vmatpush.msra.mxu0 %v606
    %1104 = vmatpush.msra.mxu0 %v590
    %1105 = vmatmul.f32.gmra.mxu0 %v672
    %v1106 = vpop.f32.mrf.mxu0
    %v1107 = vadd.f32 %v653, %v1106
    %1108 = vmatmul.f32.gmra.mxu0 %v675
    %v1109 = vpop.f32.mrf.mxu0
    %v1110 = vadd.f32 %v658, %v1109
    %1111 = vmatmul.f32.gmra.mxu0 %v678
    %v1112 = vpop.f32.mrf.mxu0
    %v1113 = vadd.f32 %v663, %v1112
    %1114 = vmatmul.f32.gmra.mxu0 %v681
    %v1115 = vpop.f32.mrf.mxu0
    %v1116 = vadd.f32 %v668, %v1115
    %1117 = vdwg.mxu0
    %1118 = vmatpush.msra.mxu0 0.0
    %1119 = vmatpush.msra.mxu0 0.0
    %1120 = vmatpush.msra.mxu0 0.0
    %1121 = vmatpush.msra.mxu0 0.0
    %1122 = vmatpush.msra.mxu0 0.0
    %1123 = vmatpush.msra.mxu0 0.0
    %1124 = vmatpush.msra.mxu0 0.0
    %1125 = vmatpush.msra.mxu0 0.0
    %1126 = vmatpush.msra.mxu0 0.0
    %1127 = vmatpush.msra.mxu0 0.0
    %1128 = vmatpush.msra.mxu0 0.0
    %1129 = vmatpush.msra.mxu0 0.0
    %1130 = vmatpush.msra.mxu0 %v639
    %1131 = vmatpush.msra.mxu0 %v623
    %1132 = vmatpush.msra.mxu0 %v607
    %1133 = vmatpush.msra.mxu0 %v591
    %1134 = vmatmul.f32.gmra.mxu0 %v672
    %v1135 = vpop.f32.mrf.mxu0
    %v1136 = vadd.f32 %v653, %v1135
    %1137 = vmatmul.f32.gmra.mxu0 %v675
    %v1138 = vpop.f32.mrf.mxu0
    %v1139 = vadd.f32 %v658, %v1138
    %1140 = vmatmul.f32.gmra.mxu0 %v678
    %v1141 = vpop.f32.mrf.mxu0
    %v1142 = vadd.f32 %v663, %v1141
    %1143 = vmatmul.f32.gmra.mxu0 %v681
    %v1144 = vpop.f32.mrf.mxu0
    %v1145 = vadd.f32 %v668, %v1144
    %1146 = vdwg.mxu0
    %v1147 = vmax.f32 %v701, 0.0
    %v1148 = vmax.f32 %v730, 0.0
    %v1149 = vmax.f32 %v759, 0.0
    %v1150 = vmax.f32 %v788, 0.0
    %v1151 = vmax.f32 %v817, 0.0
    %v1152 = vmax.f32 %v846, 0.0
    %v1153 = vmax.f32 %v875, 0.0
    %v1154 = vmax.f32 %v904, 0.0
    %v1155 = vmax.f32 %v933, 0.0
    %v1156 = vmax.f32 %v962, 0.0
    %v1157 = vmax.f32 %v991, 0.0
    %v1158 = vmax.f32 %v1020, 0.0
    %v1159 = vmax.f32 %v1049, 0.0
    %v1160 = vmax.f32 %v1078, 0.0
    %v1161 = vmax.f32 %v1107, 0.0
    %v1162 = vmax.f32 %v1136, 0.0
    %v1163 = vmax.f32 %v704, 0.0
    %v1164 = vmax.f32 %v733, 0.0
    %v1165 = vmax.f32 %v762, 0.0
    %v1166 = vmax.f32 %v791, 0.0
    %v1167 = vmax.f32 %v820, 0.0
    %v1168 = vmax.f32 %v849, 0.0
    %v1169 = vmax.f32 %v878, 0.0
    %v1170 = vmax.f32 %v907, 0.0
    %v1171 = vmax.f32 %v936, 0.0
    %v1172 = vmax.f32 %v965, 0.0
    %v1173 = vmax.f32 %v994, 0.0
    %v1174 = vmax.f32 %v1023, 0.0
    %v1175 = vmax.f32 %v1052, 0.0
    %v1176 = vmax.f32 %v1081, 0.0
    %v1177 = vmax.f32 %v1110, 0.0
    %v1178 = vmax.f32 %v1139, 0.0
    %v1179 = vmax.f32 %v707, 0.0
    %v1180 = vmax.f32 %v736, 0.0
    %v1181 = vmax.f32 %v765, 0.0
    %v1182 = vmax.f32 %v794, 0.0
    %v1183 = vmax.f32 %v823, 0.0
    %v1184 = vmax.f32 %v852, 0.0
    %v1185 = vmax.f32 %v881, 0.0
    %v1186 = vmax.f32 %v910, 0.0
    %v1187 = vmax.f32 %v939, 0.0
    %v1188 = vmax.f32 %v968, 0.0
    %v1189 = vmax.f32 %v997, 0.0
    %v1190 = vmax.f32 %v1026, 0.0
    %v1191 = vmax.f32 %v1055, 0.0
    %v1192 = vmax.f32 %v1084, 0.0
    %v1193 = vmax.f32 %v1113, 0.0
    %v1194 = vmax.f32 %v1142, 0.0
    %v1195 = vmax.f32 %v710, 0.0
    %v1196 = vmax.f32 %v739, 0.0
    %v1197 = vmax.f32 %v768, 0.0
    %v1198 = vmax.f32 %v797, 0.0
    %v1199 = vmax.f32 %v826, 0.0
    %v1200 = vmax.f32 %v855, 0.0
    %v1201 = vmax.f32 %v884, 0.0
    %v1202 = vmax.f32 %v913, 0.0
    %v1203 = vmax.f32 %v942, 0.0
    %v1204 = vmax.f32 %v971, 0.0
    %v1205 = vmax.f32 %v1000, 0.0
    %v1206 = vmax.f32 %v1029, 0.0
    %v1207 = vmax.f32 %v1058, 0.0
    %v1208 = vmax.f32 %v1087, 0.0
    %v1209 = vmax.f32 %v1116, 0.0
    %v1210 = vmax.f32 %v1145, 0.0
    %s1211 = scalar_lea.vmem %s2, 64
    %v1212 = vld [vmem:[%s1211] sm:$0xff]
    %v1213 = vld [vmem:[%s1211 + $0x8] sm:$0xff]
    %v1214 = vld [vmem:[%s1211 + $0x10] sm:$0xff]
    %v1215 = vld [vmem:[%s1211 + $0x18] sm:$0xff]
    %s1216 = scalar_lea.vmem %s1, 64
    %v1217 = vld [vmem:[%s1216] sm:$0xff]
    %v1218 = vld [vmem:[%s1216 + $0x8] sm:$0xff]
    %v1219 = vld [vmem:[%s1216 + $0x10] sm:$0xff]
    %v1220 = vld [vmem:[%s1216 + $0x18] sm:$0xff]
    %1222 = vset.pattern.permute.xlu0 0
    %1223 = vperm.xlu0 %1222, %v1212
    %v1224 = vpop.permute.xlu0 %1223
    %1227 = vset.pattern.permute.xlu0 0
    %1228 = vperm.xlu0 %1227, %v1213
    %v1229 = vpop.permute.xlu0 %1228
    %1232 = vset.pattern.permute.xlu0 0
    %1233 = vperm.xlu0 %1232, %v1214
    %v1234 = vpop.permute.xlu0 %1233
    %1237 = vset.pattern.permute.xlu0 0
    %1238 = vperm.xlu0 %1237, %v1215
    %v1239 = vpop.permute.xlu0 %1238
    %v1242 = vsel %vm670, %v1217, 0
    %v1245 = vsel %vm670, %v1218, 0
    %v1248 = vsel %vm670, %v1219, 0
    %v1251 = vsel %vm670, %v1220, 0
    %1253 = vmatpush.msra.mxu0 0.0
    %1254 = vmatpush.msra.mxu0 0.0
    %1255 = vmatpush.msra.mxu0 0.0
    %1256 = vmatpush.msra.mxu0 0.0
    %1257 = vmatpush.msra.mxu0 0.0
    %1258 = vmatpush.msra.mxu0 0.0
    %1259 = vmatpush.msra.mxu0 0.0
    %1260 = vmatpush.msra.mxu0 0.0
    %1261 = vmatpush.msra.mxu0 0.0
    %1262 = vmatpush.msra.mxu0 0.0
    %1263 = vmatpush.msra.mxu0 0.0
    %1264 = vmatpush.msra.mxu0 0.0
    %1265 = vmatpush.msra.mxu0 %v1195
    %1266 = vmatpush.msra.mxu0 %v1179
    %1267 = vmatpush.msra.mxu0 %v1163
    %1268 = vmatpush.msra.mxu0 %v1147
    %1269 = vmatmul.f32.gmra.mxu0 %v1242
    %v1270 = vpop.f32.mrf.mxu0
    %v1271 = vadd.f32 %v1224, %v1270
    %1272 = vmatmul.f32.gmra.mxu0 %v1245
    %v1273 = vpop.f32.mrf.mxu0
    %v1274 = vadd.f32 %v1229, %v1273
    %1275 = vmatmul.f32.gmra.mxu0 %v1248
    %v1276 = vpop.f32.mrf.mxu0
    %v1277 = vadd.f32 %v1234, %v1276
    %1278 = vmatmul.f32.gmra.mxu0 %v1251
    %v1279 = vpop.f32.mrf.mxu0
    %v1280 = vadd.f32 %v1239, %v1279
    %1281 = vdwg.mxu0
    %1282 = vmatpush.msra.mxu0 0.0
    %1283 = vmatpush.msra.mxu0 0.0
    %1284 = vmatpush.msra.mxu0 0.0
    %1285 = vmatpush.msra.mxu0 0.0
    %1286 = vmatpush.msra.mxu0 0.0
    %1287 = vmatpush.msra.mxu0 0.0
    %1288 = vmatpush.msra.mxu0 0.0
    %1289 = vmatpush.msra.mxu0 0.0
    %1290 = vmatpush.msra.mxu0 0.0
    %1291 = vmatpush.msra.mxu0 0.0
    %1292 = vmatpush.msra.mxu0 0.0
    %1293 = vmatpush.msra.mxu0 0.0
    %1294 = vmatpush.msra.mxu0 %v1196
    %1295 = vmatpush.msra.mxu0 %v1180
    %1296 = vmatpush.msra.mxu0 %v1164
    %1297 = vmatpush.msra.mxu0 %v1148
    %1298 = vmatmul.f32.gmra.mxu0 %v1242
    %v1299 = vpop.f32.mrf.mxu0
    %v1300 = vadd.f32 %v1224, %v1299
    %1301 = vmatmul.f32.gmra.mxu0 %v1245
    %v1302 = vpop.f32.mrf.mxu0
    %v1303 = vadd.f32 %v1229, %v1302
    %1304 = vmatmul.f32.gmra.mxu0 %v1248
    %v1305 = vpop.f32.mrf.mxu0
    %v1306 = vadd.f32 %v1234, %v1305
    %1307 = vmatmul.f32.gmra.mxu0 %v1251
    %v1308 = vpop.f32.mrf.mxu0
    %v1309 = vadd.f32 %v1239, %v1308
    %1310 = vdwg.mxu0
    %1311 = vmatpush.msra.mxu0 0.0
    %1312 = vmatpush.msra.mxu0 0.0
    %1313 = vmatpush.msra.mxu0 0.0
    %1314 = vmatpush.msra.mxu0 0.0
    %1315 = vmatpush.msra.mxu0 0.0
    %1316 = vmatpush.msra.mxu0 0.0
    %1317 = vmatpush.msra.mxu0 0.0
    %1318 = vmatpush.msra.mxu0 0.0
    %1319 = vmatpush.msra.mxu0 0.0
    %1320 = vmatpush.msra.mxu0 0.0
    %1321 = vmatpush.msra.mxu0 0.0
    %1322 = vmatpush.msra.mxu0 0.0
    %1323 = vmatpush.msra.mxu0 %v1197
    %1324 = vmatpush.msra.mxu0 %v1181
    %1325 = vmatpush.msra.mxu0 %v1165
    %1326 = vmatpush.msra.mxu0 %v1149
    %1327 = vmatmul.f32.gmra.mxu0 %v1242
    %v1328 = vpop.f32.mrf.mxu0
    %v1329 = vadd.f32 %v1224, %v1328
    %1330 = vmatmul.f32.gmra.mxu0 %v1245
    %v1331 = vpop.f32.mrf.mxu0
    %v1332 = vadd.f32 %v1229, %v1331
    %1333 = vmatmul.f32.gmra.mxu0 %v1248
    %v1334 = vpop.f32.mrf.mxu0
    %v1335 = vadd.f32 %v1234, %v1334
    %1336 = vmatmul.f32.gmra.mxu0 %v1251
    %v1337 = vpop.f32.mrf.mxu0
    %v1338 = vadd.f32 %v1239, %v1337
    %1339 = vdwg.mxu0
    %1340 = vmatpush.msra.mxu0 0.0
    %1341 = vmatpush.msra.mxu0 0.0
    %1342 = vmatpush.msra.mxu0 0.0
    %1343 = vmatpush.msra.mxu0 0.0
    %1344 = vmatpush.msra.mxu0 0.0
    %1345 = vmatpush.msra.mxu0 0.0
    %1346 = vmatpush.msra.mxu0 0.0
    %1347 = vmatpush.msra.mxu0 0.0
    %1348 = vmatpush.msra.mxu0 0.0
    %1349 = vmatpush.msra.mxu0 0.0
    %1350 = vmatpush.msra.mxu0 0.0
    %1351 = vmatpush.msra.mxu0 0.0
    %1352 = vmatpush.msra.mxu0 %v1198
    %1353 = vmatpush.msra.mxu0 %v1182
    %1354 = vmatpush.msra.mxu0 %v1166
    %1355 = vmatpush.msra.mxu0 %v1150
    %1356 = vmatmul.f32.gmra.mxu0 %v1242
    %v1357 = vpop.f32.mrf.mxu0
    %v1358 = vadd.f32 %v1224, %v1357
    %1359 = vmatmul.f32.gmra.mxu0 %v1245
    %v1360 = vpop.f32.mrf.mxu0
    %v1361 = vadd.f32 %v1229, %v1360
    %1362 = vmatmul.f32.gmra.mxu0 %v1248
    %v1363 = vpop.f32.mrf.mxu0
    %v1364 = vadd.f32 %v1234, %v1363
    %1365 = vmatmul.f32.gmra.mxu0 %v1251
    %v1366 = vpop.f32.mrf.mxu0
    %v1367 = vadd.f32 %v1239, %v1366
    %1368 = vdwg.mxu0
    %1369 = vmatpush.msra.mxu0 0.0
    %1370 = vmatpush.msra.mxu0 0.0
    %1371 = vmatpush.msra.mxu0 0.0
    %1372 = vmatpush.msra.mxu0 0.0
    %1373 = vmatpush.msra.mxu0 0.0
    %1374 = vmatpush.msra.mxu0 0.0
    %1375 = vmatpush.msra.mxu0 0.0
    %1376 = vmatpush.msra.mxu0 0.0
    %1377 = vmatpush.msra.mxu0 0.0
    %1378 = vmatpush.msra.mxu0 0.0
    %1379 = vmatpush.msra.mxu0 0.0
    %1380 = vmatpush.msra.mxu0 0.0
    %1381 = vmatpush.msra.mxu0 %v1199
    %1382 = vmatpush.msra.mxu0 %v1183
    %1383 = vmatpush.msra.mxu0 %v1167
    %1384 = vmatpush.msra.mxu0 %v1151
    %1385 = vmatmul.f32.gmra.mxu0 %v1242
    %v1386 = vpop.f32.mrf.mxu0
    %v1387 = vadd.f32 %v1224, %v1386
    %1388 = vmatmul.f32.gmra.mxu0 %v1245
    %v1389 = vpop.f32.mrf.mxu0
    %v1390 = vadd.f32 %v1229, %v1389
    %1391 = vmatmul.f32.gmra.mxu0 %v1248
    %v1392 = vpop.f32.mrf.mxu0
    %v1393 = vadd.f32 %v1234, %v1392
    %1394 = vmatmul.f32.gmra.mxu0 %v1251
    %v1395 = vpop.f32.mrf.mxu0
    %v1396 = vadd.f32 %v1239, %v1395
    %1397 = vdwg.mxu0
    %1398 = vmatpush.msra.mxu0 0.0
    %1399 = vmatpush.msra.mxu0 0.0
    %1400 = vmatpush.msra.mxu0 0.0
    %1401 = vmatpush.msra.mxu0 0.0
    %1402 = vmatpush.msra.mxu0 0.0
    %1403 = vmatpush.msra.mxu0 0.0
    %1404 = vmatpush.msra.mxu0 0.0
    %1405 = vmatpush.msra.mxu0 0.0
    %1406 = vmatpush.msra.mxu0 0.0
    %1407 = vmatpush.msra.mxu0 0.0
    %1408 = vmatpush.msra.mxu0 0.0
    %1409 = vmatpush.msra.mxu0 0.0
    %1410 = vmatpush.msra.mxu0 %v1200
    %1411 = vmatpush.msra.mxu0 %v1184
    %1412 = vmatpush.msra.mxu0 %v1168
    %1413 = vmatpush.msra.mxu0 %v1152
    %1414 = vmatmul.f32.gmra.mxu0 %v1242
    %v1415 = vpop.f32.mrf.mxu0
    %v1416 = vadd.f32 %v1224, %v1415
    %1417 = vmatmul.f32.gmra.mxu0 %v1245
    %v1418 = vpop.f32.mrf.mxu0
    %v1419 = vadd.f32 %v1229, %v1418
    %1420 = vmatmul.f32.gmra.mxu0 %v1248
    %v1421 = vpop.f32.mrf.mxu0
    %v1422 = vadd.f32 %v1234, %v1421
    %1423 = vmatmul.f32.gmra.mxu0 %v1251
    %v1424 = vpop.f32.mrf.mxu0
    %v1425 = vadd.f32 %v1239, %v1424
    %1426 = vdwg.mxu0
    %1427 = vmatpush.msra.mxu0 0.0
    %1428 = vmatpush.msra.mxu0 0.0
    %1429 = vmatpush.msra.mxu0 0.0
    %1430 = vmatpush.msra.mxu0 0.0
    %1431 = vmatpush.msra.mxu0 0.0
    %1432 = vmatpush.msra.mxu0 0.0
    %1433 = vmatpush.msra.mxu0 0.0
    %1434 = vmatpush.msra.mxu0 0.0
    %1435 = vmatpush.msra.mxu0 0.0
    %1436 = vmatpush.msra.mxu0 0.0
    %1437 = vmatpush.msra.mxu0 0.0
    %1438 = vmatpush.msra.mxu0 0.0
    %1439 = vmatpush.msra.mxu0 %v1201
    %1440 = vmatpush.msra.mxu0 %v1185
    %1441 = vmatpush.msra.mxu0 %v1169
    %1442 = vmatpush.msra.mxu0 %v1153
    %1443 = vmatmul.f32.gmra.mxu0 %v1242
    %v1444 = vpop.f32.mrf.mxu0
    %v1445 = vadd.f32 %v1224, %v1444
    %1446 = vmatmul.f32.gmra.mxu0 %v1245
    %v1447 = vpop.f32.mrf.mxu0
    %v1448 = vadd.f32 %v1229, %v1447
    %1449 = vmatmul.f32.gmra.mxu0 %v1248
    %v1450 = vpop.f32.mrf.mxu0
    %v1451 = vadd.f32 %v1234, %v1450
    %1452 = vmatmul.f32.gmra.mxu0 %v1251
    %v1453 = vpop.f32.mrf.mxu0
    %v1454 = vadd.f32 %v1239, %v1453
    %1455 = vdwg.mxu0
    %1456 = vmatpush.msra.mxu0 0.0
    %1457 = vmatpush.msra.mxu0 0.0
    %1458 = vmatpush.msra.mxu0 0.0
    %1459 = vmatpush.msra.mxu0 0.0
    %1460 = vmatpush.msra.mxu0 0.0
    %1461 = vmatpush.msra.mxu0 0.0
    %1462 = vmatpush.msra.mxu0 0.0
    %1463 = vmatpush.msra.mxu0 0.0
    %1464 = vmatpush.msra.mxu0 0.0
    %1465 = vmatpush.msra.mxu0 0.0
    %1466 = vmatpush.msra.mxu0 0.0
    %1467 = vmatpush.msra.mxu0 0.0
    %1468 = vmatpush.msra.mxu0 %v1202
    %1469 = vmatpush.msra.mxu0 %v1186
    %1470 = vmatpush.msra.mxu0 %v1170
    %1471 = vmatpush.msra.mxu0 %v1154
    %1472 = vmatmul.f32.gmra.mxu0 %v1242
    %v1473 = vpop.f32.mrf.mxu0
    %v1474 = vadd.f32 %v1224, %v1473
    %1475 = vmatmul.f32.gmra.mxu0 %v1245
    %v1476 = vpop.f32.mrf.mxu0
    %v1477 = vadd.f32 %v1229, %v1476
    %1478 = vmatmul.f32.gmra.mxu0 %v1248
    %v1479 = vpop.f32.mrf.mxu0
    %v1480 = vadd.f32 %v1234, %v1479
    %1481 = vmatmul.f32.gmra.mxu0 %v1251
    %v1482 = vpop.f32.mrf.mxu0
    %v1483 = vadd.f32 %v1239, %v1482
    %1484 = vdwg.mxu0
    %1485 = vmatpush.msra.mxu0 0.0
    %1486 = vmatpush.msra.mxu0 0.0
    %1487 = vmatpush.msra.mxu0 0.0
    %1488 = vmatpush.msra.mxu0 0.0
    %1489 = vmatpush.msra.mxu0 0.0
    %1490 = vmatpush.msra.mxu0 0.0
    %1491 = vmatpush.msra.mxu0 0.0
    %1492 = vmatpush.msra.mxu0 0.0
    %1493 = vmatpush.msra.mxu0 0.0
    %1494 = vmatpush.msra.mxu0 0.0
    %1495 = vmatpush.msra.mxu0 0.0
    %1496 = vmatpush.msra.mxu0 0.0
    %1497 = vmatpush.msra.mxu0 %v1203
    %1498 = vmatpush.msra.mxu0 %v1187
    %1499 = vmatpush.msra.mxu0 %v1171
    %1500 = vmatpush.msra.mxu0 %v1155
    %1501 = vmatmul.f32.gmra.mxu0 %v1242
    %v1502 = vpop.f32.mrf.mxu0
    %v1503 = vadd.f32 %v1224, %v1502
    %1504 = vmatmul.f32.gmra.mxu0 %v1245
    %v1505 = vpop.f32.mrf.mxu0
    %v1506 = vadd.f32 %v1229, %v1505
    %1507 = vmatmul.f32.gmra.mxu0 %v1248
    %v1508 = vpop.f32.mrf.mxu0
    %v1509 = vadd.f32 %v1234, %v1508
    %1510 = vmatmul.f32.gmra.mxu0 %v1251
    %v1511 = vpop.f32.mrf.mxu0
    %v1512 = vadd.f32 %v1239, %v1511
    %1513 = vdwg.mxu0
    %1514 = vmatpush.msra.mxu0 0.0
    %1515 = vmatpush.msra.mxu0 0.0
    %1516 = vmatpush.msra.mxu0 0.0
    %1517 = vmatpush.msra.mxu0 0.0
    %1518 = vmatpush.msra.mxu0 0.0
    %1519 = vmatpush.msra.mxu0 0.0
    %1520 = vmatpush.msra.mxu0 0.0
    %1521 = vmatpush.msra.mxu0 0.0
    %1522 = vmatpush.msra.mxu0 0.0
    %1523 = vmatpush.msra.mxu0 0.0
    %1524 = vmatpush.msra.mxu0 0.0
    %1525 = vmatpush.msra.mxu0 0.0
    %1526 = vmatpush.msra.mxu0 %v1204
    %1527 = vmatpush.msra.mxu0 %v1188
    %1528 = vmatpush.msra.mxu0 %v1172
    %1529 = vmatpush.msra.mxu0 %v1156
    %1530 = vmatmul.f32.gmra.mxu0 %v1242
    %v1531 = vpop.f32.mrf.mxu0
    %v1532 = vadd.f32 %v1224, %v1531
    %1533 = vmatmul.f32.gmra.mxu0 %v1245
    %v1534 = vpop.f32.mrf.mxu0
    %v1535 = vadd.f32 %v1229, %v1534
    %1536 = vmatmul.f32.gmra.mxu0 %v1248
    %v1537 = vpop.f32.mrf.mxu0
    %v1538 = vadd.f32 %v1234, %v1537
    %1539 = vmatmul.f32.gmra.mxu0 %v1251
    %v1540 = vpop.f32.mrf.mxu0
    %v1541 = vadd.f32 %v1239, %v1540
    %1542 = vdwg.mxu0
    %1543 = vmatpush.msra.mxu0 0.0
    %1544 = vmatpush.msra.mxu0 0.0
    %1545 = vmatpush.msra.mxu0 0.0
    %1546 = vmatpush.msra.mxu0 0.0
    %1547 = vmatpush.msra.mxu0 0.0
    %1548 = vmatpush.msra.mxu0 0.0
    %1549 = vmatpush.msra.mxu0 0.0
    %1550 = vmatpush.msra.mxu0 0.0
    %1551 = vmatpush.msra.mxu0 0.0
    %1552 = vmatpush.msra.mxu0 0.0
    %1553 = vmatpush.msra.mxu0 0.0
    %1554 = vmatpush.msra.mxu0 0.0
    %1555 = vmatpush.msra.mxu0 %v1205
    %1556 = vmatpush.msra.mxu0 %v1189
    %1557 = vmatpush.msra.mxu0 %v1173
    %1558 = vmatpush.msra.mxu0 %v1157
    %1559 = vmatmul.f32.gmra.mxu0 %v1242
    %v1560 = vpop.f32.mrf.mxu0
    %v1561 = vadd.f32 %v1224, %v1560
    %1562 = vmatmul.f32.gmra.mxu0 %v1245
    %v1563 = vpop.f32.mrf.mxu0
    %v1564 = vadd.f32 %v1229, %v1563
    %1565 = vmatmul.f32.gmra.mxu0 %v1248
    %v1566 = vpop.f32.mrf.mxu0
    %v1567 = vadd.f32 %v1234, %v1566
    %1568 = vmatmul.f32.gmra.mxu0 %v1251
    %v1569 = vpop.f32.mrf.mxu0
    %v1570 = vadd.f32 %v1239, %v1569
    %1571 = vdwg.mxu0
    %1572 = vmatpush.msra.mxu0 0.0
    %1573 = vmatpush.msra.mxu0 0.0
    %1574 = vmatpush.msra.mxu0 0.0
    %1575 = vmatpush.msra.mxu0 0.0
    %1576 = vmatpush.msra.mxu0 0.0
    %1577 = vmatpush.msra.mxu0 0.0
    %1578 = vmatpush.msra.mxu0 0.0
    %1579 = vmatpush.msra.mxu0 0.0
    %1580 = vmatpush.msra.mxu0 0.0
    %1581 = vmatpush.msra.mxu0 0.0
    %1582 = vmatpush.msra.mxu0 0.0
    %1583 = vmatpush.msra.mxu0 0.0
    %1584 = vmatpush.msra.mxu0 %v1206
    %1585 = vmatpush.msra.mxu0 %v1190
    %1586 = vmatpush.msra.mxu0 %v1174
    %1587 = vmatpush.msra.mxu0 %v1158
    %1588 = vmatmul.f32.gmra.mxu0 %v1242
    %v1589 = vpop.f32.mrf.mxu0
    %v1590 = vadd.f32 %v1224, %v1589
    %1591 = vmatmul.f32.gmra.mxu0 %v1245
    %v1592 = vpop.f32.mrf.mxu0
    %v1593 = vadd.f32 %v1229, %v1592
    %1594 = vmatmul.f32.gmra.mxu0 %v1248
    %v1595 = vpop.f32.mrf.mxu0
    %v1596 = vadd.f32 %v1234, %v1595
    %1597 = vmatmul.f32.gmra.mxu0 %v1251
    %v1598 = vpop.f32.mrf.mxu0
    %v1599 = vadd.f32 %v1239, %v1598
    %1600 = vdwg.mxu0
    %1601 = vmatpush.msra.mxu0 0.0
    %1602 = vmatpush.msra.mxu0 0.0
    %1603 = vmatpush.msra.mxu0 0.0
    %1604 = vmatpush.msra.mxu0 0.0
    %1605 = vmatpush.msra.mxu0 0.0
    %1606 = vmatpush.msra.mxu0 0.0
    %1607 = vmatpush.msra.mxu0 0.0
    %1608 = vmatpush.msra.mxu0 0.0
    %1609 = vmatpush.msra.mxu0 0.0
    %1610 = vmatpush.msra.mxu0 0.0
    %1611 = vmatpush.msra.mxu0 0.0
    %1612 = vmatpush.msra.mxu0 0.0
    %1613 = vmatpush.msra.mxu0 %v1207
    %1614 = vmatpush.msra.mxu0 %v1191
    %1615 = vmatpush.msra.mxu0 %v1175
    %1616 = vmatpush.msra.mxu0 %v1159
    %1617 = vmatmul.f32.gmra.mxu0 %v1242
    %v1618 = vpop.f32.mrf.mxu0
    %v1619 = vadd.f32 %v1224, %v1618
    %1620 = vmatmul.f32.gmra.mxu0 %v1245
    %v1621 = vpop.f32.mrf.mxu0
    %v1622 = vadd.f32 %v1229, %v1621
    %1623 = vmatmul.f32.gmra.mxu0 %v1248
    %v1624 = vpop.f32.mrf.mxu0
    %v1625 = vadd.f32 %v1234, %v1624
    %1626 = vmatmul.f32.gmra.mxu0 %v1251
    %v1627 = vpop.f32.mrf.mxu0
    %v1628 = vadd.f32 %v1239, %v1627
    %1629 = vdwg.mxu0
    %1630 = vmatpush.msra.mxu0 0.0
    %1631 = vmatpush.msra.mxu0 0.0
    %1632 = vmatpush.msra.mxu0 0.0
    %1633 = vmatpush.msra.mxu0 0.0
    %1634 = vmatpush.msra.mxu0 0.0
    %1635 = vmatpush.msra.mxu0 0.0
    %1636 = vmatpush.msra.mxu0 0.0
    %1637 = vmatpush.msra.mxu0 0.0
    %1638 = vmatpush.msra.mxu0 0.0
    %1639 = vmatpush.msra.mxu0 0.0
    %1640 = vmatpush.msra.mxu0 0.0
    %1641 = vmatpush.msra.mxu0 0.0
    %1642 = vmatpush.msra.mxu0 %v1208
    %1643 = vmatpush.msra.mxu0 %v1192
    %1644 = vmatpush.msra.mxu0 %v1176
    %1645 = vmatpush.msra.mxu0 %v1160
    %1646 = vmatmul.f32.gmra.mxu0 %v1242
    %v1647 = vpop.f32.mrf.mxu0
    %v1648 = vadd.f32 %v1224, %v1647
    %1649 = vmatmul.f32.gmra.mxu0 %v1245
    %v1650 = vpop.f32.mrf.mxu0
    %v1651 = vadd.f32 %v1229, %v1650
    %1652 = vmatmul.f32.gmra.mxu0 %v1248
    %v1653 = vpop.f32.mrf.mxu0
    %v1654 = vadd.f32 %v1234, %v1653
    %1655 = vmatmul.f32.gmra.mxu0 %v1251
    %v1656 = vpop.f32.mrf.mxu0
    %v1657 = vadd.f32 %v1239, %v1656
    %1658 = vdwg.mxu0
    %1659 = vmatpush.msra.mxu0 0.0
    %1660 = vmatpush.msra.mxu0 0.0
    %1661 = vmatpush.msra.mxu0 0.0
    %1662 = vmatpush.msra.mxu0 0.0
    %1663 = vmatpush.msra.mxu0 0.0
    %1664 = vmatpush.msra.mxu0 0.0
    %1665 = vmatpush.msra.mxu0 0.0
    %1666 = vmatpush.msra.mxu0 0.0
    %1667 = vmatpush.msra.mxu0 0.0
    %1668 = vmatpush.msra.mxu0 0.0
    %1669 = vmatpush.msra.mxu0 0.0
    %1670 = vmatpush.msra.mxu0 0.0
    %1671 = vmatpush.msra.mxu0 %v1209
    %1672 = vmatpush.msra.mxu0 %v1193
    %1673 = vmatpush.msra.mxu0 %v1177
    %1674 = vmatpush.msra.mxu0 %v1161
    %1675 = vmatmul.f32.gmra.mxu0 %v1242
    %v1676 = vpop.f32.mrf.mxu0
    %v1677 = vadd.f32 %v1224, %v1676
    %1678 = vmatmul.f32.gmra.mxu0 %v1245
    %v1679 = vpop.f32.mrf.mxu0
    %v1680 = vadd.f32 %v1229, %v1679
    %1681 = vmatmul.f32.gmra.mxu0 %v1248
    %v1682 = vpop.f32.mrf.mxu0
    %v1683 = vadd.f32 %v1234, %v1682
    %1684 = vmatmul.f32.gmra.mxu0 %v1251
    %v1685 = vpop.f32.mrf.mxu0
    %v1686 = vadd.f32 %v1239, %v1685
    %1687 = vdwg.mxu0
    %1688 = vmatpush.msra.mxu0 0.0
    %1689 = vmatpush.msra.mxu0 0.0
    %1690 = vmatpush.msra.mxu0 0.0
    %1691 = vmatpush.msra.mxu0 0.0
    %1692 = vmatpush.msra.mxu0 0.0
    %1693 = vmatpush.msra.mxu0 0.0
    %1694 = vmatpush.msra.mxu0 0.0
    %1695 = vmatpush.msra.mxu0 0.0
    %1696 = vmatpush.msra.mxu0 0.0
    %1697 = vmatpush.msra.mxu0 0.0
    %1698 = vmatpush.msra.mxu0 0.0
    %1699 = vmatpush.msra.mxu0 0.0
    %1700 = vmatpush.msra.mxu0 %v1210
    %1701 = vmatpush.msra.mxu0 %v1194
    %1702 = vmatpush.msra.mxu0 %v1178
    %1703 = vmatpush.msra.mxu0 %v1162
    %1704 = vmatmul.f32.gmra.mxu0 %v1242
    %v1705 = vpop.f32.mrf.mxu0
    %v1706 = vadd.f32 %v1224, %v1705
    %1707 = vmatmul.f32.gmra.mxu0 %v1245
    %v1708 = vpop.f32.mrf.mxu0
    %v1709 = vadd.f32 %v1229, %v1708
    %1710 = vmatmul.f32.gmra.mxu0 %v1248
    %v1711 = vpop.f32.mrf.mxu0
    %v1712 = vadd.f32 %v1234, %v1711
    %1713 = vmatmul.f32.gmra.mxu0 %v1251
    %v1714 = vpop.f32.mrf.mxu0
    %v1715 = vadd.f32 %v1239, %v1714
    %1716 = vdwg.mxu0
    %v1717 = vmax.f32 %v1271, 0.0
    %v1718 = vmax.f32 %v1300, 0.0
    %v1719 = vmax.f32 %v1329, 0.0
    %v1720 = vmax.f32 %v1358, 0.0
    %v1721 = vmax.f32 %v1387, 0.0
    %v1722 = vmax.f32 %v1416, 0.0
    %v1723 = vmax.f32 %v1445, 0.0
    %v1724 = vmax.f32 %v1474, 0.0
    %v1725 = vmax.f32 %v1503, 0.0
    %v1726 = vmax.f32 %v1532, 0.0
    %v1727 = vmax.f32 %v1561, 0.0
    %v1728 = vmax.f32 %v1590, 0.0
    %v1729 = vmax.f32 %v1619, 0.0
    %v1730 = vmax.f32 %v1648, 0.0
    %v1731 = vmax.f32 %v1677, 0.0
    %v1732 = vmax.f32 %v1706, 0.0
    %v1733 = vmax.f32 %v1274, 0.0
    %v1734 = vmax.f32 %v1303, 0.0
    %v1735 = vmax.f32 %v1332, 0.0
    %v1736 = vmax.f32 %v1361, 0.0
    %v1737 = vmax.f32 %v1390, 0.0
    %v1738 = vmax.f32 %v1419, 0.0
    %v1739 = vmax.f32 %v1448, 0.0
    %v1740 = vmax.f32 %v1477, 0.0
    %v1741 = vmax.f32 %v1506, 0.0
    %v1742 = vmax.f32 %v1535, 0.0
    %v1743 = vmax.f32 %v1564, 0.0
    %v1744 = vmax.f32 %v1593, 0.0
    %v1745 = vmax.f32 %v1622, 0.0
    %v1746 = vmax.f32 %v1651, 0.0
    %v1747 = vmax.f32 %v1680, 0.0
    %v1748 = vmax.f32 %v1709, 0.0
    %v1749 = vmax.f32 %v1277, 0.0
    %v1750 = vmax.f32 %v1306, 0.0
    %v1751 = vmax.f32 %v1335, 0.0
    %v1752 = vmax.f32 %v1364, 0.0
    %v1753 = vmax.f32 %v1393, 0.0
    %v1754 = vmax.f32 %v1422, 0.0
    %v1755 = vmax.f32 %v1451, 0.0
    %v1756 = vmax.f32 %v1480, 0.0
    %v1757 = vmax.f32 %v1509, 0.0
    %v1758 = vmax.f32 %v1538, 0.0
    %v1759 = vmax.f32 %v1567, 0.0
    %v1760 = vmax.f32 %v1596, 0.0
    %v1761 = vmax.f32 %v1625, 0.0
    %v1762 = vmax.f32 %v1654, 0.0
    %v1763 = vmax.f32 %v1683, 0.0
    %v1764 = vmax.f32 %v1712, 0.0
    %v1765 = vmax.f32 %v1280, 0.0
    %v1766 = vmax.f32 %v1309, 0.0
    %v1767 = vmax.f32 %v1338, 0.0
    %v1768 = vmax.f32 %v1367, 0.0
    %v1769 = vmax.f32 %v1396, 0.0
    %v1770 = vmax.f32 %v1425, 0.0
    %v1771 = vmax.f32 %v1454, 0.0
    %v1772 = vmax.f32 %v1483, 0.0
    %v1773 = vmax.f32 %v1512, 0.0
    %v1774 = vmax.f32 %v1541, 0.0
    %v1775 = vmax.f32 %v1570, 0.0
    %v1776 = vmax.f32 %v1599, 0.0
    %v1777 = vmax.f32 %v1628, 0.0
    %v1778 = vmax.f32 %v1657, 0.0
    %v1779 = vmax.f32 %v1686, 0.0
    %v1780 = vmax.f32 %v1715, 0.0
    %s1781 = scalar_lea.vmem %s2, 96
    %v1782 = vld [vmem:[%s1781] sm:$0xff]
    %v1783 = vld [vmem:[%s1781 + $0x8] sm:$0xff]
    %v1784 = vld [vmem:[%s1781 + $0x10] sm:$0xff]
    %v1785 = vld [vmem:[%s1781 + $0x18] sm:$0xff]
    %s1786 = scalar_lea.vmem %s1, 96
    %v1787 = vld [vmem:[%s1786] sm:$0xff]
    %v1788 = vld [vmem:[%s1786 + $0x8] sm:$0xff]
    %v1789 = vld [vmem:[%s1786 + $0x10] sm:$0xff]
    %v1790 = vld [vmem:[%s1786 + $0x18] sm:$0xff]
    %1792 = vset.pattern.permute.xlu0 0
    %1793 = vperm.xlu0 %1792, %v1782
    %v1794 = vpop.permute.xlu0 %1793
    %1797 = vset.pattern.permute.xlu0 0
    %1798 = vperm.xlu0 %1797, %v1783
    %v1799 = vpop.permute.xlu0 %1798
    %1802 = vset.pattern.permute.xlu0 0
    %1803 = vperm.xlu0 %1802, %v1784
    %v1804 = vpop.permute.xlu0 %1803
    %1807 = vset.pattern.permute.xlu0 0
    %1808 = vperm.xlu0 %1807, %v1785
    %v1809 = vpop.permute.xlu0 %1808
    %v1812 = vsel %vm670, %v1787, 0
    %v1815 = vsel %vm670, %v1788, 0
    %v1818 = vsel %vm670, %v1789, 0
    %v1821 = vsel %vm670, %v1790, 0
    %1823 = vmatpush.msra.mxu0 0.0
    %1824 = vmatpush.msra.mxu0 0.0
    %1825 = vmatpush.msra.mxu0 0.0
    %1826 = vmatpush.msra.mxu0 0.0
    %1827 = vmatpush.msra.mxu0 0.0
    %1828 = vmatpush.msra.mxu0 0.0
    %1829 = vmatpush.msra.mxu0 0.0
    %1830 = vmatpush.msra.mxu0 0.0
    %1831 = vmatpush.msra.mxu0 0.0
    %1832 = vmatpush.msra.mxu0 0.0
    %1833 = vmatpush.msra.mxu0 0.0
    %1834 = vmatpush.msra.mxu0 0.0
    %1835 = vmatpush.msra.mxu0 %v1765
    %1836 = vmatpush.msra.mxu0 %v1749
    %1837 = vmatpush.msra.mxu0 %v1733
    %1838 = vmatpush.msra.mxu0 %v1717
    %1839 = vmatmul.f32.gmra.mxu0 %v1812
    %v1840 = vpop.f32.mrf.mxu0
    %v1841 = vadd.f32 %v1794, %v1840
    %1842 = vmatmul.f32.gmra.mxu0 %v1815
    %v1843 = vpop.f32.mrf.mxu0
    %v1844 = vadd.f32 %v1799, %v1843
    %1845 = vmatmul.f32.gmra.mxu0 %v1818
    %v1846 = vpop.f32.mrf.mxu0
    %v1847 = vadd.f32 %v1804, %v1846
    %1848 = vmatmul.f32.gmra.mxu0 %v1821
    %v1849 = vpop.f32.mrf.mxu0
    %v1850 = vadd.f32 %v1809, %v1849
    %1851 = vdwg.mxu0
    %1852 = vmatpush.msra.mxu0 0.0
    %1853 = vmatpush.msra.mxu0 0.0
    %1854 = vmatpush.msra.mxu0 0.0
    %1855 = vmatpush.msra.mxu0 0.0
    %1856 = vmatpush.msra.mxu0 0.0
    %1857 = vmatpush.msra.mxu0 0.0
    %1858 = vmatpush.msra.mxu0 0.0
    %1859 = vmatpush.msra.mxu0 0.0
    %1860 = vmatpush.msra.mxu0 0.0
    %1861 = vmatpush.msra.mxu0 0.0
    %1862 = vmatpush.msra.mxu0 0.0
    %1863 = vmatpush.msra.mxu0 0.0
    %1864 = vmatpush.msra.mxu0 %v1766
    %1865 = vmatpush.msra.mxu0 %v1750
    %1866 = vmatpush.msra.mxu0 %v1734
    %1867 = vmatpush.msra.mxu0 %v1718
    %1868 = vmatmul.f32.gmra.mxu0 %v1812
    %v1869 = vpop.f32.mrf.mxu0
    %v1870 = vadd.f32 %v1794, %v1869
    %1871 = vmatmul.f32.gmra.mxu0 %v1815
    %v1872 = vpop.f32.mrf.mxu0
    %v1873 = vadd.f32 %v1799, %v1872
    %1874 = vmatmul.f32.gmra.mxu0 %v1818
    %v1875 = vpop.f32.mrf.mxu0
    %v1876 = vadd.f32 %v1804, %v1875
    %1877 = vmatmul.f32.gmra.mxu0 %v1821
    %v1878 = vpop.f32.mrf.mxu0
    %v1879 = vadd.f32 %v1809, %v1878
    %1880 = vdwg.mxu0
    %1881 = vmatpush.msra.mxu0 0.0
    %1882 = vmatpush.msra.mxu0 0.0
    %1883 = vmatpush.msra.mxu0 0.0
    %1884 = vmatpush.msra.mxu0 0.0
    %1885 = vmatpush.msra.mxu0 0.0
    %1886 = vmatpush.msra.mxu0 0.0
    %1887 = vmatpush.msra.mxu0 0.0
    %1888 = vmatpush.msra.mxu0 0.0
    %1889 = vmatpush.msra.mxu0 0.0
    %1890 = vmatpush.msra.mxu0 0.0
    %1891 = vmatpush.msra.mxu0 0.0
    %1892 = vmatpush.msra.mxu0 0.0
    %1893 = vmatpush.msra.mxu0 %v1767
    %1894 = vmatpush.msra.mxu0 %v1751
    %1895 = vmatpush.msra.mxu0 %v1735
    %1896 = vmatpush.msra.mxu0 %v1719
    %1897 = vmatmul.f32.gmra.mxu0 %v1812
    %v1898 = vpop.f32.mrf.mxu0
    %v1899 = vadd.f32 %v1794, %v1898
    %1900 = vmatmul.f32.gmra.mxu0 %v1815
    %v1901 = vpop.f32.mrf.mxu0
    %v1902 = vadd.f32 %v1799, %v1901
    %1903 = vmatmul.f32.gmra.mxu0 %v1818
    %v1904 = vpop.f32.mrf.mxu0
    %v1905 = vadd.f32 %v1804, %v1904
    %1906 = vmatmul.f32.gmra.mxu0 %v1821
    %v1907 = vpop.f32.mrf.mxu0
    %v1908 = vadd.f32 %v1809, %v1907
    %1909 = vdwg.mxu0
    %1910 = vmatpush.msra.mxu0 0.0
    %1911 = vmatpush.msra.mxu0 0.0
    %1912 = vmatpush.msra.mxu0 0.0
    %1913 = vmatpush.msra.mxu0 0.0
    %1914 = vmatpush.msra.mxu0 0.0
    %1915 = vmatpush.msra.mxu0 0.0
    %1916 = vmatpush.msra.mxu0 0.0
    %1917 = vmatpush.msra.mxu0 0.0
    %1918 = vmatpush.msra.mxu0 0.0
    %1919 = vmatpush.msra.mxu0 0.0
    %1920 = vmatpush.msra.mxu0 0.0
    %1921 = vmatpush.msra.mxu0 0.0
    %1922 = vmatpush.msra.mxu0 %v1768
    %1923 = vmatpush.msra.mxu0 %v1752
    %1924 = vmatpush.msra.mxu0 %v1736
    %1925 = vmatpush.msra.mxu0 %v1720
    %1926 = vmatmul.f32.gmra.mxu0 %v1812
    %v1927 = vpop.f32.mrf.mxu0
    %v1928 = vadd.f32 %v1794, %v1927
    %1929 = vmatmul.f32.gmra.mxu0 %v1815
    %v1930 = vpop.f32.mrf.mxu0
    %v1931 = vadd.f32 %v1799, %v1930
    %1932 = vmatmul.f32.gmra.mxu0 %v1818
    %v1933 = vpop.f32.mrf.mxu0
    %v1934 = vadd.f32 %v1804, %v1933
    %1935 = vmatmul.f32.gmra.mxu0 %v1821
    %v1936 = vpop.f32.mrf.mxu0
    %v1937 = vadd.f32 %v1809, %v1936
    %1938 = vdwg.mxu0
    %1939 = vmatpush.msra.mxu0 0.0
    %1940 = vmatpush.msra.mxu0 0.0
    %1941 = vmatpush.msra.mxu0 0.0
    %1942 = vmatpush.msra.mxu0 0.0
    %1943 = vmatpush.msra.mxu0 0.0
    %1944 = vmatpush.msra.mxu0 0.0
    %1945 = vmatpush.msra.mxu0 0.0
    %1946 = vmatpush.msra.mxu0 0.0
    %1947 = vmatpush.msra.mxu0 0.0
    %1948 = vmatpush.msra.mxu0 0.0
    %1949 = vmatpush.msra.mxu0 0.0
    %1950 = vmatpush.msra.mxu0 0.0
    %1951 = vmatpush.msra.mxu0 %v1769
    %1952 = vmatpush.msra.mxu0 %v1753
    %1953 = vmatpush.msra.mxu0 %v1737
    %1954 = vmatpush.msra.mxu0 %v1721
    %1955 = vmatmul.f32.gmra.mxu0 %v1812
    %v1956 = vpop.f32.mrf.mxu0
    %v1957 = vadd.f32 %v1794, %v1956
    %1958 = vmatmul.f32.gmra.mxu0 %v1815
    %v1959 = vpop.f32.mrf.mxu0
    %v1960 = vadd.f32 %v1799, %v1959
    %1961 = vmatmul.f32.gmra.mxu0 %v1818
    %v1962 = vpop.f32.mrf.mxu0
    %v1963 = vadd.f32 %v1804, %v1962
    %1964 = vmatmul.f32.gmra.mxu0 %v1821
    %v1965 = vpop.f32.mrf.mxu0
    %v1966 = vadd.f32 %v1809, %v1965
    %1967 = vdwg.mxu0
    %1968 = vmatpush.msra.mxu0 0.0
    %1969 = vmatpush.msra.mxu0 0.0
    %1970 = vmatpush.msra.mxu0 0.0
    %1971 = vmatpush.msra.mxu0 0.0
    %1972 = vmatpush.msra.mxu0 0.0
    %1973 = vmatpush.msra.mxu0 0.0
    %1974 = vmatpush.msra.mxu0 0.0
    %1975 = vmatpush.msra.mxu0 0.0
    %1976 = vmatpush.msra.mxu0 0.0
    %1977 = vmatpush.msra.mxu0 0.0
    %1978 = vmatpush.msra.mxu0 0.0
    %1979 = vmatpush.msra.mxu0 0.0
    %1980 = vmatpush.msra.mxu0 %v1770
    %1981 = vmatpush.msra.mxu0 %v1754
    %1982 = vmatpush.msra.mxu0 %v1738
    %1983 = vmatpush.msra.mxu0 %v1722
    %1984 = vmatmul.f32.gmra.mxu0 %v1812
    %v1985 = vpop.f32.mrf.mxu0
    %v1986 = vadd.f32 %v1794, %v1985
    %1987 = vmatmul.f32.gmra.mxu0 %v1815
    %v1988 = vpop.f32.mrf.mxu0
    %v1989 = vadd.f32 %v1799, %v1988
    %1990 = vmatmul.f32.gmra.mxu0 %v1818
    %v1991 = vpop.f32.mrf.mxu0
    %v1992 = vadd.f32 %v1804, %v1991
    %1993 = vmatmul.f32.gmra.mxu0 %v1821
    %v1994 = vpop.f32.mrf.mxu0
    %v1995 = vadd.f32 %v1809, %v1994
    %1996 = vdwg.mxu0
    %1997 = vmatpush.msra.mxu0 0.0
    %1998 = vmatpush.msra.mxu0 0.0
    %1999 = vmatpush.msra.mxu0 0.0
    %2000 = vmatpush.msra.mxu0 0.0
    %2001 = vmatpush.msra.mxu0 0.0
    %2002 = vmatpush.msra.mxu0 0.0
    %2003 = vmatpush.msra.mxu0 0.0
    %2004 = vmatpush.msra.mxu0 0.0
    %2005 = vmatpush.msra.mxu0 0.0
    %2006 = vmatpush.msra.mxu0 0.0
    %2007 = vmatpush.msra.mxu0 0.0
    %2008 = vmatpush.msra.mxu0 0.0
    %2009 = vmatpush.msra.mxu0 %v1771
    %2010 = vmatpush.msra.mxu0 %v1755
    %2011 = vmatpush.msra.mxu0 %v1739
    %2012 = vmatpush.msra.mxu0 %v1723
    %2013 = vmatmul.f32.gmra.mxu0 %v1812
    %v2014 = vpop.f32.mrf.mxu0
    %v2015 = vadd.f32 %v1794, %v2014
    %2016 = vmatmul.f32.gmra.mxu0 %v1815
    %v2017 = vpop.f32.mrf.mxu0
    %v2018 = vadd.f32 %v1799, %v2017
    %2019 = vmatmul.f32.gmra.mxu0 %v1818
    %v2020 = vpop.f32.mrf.mxu0
    %v2021 = vadd.f32 %v1804, %v2020
    %2022 = vmatmul.f32.gmra.mxu0 %v1821
    %v2023 = vpop.f32.mrf.mxu0
    %v2024 = vadd.f32 %v1809, %v2023
    %2025 = vdwg.mxu0
    %2026 = vmatpush.msra.mxu0 0.0
    %2027 = vmatpush.msra.mxu0 0.0
    %2028 = vmatpush.msra.mxu0 0.0
    %2029 = vmatpush.msra.mxu0 0.0
    %2030 = vmatpush.msra.mxu0 0.0
    %2031 = vmatpush.msra.mxu0 0.0
    %2032 = vmatpush.msra.mxu0 0.0
    %2033 = vmatpush.msra.mxu0 0.0
    %2034 = vmatpush.msra.mxu0 0.0
    %2035 = vmatpush.msra.mxu0 0.0
    %2036 = vmatpush.msra.mxu0 0.0
    %2037 = vmatpush.msra.mxu0 0.0
    %2038 = vmatpush.msra.mxu0 %v1772
    %2039 = vmatpush.msra.mxu0 %v1756
    %2040 = vmatpush.msra.mxu0 %v1740
    %2041 = vmatpush.msra.mxu0 %v1724
    %2042 = vmatmul.f32.gmra.mxu0 %v1812
    %v2043 = vpop.f32.mrf.mxu0
    %v2044 = vadd.f32 %v1794, %v2043
    %2045 = vmatmul.f32.gmra.mxu0 %v1815
    %v2046 = vpop.f32.mrf.mxu0
    %v2047 = vadd.f32 %v1799, %v2046
    %2048 = vmatmul.f32.gmra.mxu0 %v1818
    %v2049 = vpop.f32.mrf.mxu0
    %v2050 = vadd.f32 %v1804, %v2049
    %2051 = vmatmul.f32.gmra.mxu0 %v1821
    %v2052 = vpop.f32.mrf.mxu0
    %v2053 = vadd.f32 %v1809, %v2052
    %2054 = vdwg.mxu0
    %2055 = vmatpush.msra.mxu0 0.0
    %2056 = vmatpush.msra.mxu0 0.0
    %2057 = vmatpush.msra.mxu0 0.0
    %2058 = vmatpush.msra.mxu0 0.0
    %2059 = vmatpush.msra.mxu0 0.0
    %2060 = vmatpush.msra.mxu0 0.0
    %2061 = vmatpush.msra.mxu0 0.0
    %2062 = vmatpush.msra.mxu0 0.0
    %2063 = vmatpush.msra.mxu0 0.0
    %2064 = vmatpush.msra.mxu0 0.0
    %2065 = vmatpush.msra.mxu0 0.0
    %2066 = vmatpush.msra.mxu0 0.0
    %2067 = vmatpush.msra.mxu0 %v1773
    %2068 = vmatpush.msra.mxu0 %v1757
    %2069 = vmatpush.msra.mxu0 %v1741
    %2070 = vmatpush.msra.mxu0 %v1725
    %2071 = vmatmul.f32.gmra.mxu0 %v1812
    %v2072 = vpop.f32.mrf.mxu0
    %v2073 = vadd.f32 %v1794, %v2072
    %2074 = vmatmul.f32.gmra.mxu0 %v1815
    %v2075 = vpop.f32.mrf.mxu0
    %v2076 = vadd.f32 %v1799, %v2075
    %2077 = vmatmul.f32.gmra.mxu0 %v1818
    %v2078 = vpop.f32.mrf.mxu0
    %v2079 = vadd.f32 %v1804, %v2078
    %2080 = vmatmul.f32.gmra.mxu0 %v1821
    %v2081 = vpop.f32.mrf.mxu0
    %v2082 = vadd.f32 %v1809, %v2081
    %2083 = vdwg.mxu0
    %2084 = vmatpush.msra.mxu0 0.0
    %2085 = vmatpush.msra.mxu0 0.0
    %2086 = vmatpush.msra.mxu0 0.0
    %2087 = vmatpush.msra.mxu0 0.0
    %2088 = vmatpush.msra.mxu0 0.0
    %2089 = vmatpush.msra.mxu0 0.0
    %2090 = vmatpush.msra.mxu0 0.0
    %2091 = vmatpush.msra.mxu0 0.0
    %2092 = vmatpush.msra.mxu0 0.0
    %2093 = vmatpush.msra.mxu0 0.0
    %2094 = vmatpush.msra.mxu0 0.0
    %2095 = vmatpush.msra.mxu0 0.0
    %2096 = vmatpush.msra.mxu0 %v1774
    %2097 = vmatpush.msra.mxu0 %v1758
    %2098 = vmatpush.msra.mxu0 %v1742
    %2099 = vmatpush.msra.mxu0 %v1726
    %2100 = vmatmul.f32.gmra.mxu0 %v1812
    %v2101 = vpop.f32.mrf.mxu0
    %v2102 = vadd.f32 %v1794, %v2101
    %2103 = vmatmul.f32.gmra.mxu0 %v1815
    %v2104 = vpop.f32.mrf.mxu0
    %v2105 = vadd.f32 %v1799, %v2104
    %2106 = vmatmul.f32.gmra.mxu0 %v1818
    %v2107 = vpop.f32.mrf.mxu0
    %v2108 = vadd.f32 %v1804, %v2107
    %2109 = vmatmul.f32.gmra.mxu0 %v1821
    %v2110 = vpop.f32.mrf.mxu0
    %v2111 = vadd.f32 %v1809, %v2110
    %2112 = vdwg.mxu0
    %2113 = vmatpush.msra.mxu0 0.0
    %2114 = vmatpush.msra.mxu0 0.0
    %2115 = vmatpush.msra.mxu0 0.0
    %2116 = vmatpush.msra.mxu0 0.0
    %2117 = vmatpush.msra.mxu0 0.0
    %2118 = vmatpush.msra.mxu0 0.0
    %2119 = vmatpush.msra.mxu0 0.0
    %2120 = vmatpush.msra.mxu0 0.0
    %2121 = vmatpush.msra.mxu0 0.0
    %2122 = vmatpush.msra.mxu0 0.0
    %2123 = vmatpush.msra.mxu0 0.0
    %2124 = vmatpush.msra.mxu0 0.0
    %2125 = vmatpush.msra.mxu0 %v1775
    %2126 = vmatpush.msra.mxu0 %v1759
    %2127 = vmatpush.msra.mxu0 %v1743
    %2128 = vmatpush.msra.mxu0 %v1727
    %2129 = vmatmul.f32.gmra.mxu0 %v1812
    %v2130 = vpop.f32.mrf.mxu0
    %v2131 = vadd.f32 %v1794, %v2130
    %2132 = vmatmul.f32.gmra.mxu0 %v1815
    %v2133 = vpop.f32.mrf.mxu0
    %v2134 = vadd.f32 %v1799, %v2133
    %2135 = vmatmul.f32.gmra.mxu0 %v1818
    %v2136 = vpop.f32.mrf.mxu0
    %v2137 = vadd.f32 %v1804, %v2136
    %2138 = vmatmul.f32.gmra.mxu0 %v1821
    %v2139 = vpop.f32.mrf.mxu0
    %v2140 = vadd.f32 %v1809, %v2139
    %2141 = vdwg.mxu0
    %2142 = vmatpush.msra.mxu0 0.0
    %2143 = vmatpush.msra.mxu0 0.0
    %2144 = vmatpush.msra.mxu0 0.0
    %2145 = vmatpush.msra.mxu0 0.0
    %2146 = vmatpush.msra.mxu0 0.0
    %2147 = vmatpush.msra.mxu0 0.0
    %2148 = vmatpush.msra.mxu0 0.0
    %2149 = vmatpush.msra.mxu0 0.0
    %2150 = vmatpush.msra.mxu0 0.0
    %2151 = vmatpush.msra.mxu0 0.0
    %2152 = vmatpush.msra.mxu0 0.0
    %2153 = vmatpush.msra.mxu0 0.0
    %2154 = vmatpush.msra.mxu0 %v1776
    %2155 = vmatpush.msra.mxu0 %v1760
    %2156 = vmatpush.msra.mxu0 %v1744
    %2157 = vmatpush.msra.mxu0 %v1728
    %2158 = vmatmul.f32.gmra.mxu0 %v1812
    %v2159 = vpop.f32.mrf.mxu0
    %v2160 = vadd.f32 %v1794, %v2159
    %2161 = vmatmul.f32.gmra.mxu0 %v1815
    %v2162 = vpop.f32.mrf.mxu0
    %v2163 = vadd.f32 %v1799, %v2162
    %2164 = vmatmul.f32.gmra.mxu0 %v1818
    %v2165 = vpop.f32.mrf.mxu0
    %v2166 = vadd.f32 %v1804, %v2165
    %2167 = vmatmul.f32.gmra.mxu0 %v1821
    %v2168 = vpop.f32.mrf.mxu0
    %v2169 = vadd.f32 %v1809, %v2168
    %2170 = vdwg.mxu0
    %2171 = vmatpush.msra.mxu0 0.0
    %2172 = vmatpush.msra.mxu0 0.0
    %2173 = vmatpush.msra.mxu0 0.0
    %2174 = vmatpush.msra.mxu0 0.0
    %2175 = vmatpush.msra.mxu0 0.0
    %2176 = vmatpush.msra.mxu0 0.0
    %2177 = vmatpush.msra.mxu0 0.0
    %2178 = vmatpush.msra.mxu0 0.0
    %2179 = vmatpush.msra.mxu0 0.0
    %2180 = vmatpush.msra.mxu0 0.0
    %2181 = vmatpush.msra.mxu0 0.0
    %2182 = vmatpush.msra.mxu0 0.0
    %2183 = vmatpush.msra.mxu0 %v1777
    %2184 = vmatpush.msra.mxu0 %v1761
    %2185 = vmatpush.msra.mxu0 %v1745
    %2186 = vmatpush.msra.mxu0 %v1729
    %2187 = vmatmul.f32.gmra.mxu0 %v1812
    %v2188 = vpop.f32.mrf.mxu0
    %v2189 = vadd.f32 %v1794, %v2188
    %2190 = vmatmul.f32.gmra.mxu0 %v1815
    %v2191 = vpop.f32.mrf.mxu0
    %v2192 = vadd.f32 %v1799, %v2191
    %2193 = vmatmul.f32.gmra.mxu0 %v1818
    %v2194 = vpop.f32.mrf.mxu0
    %v2195 = vadd.f32 %v1804, %v2194
    %2196 = vmatmul.f32.gmra.mxu0 %v1821
    %v2197 = vpop.f32.mrf.mxu0
    %v2198 = vadd.f32 %v1809, %v2197
    %2199 = vdwg.mxu0
    %2200 = vmatpush.msra.mxu0 0.0
    %2201 = vmatpush.msra.mxu0 0.0
    %2202 = vmatpush.msra.mxu0 0.0
    %2203 = vmatpush.msra.mxu0 0.0
    %2204 = vmatpush.msra.mxu0 0.0
    %2205 = vmatpush.msra.mxu0 0.0
    %2206 = vmatpush.msra.mxu0 0.0
    %2207 = vmatpush.msra.mxu0 0.0
    %2208 = vmatpush.msra.mxu0 0.0
    %2209 = vmatpush.msra.mxu0 0.0
    %2210 = vmatpush.msra.mxu0 0.0
    %2211 = vmatpush.msra.mxu0 0.0
    %2212 = vmatpush.msra.mxu0 %v1778
    %2213 = vmatpush.msra.mxu0 %v1762
    %2214 = vmatpush.msra.mxu0 %v1746
    %2215 = vmatpush.msra.mxu0 %v1730
    %2216 = vmatmul.f32.gmra.mxu0 %v1812
    %v2217 = vpop.f32.mrf.mxu0
    %v2218 = vadd.f32 %v1794, %v2217
    %2219 = vmatmul.f32.gmra.mxu0 %v1815
    %v2220 = vpop.f32.mrf.mxu0
    %v2221 = vadd.f32 %v1799, %v2220
    %2222 = vmatmul.f32.gmra.mxu0 %v1818
    %v2223 = vpop.f32.mrf.mxu0
    %v2224 = vadd.f32 %v1804, %v2223
    %2225 = vmatmul.f32.gmra.mxu0 %v1821
    %v2226 = vpop.f32.mrf.mxu0
    %v2227 = vadd.f32 %v1809, %v2226
    %2228 = vdwg.mxu0
    %2229 = vmatpush.msra.mxu0 0.0
    %2230 = vmatpush.msra.mxu0 0.0
    %2231 = vmatpush.msra.mxu0 0.0
    %2232 = vmatpush.msra.mxu0 0.0
    %2233 = vmatpush.msra.mxu0 0.0
    %2234 = vmatpush.msra.mxu0 0.0
    %2235 = vmatpush.msra.mxu0 0.0
    %2236 = vmatpush.msra.mxu0 0.0
    %2237 = vmatpush.msra.mxu0 0.0
    %2238 = vmatpush.msra.mxu0 0.0
    %2239 = vmatpush.msra.mxu0 0.0
    %2240 = vmatpush.msra.mxu0 0.0
    %2241 = vmatpush.msra.mxu0 %v1779
    %2242 = vmatpush.msra.mxu0 %v1763
    %2243 = vmatpush.msra.mxu0 %v1747
    %2244 = vmatpush.msra.mxu0 %v1731
    %2245 = vmatmul.f32.gmra.mxu0 %v1812
    %v2246 = vpop.f32.mrf.mxu0
    %v2247 = vadd.f32 %v1794, %v2246
    %2248 = vmatmul.f32.gmra.mxu0 %v1815
    %v2249 = vpop.f32.mrf.mxu0
    %v2250 = vadd.f32 %v1799, %v2249
    %2251 = vmatmul.f32.gmra.mxu0 %v1818
    %v2252 = vpop.f32.mrf.mxu0
    %v2253 = vadd.f32 %v1804, %v2252
    %2254 = vmatmul.f32.gmra.mxu0 %v1821
    %v2255 = vpop.f32.mrf.mxu0
    %v2256 = vadd.f32 %v1809, %v2255
    %2257 = vdwg.mxu0
    %2258 = vmatpush.msra.mxu0 0.0
    %2259 = vmatpush.msra.mxu0 0.0
    %2260 = vmatpush.msra.mxu0 0.0
    %2261 = vmatpush.msra.mxu0 0.0
    %2262 = vmatpush.msra.mxu0 0.0
    %2263 = vmatpush.msra.mxu0 0.0
    %2264 = vmatpush.msra.mxu0 0.0
    %2265 = vmatpush.msra.mxu0 0.0
    %2266 = vmatpush.msra.mxu0 0.0
    %2267 = vmatpush.msra.mxu0 0.0
    %2268 = vmatpush.msra.mxu0 0.0
    %2269 = vmatpush.msra.mxu0 0.0
    %2270 = vmatpush.msra.mxu0 %v1780
    %2271 = vmatpush.msra.mxu0 %v1764
    %2272 = vmatpush.msra.mxu0 %v1748
    %2273 = vmatpush.msra.mxu0 %v1732
    %2274 = vmatmul.f32.gmra.mxu0 %v1812
    %v2275 = vpop.f32.mrf.mxu0
    %v2276 = vadd.f32 %v1794, %v2275
    %2277 = vmatmul.f32.gmra.mxu0 %v1815
    %v2278 = vpop.f32.mrf.mxu0
    %v2279 = vadd.f32 %v1799, %v2278
    %2280 = vmatmul.f32.gmra.mxu0 %v1818
    %v2281 = vpop.f32.mrf.mxu0
    %v2282 = vadd.f32 %v1804, %v2281
    %2283 = vmatmul.f32.gmra.mxu0 %v1821
    %v2284 = vpop.f32.mrf.mxu0
    %v2285 = vadd.f32 %v1809, %v2284
    %2286 = vdwg.mxu0
    %v2287 = vmax.f32 %v1841, 0.0
    %v2288 = vmax.f32 %v1870, 0.0
    %v2289 = vmax.f32 %v1899, 0.0
    %v2290 = vmax.f32 %v1928, 0.0
    %v2291 = vmax.f32 %v1957, 0.0
    %v2292 = vmax.f32 %v1986, 0.0
    %v2293 = vmax.f32 %v2015, 0.0
    %v2294 = vmax.f32 %v2044, 0.0
    %v2295 = vmax.f32 %v2073, 0.0
    %v2296 = vmax.f32 %v2102, 0.0
    %v2297 = vmax.f32 %v2131, 0.0
    %v2298 = vmax.f32 %v2160, 0.0
    %v2299 = vmax.f32 %v2189, 0.0
    %v2300 = vmax.f32 %v2218, 0.0
    %v2301 = vmax.f32 %v2247, 0.0
    %v2302 = vmax.f32 %v2276, 0.0
    %v2303 = vmax.f32 %v1844, 0.0
    %v2304 = vmax.f32 %v1873, 0.0
    %v2305 = vmax.f32 %v1902, 0.0
    %v2306 = vmax.f32 %v1931, 0.0
    %v2307 = vmax.f32 %v1960, 0.0
    %v2308 = vmax.f32 %v1989, 0.0
    %v2309 = vmax.f32 %v2018, 0.0
    %v2310 = vmax.f32 %v2047, 0.0
    %v2311 = vmax.f32 %v2076, 0.0
    %v2312 = vmax.f32 %v2105, 0.0
    %v2313 = vmax.f32 %v2134, 0.0
    %v2314 = vmax.f32 %v2163, 0.0
    %v2315 = vmax.f32 %v2192, 0.0
    %v2316 = vmax.f32 %v2221, 0.0
    %v2317 = vmax.f32 %v2250, 0.0
    %v2318 = vmax.f32 %v2279, 0.0
    %v2319 = vmax.f32 %v1847, 0.0
    %v2320 = vmax.f32 %v1876, 0.0
    %v2321 = vmax.f32 %v1905, 0.0
    %v2322 = vmax.f32 %v1934, 0.0
    %v2323 = vmax.f32 %v1963, 0.0
    %v2324 = vmax.f32 %v1992, 0.0
    %v2325 = vmax.f32 %v2021, 0.0
    %v2326 = vmax.f32 %v2050, 0.0
    %v2327 = vmax.f32 %v2079, 0.0
    %v2328 = vmax.f32 %v2108, 0.0
    %v2329 = vmax.f32 %v2137, 0.0
    %v2330 = vmax.f32 %v2166, 0.0
    %v2331 = vmax.f32 %v2195, 0.0
    %v2332 = vmax.f32 %v2224, 0.0
    %v2333 = vmax.f32 %v2253, 0.0
    %v2334 = vmax.f32 %v2282, 0.0
    %v2335 = vmax.f32 %v1850, 0.0
    %v2336 = vmax.f32 %v1879, 0.0
    %v2337 = vmax.f32 %v1908, 0.0
    %v2338 = vmax.f32 %v1937, 0.0
    %v2339 = vmax.f32 %v1966, 0.0
    %v2340 = vmax.f32 %v1995, 0.0
    %v2341 = vmax.f32 %v2024, 0.0
    %v2342 = vmax.f32 %v2053, 0.0
    %v2343 = vmax.f32 %v2082, 0.0
    %v2344 = vmax.f32 %v2111, 0.0
    %v2345 = vmax.f32 %v2140, 0.0
    %v2346 = vmax.f32 %v2169, 0.0
    %v2347 = vmax.f32 %v2198, 0.0
    %v2348 = vmax.f32 %v2227, 0.0
    %v2349 = vmax.f32 %v2256, 0.0
    %v2350 = vmax.f32 %v2285, 0.0
    %s2351 = scalar_lea.vmem %s2, 128
    %v2352 = vld [vmem:[%s2351] sm:$0xff]
    %v2353 = vld [vmem:[%s2351 + $0x8] sm:$0xff]
    %v2354 = vld [vmem:[%s2351 + $0x10] sm:$0xff]
    %v2355 = vld [vmem:[%s2351 + $0x18] sm:$0xff]
    %s2356 = scalar_lea.vmem %s1, 128
    %v2357 = vld [vmem:[%s2356] sm:$0xff]
    %v2358 = vld [vmem:[%s2356 + $0x8] sm:$0xff]
    %v2359 = vld [vmem:[%s2356 + $0x10] sm:$0xff]
    %v2360 = vld [vmem:[%s2356 + $0x18] sm:$0xff]
    %2362 = vset.pattern.permute.xlu0 0
    %2363 = vperm.xlu0 %2362, %v2352
    %v2364 = vpop.permute.xlu0 %2363
    %2367 = vset.pattern.permute.xlu0 0
    %2368 = vperm.xlu0 %2367, %v2353
    %v2369 = vpop.permute.xlu0 %2368
    %2372 = vset.pattern.permute.xlu0 0
    %2373 = vperm.xlu0 %2372, %v2354
    %v2374 = vpop.permute.xlu0 %2373
    %2377 = vset.pattern.permute.xlu0 0
    %2378 = vperm.xlu0 %2377, %v2355
    %v2379 = vpop.permute.xlu0 %2378
    %v2382 = vsel %vm670, %v2357, 0
    %v2385 = vsel %vm670, %v2358, 0
    %v2388 = vsel %vm670, %v2359, 0
    %v2391 = vsel %vm670, %v2360, 0
    %2393 = vmatpush.msra.mxu0 0.0
    %2394 = vmatpush.msra.mxu0 0.0
    %2395 = vmatpush.msra.mxu0 0.0
    %2396 = vmatpush.msra.mxu0 0.0
    %2397 = vmatpush.msra.mxu0 0.0
    %2398 = vmatpush.msra.mxu0 0.0
    %2399 = vmatpush.msra.mxu0 0.0
    %2400 = vmatpush.msra.mxu0 0.0
    %2401 = vmatpush.msra.mxu0 0.0
    %2402 = vmatpush.msra.mxu0 0.0
    %2403 = vmatpush.msra.mxu0 0.0
    %2404 = vmatpush.msra.mxu0 0.0
    %2405 = vmatpush.msra.mxu0 %v2335
    %2406 = vmatpush.msra.mxu0 %v2319
    %2407 = vmatpush.msra.mxu0 %v2303
    %2408 = vmatpush.msra.mxu0 %v2287
    %2409 = vmatmul.f32.gmra.mxu0 %v2382
    %v2410 = vpop.f32.mrf.mxu0
    %v2411 = vadd.f32 %v2364, %v2410
    %2412 = vmatmul.f32.gmra.mxu0 %v2385
    %v2413 = vpop.f32.mrf.mxu0
    %v2414 = vadd.f32 %v2369, %v2413
    %2415 = vmatmul.f32.gmra.mxu0 %v2388
    %v2416 = vpop.f32.mrf.mxu0
    %v2417 = vadd.f32 %v2374, %v2416
    %2418 = vmatmul.f32.gmra.mxu0 %v2391
    %v2419 = vpop.f32.mrf.mxu0
    %v2420 = vadd.f32 %v2379, %v2419
    %2421 = vdwg.mxu0
    %2422 = vmatpush.msra.mxu0 0.0
    %2423 = vmatpush.msra.mxu0 0.0
    %2424 = vmatpush.msra.mxu0 0.0
    %2425 = vmatpush.msra.mxu0 0.0
    %2426 = vmatpush.msra.mxu0 0.0
    %2427 = vmatpush.msra.mxu0 0.0
    %2428 = vmatpush.msra.mxu0 0.0
    %2429 = vmatpush.msra.mxu0 0.0
    %2430 = vmatpush.msra.mxu0 0.0
    %2431 = vmatpush.msra.mxu0 0.0
    %2432 = vmatpush.msra.mxu0 0.0
    %2433 = vmatpush.msra.mxu0 0.0
    %2434 = vmatpush.msra.mxu0 %v2336
    %2435 = vmatpush.msra.mxu0 %v2320
    %2436 = vmatpush.msra.mxu0 %v2304
    %2437 = vmatpush.msra.mxu0 %v2288
    %2438 = vmatmul.f32.gmra.mxu0 %v2382
    %v2439 = vpop.f32.mrf.mxu0
    %v2440 = vadd.f32 %v2364, %v2439
    %2441 = vmatmul.f32.gmra.mxu0 %v2385
    %v2442 = vpop.f32.mrf.mxu0
    %v2443 = vadd.f32 %v2369, %v2442
    %2444 = vmatmul.f32.gmra.mxu0 %v2388
    %v2445 = vpop.f32.mrf.mxu0
    %v2446 = vadd.f32 %v2374, %v2445
    %2447 = vmatmul.f32.gmra.mxu0 %v2391
    %v2448 = vpop.f32.mrf.mxu0
    %v2449 = vadd.f32 %v2379, %v2448
    %2450 = vdwg.mxu0
    %2451 = vmatpush.msra.mxu0 0.0
    %2452 = vmatpush.msra.mxu0 0.0
    %2453 = vmatpush.msra.mxu0 0.0
    %2454 = vmatpush.msra.mxu0 0.0
    %2455 = vmatpush.msra.mxu0 0.0
    %2456 = vmatpush.msra.mxu0 0.0
    %2457 = vmatpush.msra.mxu0 0.0
    %2458 = vmatpush.msra.mxu0 0.0
    %2459 = vmatpush.msra.mxu0 0.0
    %2460 = vmatpush.msra.mxu0 0.0
    %2461 = vmatpush.msra.mxu0 0.0
    %2462 = vmatpush.msra.mxu0 0.0
    %2463 = vmatpush.msra.mxu0 %v2337
    %2464 = vmatpush.msra.mxu0 %v2321
    %2465 = vmatpush.msra.mxu0 %v2305
    %2466 = vmatpush.msra.mxu0 %v2289
    %2467 = vmatmul.f32.gmra.mxu0 %v2382
    %v2468 = vpop.f32.mrf.mxu0
    %v2469 = vadd.f32 %v2364, %v2468
    %2470 = vmatmul.f32.gmra.mxu0 %v2385
    %v2471 = vpop.f32.mrf.mxu0
    %v2472 = vadd.f32 %v2369, %v2471
    %2473 = vmatmul.f32.gmra.mxu0 %v2388
    %v2474 = vpop.f32.mrf.mxu0
    %v2475 = vadd.f32 %v2374, %v2474
    %2476 = vmatmul.f32.gmra.mxu0 %v2391
    %v2477 = vpop.f32.mrf.mxu0
    %v2478 = vadd.f32 %v2379, %v2477
    %2479 = vdwg.mxu0
    %2480 = vmatpush.msra.mxu0 0.0
    %2481 = vmatpush.msra.mxu0 0.0
    %2482 = vmatpush.msra.mxu0 0.0
    %2483 = vmatpush.msra.mxu0 0.0
    %2484 = vmatpush.msra.mxu0 0.0
    %2485 = vmatpush.msra.mxu0 0.0
    %2486 = vmatpush.msra.mxu0 0.0
    %2487 = vmatpush.msra.mxu0 0.0
    %2488 = vmatpush.msra.mxu0 0.0
    %2489 = vmatpush.msra.mxu0 0.0
    %2490 = vmatpush.msra.mxu0 0.0
    %2491 = vmatpush.msra.mxu0 0.0
    %2492 = vmatpush.msra.mxu0 %v2338
    %2493 = vmatpush.msra.mxu0 %v2322
    %2494 = vmatpush.msra.mxu0 %v2306
    %2495 = vmatpush.msra.mxu0 %v2290
    %2496 = vmatmul.f32.gmra.mxu0 %v2382
    %v2497 = vpop.f32.mrf.mxu0
    %v2498 = vadd.f32 %v2364, %v2497
    %2499 = vmatmul.f32.gmra.mxu0 %v2385
    %v2500 = vpop.f32.mrf.mxu0
    %v2501 = vadd.f32 %v2369, %v2500
    %2502 = vmatmul.f32.gmra.mxu0 %v2388
    %v2503 = vpop.f32.mrf.mxu0
    %v2504 = vadd.f32 %v2374, %v2503
    %2505 = vmatmul.f32.gmra.mxu0 %v2391
    %v2506 = vpop.f32.mrf.mxu0
    %v2507 = vadd.f32 %v2379, %v2506
    %2508 = vdwg.mxu0
    %2509 = vmatpush.msra.mxu0 0.0
    %2510 = vmatpush.msra.mxu0 0.0
    %2511 = vmatpush.msra.mxu0 0.0
    %2512 = vmatpush.msra.mxu0 0.0
    %2513 = vmatpush.msra.mxu0 0.0
    %2514 = vmatpush.msra.mxu0 0.0
    %2515 = vmatpush.msra.mxu0 0.0
    %2516 = vmatpush.msra.mxu0 0.0
    %2517 = vmatpush.msra.mxu0 0.0
    %2518 = vmatpush.msra.mxu0 0.0
    %2519 = vmatpush.msra.mxu0 0.0
    %2520 = vmatpush.msra.mxu0 0.0
    %2521 = vmatpush.msra.mxu0 %v2339
    %2522 = vmatpush.msra.mxu0 %v2323
    %2523 = vmatpush.msra.mxu0 %v2307
    %2524 = vmatpush.msra.mxu0 %v2291
    %2525 = vmatmul.f32.gmra.mxu0 %v2382
    %v2526 = vpop.f32.mrf.mxu0
    %v2527 = vadd.f32 %v2364, %v2526
    %2528 = vmatmul.f32.gmra.mxu0 %v2385
    %v2529 = vpop.f32.mrf.mxu0
    %v2530 = vadd.f32 %v2369, %v2529
    %2531 = vmatmul.f32.gmra.mxu0 %v2388
    %v2532 = vpop.f32.mrf.mxu0
    %v2533 = vadd.f32 %v2374, %v2532
    %2534 = vmatmul.f32.gmra.mxu0 %v2391
    %v2535 = vpop.f32.mrf.mxu0
    %v2536 = vadd.f32 %v2379, %v2535
    %2537 = vdwg.mxu0
    %2538 = vmatpush.msra.mxu0 0.0
    %2539 = vmatpush.msra.mxu0 0.0
    %2540 = vmatpush.msra.mxu0 0.0
    %2541 = vmatpush.msra.mxu0 0.0
    %2542 = vmatpush.msra.mxu0 0.0
    %2543 = vmatpush.msra.mxu0 0.0
    %2544 = vmatpush.msra.mxu0 0.0
    %2545 = vmatpush.msra.mxu0 0.0
    %2546 = vmatpush.msra.mxu0 0.0
    %2547 = vmatpush.msra.mxu0 0.0
    %2548 = vmatpush.msra.mxu0 0.0
    %2549 = vmatpush.msra.mxu0 0.0
    %2550 = vmatpush.msra.mxu0 %v2340
    %2551 = vmatpush.msra.mxu0 %v2324
    %2552 = vmatpush.msra.mxu0 %v2308
    %2553 = vmatpush.msra.mxu0 %v2292
    %2554 = vmatmul.f32.gmra.mxu0 %v2382
    %v2555 = vpop.f32.mrf.mxu0
    %v2556 = vadd.f32 %v2364, %v2555
    %2557 = vmatmul.f32.gmra.mxu0 %v2385
    %v2558 = vpop.f32.mrf.mxu0
    %v2559 = vadd.f32 %v2369, %v2558
    %2560 = vmatmul.f32.gmra.mxu0 %v2388
    %v2561 = vpop.f32.mrf.mxu0
    %v2562 = vadd.f32 %v2374, %v2561
    %2563 = vmatmul.f32.gmra.mxu0 %v2391
    %v2564 = vpop.f32.mrf.mxu0
    %v2565 = vadd.f32 %v2379, %v2564
    %2566 = vdwg.mxu0
    %2567 = vmatpush.msra.mxu0 0.0
    %2568 = vmatpush.msra.mxu0 0.0
    %2569 = vmatpush.msra.mxu0 0.0
    %2570 = vmatpush.msra.mxu0 0.0
    %2571 = vmatpush.msra.mxu0 0.0
    %2572 = vmatpush.msra.mxu0 0.0
    %2573 = vmatpush.msra.mxu0 0.0
    %2574 = vmatpush.msra.mxu0 0.0
    %2575 = vmatpush.msra.mxu0 0.0
    %2576 = vmatpush.msra.mxu0 0.0
    %2577 = vmatpush.msra.mxu0 0.0
    %2578 = vmatpush.msra.mxu0 0.0
    %2579 = vmatpush.msra.mxu0 %v2341
    %2580 = vmatpush.msra.mxu0 %v2325
    %2581 = vmatpush.msra.mxu0 %v2309
    %2582 = vmatpush.msra.mxu0 %v2293
    %2583 = vmatmul.f32.gmra.mxu0 %v2382
    %v2584 = vpop.f32.mrf.mxu0
    %v2585 = vadd.f32 %v2364, %v2584
    %2586 = vmatmul.f32.gmra.mxu0 %v2385
    %v2587 = vpop.f32.mrf.mxu0
    %v2588 = vadd.f32 %v2369, %v2587
    %2589 = vmatmul.f32.gmra.mxu0 %v2388
    %v2590 = vpop.f32.mrf.mxu0
    %v2591 = vadd.f32 %v2374, %v2590
    %2592 = vmatmul.f32.gmra.mxu0 %v2391
    %v2593 = vpop.f32.mrf.mxu0
    %v2594 = vadd.f32 %v2379, %v2593
    %2595 = vdwg.mxu0
    %2596 = vmatpush.msra.mxu0 0.0
    %2597 = vmatpush.msra.mxu0 0.0
    %2598 = vmatpush.msra.mxu0 0.0
    %2599 = vmatpush.msra.mxu0 0.0
    %2600 = vmatpush.msra.mxu0 0.0
    %2601 = vmatpush.msra.mxu0 0.0
    %2602 = vmatpush.msra.mxu0 0.0
    %2603 = vmatpush.msra.mxu0 0.0
    %2604 = vmatpush.msra.mxu0 0.0
    %2605 = vmatpush.msra.mxu0 0.0
    %2606 = vmatpush.msra.mxu0 0.0
    %2607 = vmatpush.msra.mxu0 0.0
    %2608 = vmatpush.msra.mxu0 %v2342
    %2609 = vmatpush.msra.mxu0 %v2326
    %2610 = vmatpush.msra.mxu0 %v2310
    %2611 = vmatpush.msra.mxu0 %v2294
    %2612 = vmatmul.f32.gmra.mxu0 %v2382
    %v2613 = vpop.f32.mrf.mxu0
    %v2614 = vadd.f32 %v2364, %v2613
    %2615 = vmatmul.f32.gmra.mxu0 %v2385
    %v2616 = vpop.f32.mrf.mxu0
    %v2617 = vadd.f32 %v2369, %v2616
    %2618 = vmatmul.f32.gmra.mxu0 %v2388
    %v2619 = vpop.f32.mrf.mxu0
    %v2620 = vadd.f32 %v2374, %v2619
    %2621 = vmatmul.f32.gmra.mxu0 %v2391
    %v2622 = vpop.f32.mrf.mxu0
    %v2623 = vadd.f32 %v2379, %v2622
    %2624 = vdwg.mxu0
    %2625 = vmatpush.msra.mxu0 0.0
    %2626 = vmatpush.msra.mxu0 0.0
    %2627 = vmatpush.msra.mxu0 0.0
    %2628 = vmatpush.msra.mxu0 0.0
    %2629 = vmatpush.msra.mxu0 0.0
    %2630 = vmatpush.msra.mxu0 0.0
    %2631 = vmatpush.msra.mxu0 0.0
    %2632 = vmatpush.msra.mxu0 0.0
    %2633 = vmatpush.msra.mxu0 0.0
    %2634 = vmatpush.msra.mxu0 0.0
    %2635 = vmatpush.msra.mxu0 0.0
    %2636 = vmatpush.msra.mxu0 0.0
    %2637 = vmatpush.msra.mxu0 %v2343
    %2638 = vmatpush.msra.mxu0 %v2327
    %2639 = vmatpush.msra.mxu0 %v2311
    %2640 = vmatpush.msra.mxu0 %v2295
    %2641 = vmatmul.f32.gmra.mxu0 %v2382
    %v2642 = vpop.f32.mrf.mxu0
    %v2643 = vadd.f32 %v2364, %v2642
    %2644 = vmatmul.f32.gmra.mxu0 %v2385
    %v2645 = vpop.f32.mrf.mxu0
    %v2646 = vadd.f32 %v2369, %v2645
    %2647 = vmatmul.f32.gmra.mxu0 %v2388
    %v2648 = vpop.f32.mrf.mxu0
    %v2649 = vadd.f32 %v2374, %v2648
    %2650 = vmatmul.f32.gmra.mxu0 %v2391
    %v2651 = vpop.f32.mrf.mxu0
    %v2652 = vadd.f32 %v2379, %v2651
    %2653 = vdwg.mxu0
    %2654 = vmatpush.msra.mxu0 0.0
    %2655 = vmatpush.msra.mxu0 0.0
    %2656 = vmatpush.msra.mxu0 0.0
    %2657 = vmatpush.msra.mxu0 0.0
    %2658 = vmatpush.msra.mxu0 0.0
    %2659 = vmatpush.msra.mxu0 0.0
    %2660 = vmatpush.msra.mxu0 0.0
    %2661 = vmatpush.msra.mxu0 0.0
    %2662 = vmatpush.msra.mxu0 0.0
    %2663 = vmatpush.msra.mxu0 0.0
    %2664 = vmatpush.msra.mxu0 0.0
    %2665 = vmatpush.msra.mxu0 0.0
    %2666 = vmatpush.msra.mxu0 %v2344
    %2667 = vmatpush.msra.mxu0 %v2328
    %2668 = vmatpush.msra.mxu0 %v2312
    %2669 = vmatpush.msra.mxu0 %v2296
    %2670 = vmatmul.f32.gmra.mxu0 %v2382
    %v2671 = vpop.f32.mrf.mxu0
    %v2672 = vadd.f32 %v2364, %v2671
    %2673 = vmatmul.f32.gmra.mxu0 %v2385
    %v2674 = vpop.f32.mrf.mxu0
    %v2675 = vadd.f32 %v2369, %v2674
    %2676 = vmatmul.f32.gmra.mxu0 %v2388
    %v2677 = vpop.f32.mrf.mxu0
    %v2678 = vadd.f32 %v2374, %v2677
    %2679 = vmatmul.f32.gmra.mxu0 %v2391
    %v2680 = vpop.f32.mrf.mxu0
    %v2681 = vadd.f32 %v2379, %v2680
    %2682 = vdwg.mxu0
    %2683 = vmatpush.msra.mxu0 0.0
    %2684 = vmatpush.msra.mxu0 0.0
    %2685 = vmatpush.msra.mxu0 0.0
    %2686 = vmatpush.msra.mxu0 0.0
    %2687 = vmatpush.msra.mxu0 0.0
    %2688 = vmatpush.msra.mxu0 0.0
    %2689 = vmatpush.msra.mxu0 0.0
    %2690 = vmatpush.msra.mxu0 0.0
    %2691 = vmatpush.msra.mxu0 0.0
    %2692 = vmatpush.msra.mxu0 0.0
    %2693 = vmatpush.msra.mxu0 0.0
    %2694 = vmatpush.msra.mxu0 0.0
    %2695 = vmatpush.msra.mxu0 %v2345
    %2696 = vmatpush.msra.mxu0 %v2329
    %2697 = vmatpush.msra.mxu0 %v2313
    %2698 = vmatpush.msra.mxu0 %v2297
    %2699 = vmatmul.f32.gmra.mxu0 %v2382
    %v2700 = vpop.f32.mrf.mxu0
    %v2701 = vadd.f32 %v2364, %v2700
    %2702 = vmatmul.f32.gmra.mxu0 %v2385
    %v2703 = vpop.f32.mrf.mxu0
    %v2704 = vadd.f32 %v2369, %v2703
    %2705 = vmatmul.f32.gmra.mxu0 %v2388
    %v2706 = vpop.f32.mrf.mxu0
    %v2707 = vadd.f32 %v2374, %v2706
    %2708 = vmatmul.f32.gmra.mxu0 %v2391
    %v2709 = vpop.f32.mrf.mxu0
    %v2710 = vadd.f32 %v2379, %v2709
    %2711 = vdwg.mxu0
    %2712 = vmatpush.msra.mxu0 0.0
    %2713 = vmatpush.msra.mxu0 0.0
    %2714 = vmatpush.msra.mxu0 0.0
    %2715 = vmatpush.msra.mxu0 0.0
    %2716 = vmatpush.msra.mxu0 0.0
    %2717 = vmatpush.msra.mxu0 0.0
    %2718 = vmatpush.msra.mxu0 0.0
    %2719 = vmatpush.msra.mxu0 0.0
    %2720 = vmatpush.msra.mxu0 0.0
    %2721 = vmatpush.msra.mxu0 0.0
    %2722 = vmatpush.msra.mxu0 0.0
    %2723 = vmatpush.msra.mxu0 0.0
    %2724 = vmatpush.msra.mxu0 %v2346
    %2725 = vmatpush.msra.mxu0 %v2330
    %2726 = vmatpush.msra.mxu0 %v2314
    %2727 = vmatpush.msra.mxu0 %v2298
    %2728 = vmatmul.f32.gmra.mxu0 %v2382
    %v2729 = vpop.f32.mrf.mxu0
    %v2730 = vadd.f32 %v2364, %v2729
    %2731 = vmatmul.f32.gmra.mxu0 %v2385
    %v2732 = vpop.f32.mrf.mxu0
    %v2733 = vadd.f32 %v2369, %v2732
    %2734 = vmatmul.f32.gmra.mxu0 %v2388
    %v2735 = vpop.f32.mrf.mxu0
    %v2736 = vadd.f32 %v2374, %v2735
    %2737 = vmatmul.f32.gmra.mxu0 %v2391
    %v2738 = vpop.f32.mrf.mxu0
    %v2739 = vadd.f32 %v2379, %v2738
    %2740 = vdwg.mxu0
    %2741 = vmatpush.msra.mxu0 0.0
    %2742 = vmatpush.msra.mxu0 0.0
    %2743 = vmatpush.msra.mxu0 0.0
    %2744 = vmatpush.msra.mxu0 0.0
    %2745 = vmatpush.msra.mxu0 0.0
    %2746 = vmatpush.msra.mxu0 0.0
    %2747 = vmatpush.msra.mxu0 0.0
    %2748 = vmatpush.msra.mxu0 0.0
    %2749 = vmatpush.msra.mxu0 0.0
    %2750 = vmatpush.msra.mxu0 0.0
    %2751 = vmatpush.msra.mxu0 0.0
    %2752 = vmatpush.msra.mxu0 0.0
    %2753 = vmatpush.msra.mxu0 %v2347
    %2754 = vmatpush.msra.mxu0 %v2331
    %2755 = vmatpush.msra.mxu0 %v2315
    %2756 = vmatpush.msra.mxu0 %v2299
    %2757 = vmatmul.f32.gmra.mxu0 %v2382
    %v2758 = vpop.f32.mrf.mxu0
    %v2759 = vadd.f32 %v2364, %v2758
    %2760 = vmatmul.f32.gmra.mxu0 %v2385
    %v2761 = vpop.f32.mrf.mxu0
    %v2762 = vadd.f32 %v2369, %v2761
    %2763 = vmatmul.f32.gmra.mxu0 %v2388
    %v2764 = vpop.f32.mrf.mxu0
    %v2765 = vadd.f32 %v2374, %v2764
    %2766 = vmatmul.f32.gmra.mxu0 %v2391
    %v2767 = vpop.f32.mrf.mxu0
    %v2768 = vadd.f32 %v2379, %v2767
    %2769 = vdwg.mxu0
    %2770 = vmatpush.msra.mxu0 0.0
    %2771 = vmatpush.msra.mxu0 0.0
    %2772 = vmatpush.msra.mxu0 0.0
    %2773 = vmatpush.msra.mxu0 0.0
    %2774 = vmatpush.msra.mxu0 0.0
    %2775 = vmatpush.msra.mxu0 0.0
    %2776 = vmatpush.msra.mxu0 0.0
    %2777 = vmatpush.msra.mxu0 0.0
    %2778 = vmatpush.msra.mxu0 0.0
    %2779 = vmatpush.msra.mxu0 0.0
    %2780 = vmatpush.msra.mxu0 0.0
    %2781 = vmatpush.msra.mxu0 0.0
    %2782 = vmatpush.msra.mxu0 %v2348
    %2783 = vmatpush.msra.mxu0 %v2332
    %2784 = vmatpush.msra.mxu0 %v2316
    %2785 = vmatpush.msra.mxu0 %v2300
    %2786 = vmatmul.f32.gmra.mxu0 %v2382
    %v2787 = vpop.f32.mrf.mxu0
    %v2788 = vadd.f32 %v2364, %v2787
    %2789 = vmatmul.f32.gmra.mxu0 %v2385
    %v2790 = vpop.f32.mrf.mxu0
    %v2791 = vadd.f32 %v2369, %v2790
    %2792 = vmatmul.f32.gmra.mxu0 %v2388
    %v2793 = vpop.f32.mrf.mxu0
    %v2794 = vadd.f32 %v2374, %v2793
    %2795 = vmatmul.f32.gmra.mxu0 %v2391
    %v2796 = vpop.f32.mrf.mxu0
    %v2797 = vadd.f32 %v2379, %v2796
    %2798 = vdwg.mxu0
    %2799 = vmatpush.msra.mxu0 0.0
    %2800 = vmatpush.msra.mxu0 0.0
    %2801 = vmatpush.msra.mxu0 0.0
    %2802 = vmatpush.msra.mxu0 0.0
    %2803 = vmatpush.msra.mxu0 0.0
    %2804 = vmatpush.msra.mxu0 0.0
    %2805 = vmatpush.msra.mxu0 0.0
    %2806 = vmatpush.msra.mxu0 0.0
    %2807 = vmatpush.msra.mxu0 0.0
    %2808 = vmatpush.msra.mxu0 0.0
    %2809 = vmatpush.msra.mxu0 0.0
    %2810 = vmatpush.msra.mxu0 0.0
    %2811 = vmatpush.msra.mxu0 %v2349
    %2812 = vmatpush.msra.mxu0 %v2333
    %2813 = vmatpush.msra.mxu0 %v2317
    %2814 = vmatpush.msra.mxu0 %v2301
    %2815 = vmatmul.f32.gmra.mxu0 %v2382
    %v2816 = vpop.f32.mrf.mxu0
    %v2817 = vadd.f32 %v2364, %v2816
    %2818 = vmatmul.f32.gmra.mxu0 %v2385
    %v2819 = vpop.f32.mrf.mxu0
    %v2820 = vadd.f32 %v2369, %v2819
    %2821 = vmatmul.f32.gmra.mxu0 %v2388
    %v2822 = vpop.f32.mrf.mxu0
    %v2823 = vadd.f32 %v2374, %v2822
    %2824 = vmatmul.f32.gmra.mxu0 %v2391
    %v2825 = vpop.f32.mrf.mxu0
    %v2826 = vadd.f32 %v2379, %v2825
    %2827 = vdwg.mxu0
    %2828 = vmatpush.msra.mxu0 0.0
    %2829 = vmatpush.msra.mxu0 0.0
    %2830 = vmatpush.msra.mxu0 0.0
    %2831 = vmatpush.msra.mxu0 0.0
    %2832 = vmatpush.msra.mxu0 0.0
    %2833 = vmatpush.msra.mxu0 0.0
    %2834 = vmatpush.msra.mxu0 0.0
    %2835 = vmatpush.msra.mxu0 0.0
    %2836 = vmatpush.msra.mxu0 0.0
    %2837 = vmatpush.msra.mxu0 0.0
    %2838 = vmatpush.msra.mxu0 0.0
    %2839 = vmatpush.msra.mxu0 0.0
    %2840 = vmatpush.msra.mxu0 %v2350
    %2841 = vmatpush.msra.mxu0 %v2334
    %2842 = vmatpush.msra.mxu0 %v2318
    %2843 = vmatpush.msra.mxu0 %v2302
    %2844 = vmatmul.f32.gmra.mxu0 %v2382
    %v2845 = vpop.f32.mrf.mxu0
    %v2846 = vadd.f32 %v2364, %v2845
    %2847 = vmatmul.f32.gmra.mxu0 %v2385
    %v2848 = vpop.f32.mrf.mxu0
    %v2849 = vadd.f32 %v2369, %v2848
    %2850 = vmatmul.f32.gmra.mxu0 %v2388
    %v2851 = vpop.f32.mrf.mxu0
    %v2852 = vadd.f32 %v2374, %v2851
    %2853 = vmatmul.f32.gmra.mxu0 %v2391
    %v2854 = vpop.f32.mrf.mxu0
    %v2855 = vadd.f32 %v2379, %v2854
    %2856 = vdwg.mxu0
    %v2857 = vmax.f32 %v2411, 0.0
    %v2858 = vmax.f32 %v2440, 0.0
    %v2859 = vmax.f32 %v2469, 0.0
    %v2860 = vmax.f32 %v2498, 0.0
    %v2861 = vmax.f32 %v2527, 0.0
    %v2862 = vmax.f32 %v2556, 0.0
    %v2863 = vmax.f32 %v2585, 0.0
    %v2864 = vmax.f32 %v2614, 0.0
    %v2865 = vmax.f32 %v2643, 0.0
    %v2866 = vmax.f32 %v2672, 0.0
    %v2867 = vmax.f32 %v2701, 0.0
    %v2868 = vmax.f32 %v2730, 0.0
    %v2869 = vmax.f32 %v2759, 0.0
    %v2870 = vmax.f32 %v2788, 0.0
    %v2871 = vmax.f32 %v2817, 0.0
    %v2872 = vmax.f32 %v2846, 0.0
    %v2873 = vmax.f32 %v2414, 0.0
    %v2874 = vmax.f32 %v2443, 0.0
    %v2875 = vmax.f32 %v2472, 0.0
    %v2876 = vmax.f32 %v2501, 0.0
    %v2877 = vmax.f32 %v2530, 0.0
    %v2878 = vmax.f32 %v2559, 0.0
    %v2879 = vmax.f32 %v2588, 0.0
    %v2880 = vmax.f32 %v2617, 0.0
    %v2881 = vmax.f32 %v2646, 0.0
    %v2882 = vmax.f32 %v2675, 0.0
    %v2883 = vmax.f32 %v2704, 0.0
    %v2884 = vmax.f32 %v2733, 0.0
    %v2885 = vmax.f32 %v2762, 0.0
    %v2886 = vmax.f32 %v2791, 0.0
    %v2887 = vmax.f32 %v2820, 0.0
    %v2888 = vmax.f32 %v2849, 0.0
    %v2889 = vmax.f32 %v2417, 0.0
    %v2890 = vmax.f32 %v2446, 0.0
    %v2891 = vmax.f32 %v2475, 0.0
    %v2892 = vmax.f32 %v2504, 0.0
    %v2893 = vmax.f32 %v2533, 0.0
    %v2894 = vmax.f32 %v2562, 0.0
    %v2895 = vmax.f32 %v2591, 0.0
    %v2896 = vmax.f32 %v2620, 0.0
    %v2897 = vmax.f32 %v2649, 0.0
    %v2898 = vmax.f32 %v2678, 0.0
    %v2899 = vmax.f32 %v2707, 0.0
    %v2900 = vmax.f32 %v2736, 0.0
    %v2901 = vmax.f32 %v2765, 0.0
    %v2902 = vmax.f32 %v2794, 0.0
    %v2903 = vmax.f32 %v2823, 0.0
    %v2904 = vmax.f32 %v2852, 0.0
    %v2905 = vmax.f32 %v2420, 0.0
    %v2906 = vmax.f32 %v2449, 0.0
    %v2907 = vmax.f32 %v2478, 0.0
    %v2908 = vmax.f32 %v2507, 0.0
    %v2909 = vmax.f32 %v2536, 0.0
    %v2910 = vmax.f32 %v2565, 0.0
    %v2911 = vmax.f32 %v2594, 0.0
    %v2912 = vmax.f32 %v2623, 0.0
    %v2913 = vmax.f32 %v2652, 0.0
    %v2914 = vmax.f32 %v2681, 0.0
    %v2915 = vmax.f32 %v2710, 0.0
    %v2916 = vmax.f32 %v2739, 0.0
    %v2917 = vmax.f32 %v2768, 0.0
    %v2918 = vmax.f32 %v2797, 0.0
    %v2919 = vmax.f32 %v2826, 0.0
    %v2920 = vmax.f32 %v2855, 0.0
    %s2921 = scalar_lea.vmem %s2, 160
    %v2922 = vld [vmem:[%s2921] sm:$0xff]
    %v2923 = vld [vmem:[%s2921 + $0x8] sm:$0xff]
    %v2924 = vld [vmem:[%s2921 + $0x10] sm:$0xff]
    %v2925 = vld [vmem:[%s2921 + $0x18] sm:$0xff]
    %s2926 = scalar_lea.vmem %s1, 160
    %v2927 = vld [vmem:[%s2926] sm:$0xff]
    %v2928 = vld [vmem:[%s2926 + $0x8] sm:$0xff]
    %v2929 = vld [vmem:[%s2926 + $0x10] sm:$0xff]
    %v2930 = vld [vmem:[%s2926 + $0x18] sm:$0xff]
    %2932 = vset.pattern.permute.xlu0 0
    %2933 = vperm.xlu0 %2932, %v2922
    %v2934 = vpop.permute.xlu0 %2933
    %2937 = vset.pattern.permute.xlu0 0
    %2938 = vperm.xlu0 %2937, %v2923
    %v2939 = vpop.permute.xlu0 %2938
    %2942 = vset.pattern.permute.xlu0 0
    %2943 = vperm.xlu0 %2942, %v2924
    %v2944 = vpop.permute.xlu0 %2943
    %2947 = vset.pattern.permute.xlu0 0
    %2948 = vperm.xlu0 %2947, %v2925
    %v2949 = vpop.permute.xlu0 %2948
    %vm2951 = vcmask 392192
    %v2953 = vsel %vm2951, %v2927, 0
    %v2956 = vsel %vm2951, %v2928, 0
    %v2959 = vsel %vm2951, %v2929, 0
    %v2962 = vsel %vm2951, %v2930, 0
    %2964 = vmatpush.msra.mxu0 0.0
    %2965 = vmatpush.msra.mxu0 0.0
    %2966 = vmatpush.msra.mxu0 0.0
    %2967 = vmatpush.msra.mxu0 0.0
    %2968 = vmatpush.msra.mxu0 0.0
    %2969 = vmatpush.msra.mxu0 0.0
    %2970 = vmatpush.msra.mxu0 0.0
    %2971 = vmatpush.msra.mxu0 0.0
    %2972 = vmatpush.msra.mxu0 0.0
    %2973 = vmatpush.msra.mxu0 0.0
    %2974 = vmatpush.msra.mxu0 %v50
    %2975 = vmatpush.msra.mxu0 %v34
    %2976 = vmatpush.msra.mxu0 %v2905
    %2977 = vmatpush.msra.mxu0 %v2889
    %2978 = vmatpush.msra.mxu0 %v2873
    %2979 = vmatpush.msra.mxu0 %v2857
    %2980 = vmatmul.f32.gmra.mxu0 %v2953
    %v2981 = vpop.f32.mrf.mxu0
    %v2982 = vadd.f32 %v2934, %v2981
    %2983 = vmatmul.f32.gmra.mxu0 %v2956
    %v2984 = vpop.f32.mrf.mxu0
    %v2985 = vadd.f32 %v2939, %v2984
    %2986 = vmatmul.f32.gmra.mxu0 %v2959
    %v2987 = vpop.f32.mrf.mxu0
    %v2988 = vadd.f32 %v2944, %v2987
    %2989 = vmatmul.f32.gmra.mxu0 %v2962
    %v2990 = vpop.f32.mrf.mxu0
    %v2991 = vadd.f32 %v2949, %v2990
    %2992 = vdwg.mxu0
    %2993 = vmatpush.msra.mxu0 0.0
    %2994 = vmatpush.msra.mxu0 0.0
    %2995 = vmatpush.msra.mxu0 0.0
    %2996 = vmatpush.msra.mxu0 0.0
    %2997 = vmatpush.msra.mxu0 0.0
    %2998 = vmatpush.msra.mxu0 0.0
    %2999 = vmatpush.msra.mxu0 0.0
    %3000 = vmatpush.msra.mxu0 0.0
    %3001 = vmatpush.msra.mxu0 0.0
    %3002 = vmatpush.msra.mxu0 0.0
    %3003 = vmatpush.msra.mxu0 %v51
    %3004 = vmatpush.msra.mxu0 %v35
    %3005 = vmatpush.msra.mxu0 %v2906
    %3006 = vmatpush.msra.mxu0 %v2890
    %3007 = vmatpush.msra.mxu0 %v2874
    %3008 = vmatpush.msra.mxu0 %v2858
    %3009 = vmatmul.f32.gmra.mxu0 %v2953
    %v3010 = vpop.f32.mrf.mxu0
    %v3011 = vadd.f32 %v2934, %v3010
    %3012 = vmatmul.f32.gmra.mxu0 %v2956
    %v3013 = vpop.f32.mrf.mxu0
    %v3014 = vadd.f32 %v2939, %v3013
    %3015 = vmatmul.f32.gmra.mxu0 %v2959
    %v3016 = vpop.f32.mrf.mxu0
    %v3017 = vadd.f32 %v2944, %v3016
    %3018 = vmatmul.f32.gmra.mxu0 %v2962
    %v3019 = vpop.f32.mrf.mxu0
    %v3020 = vadd.f32 %v2949, %v3019
    %3021 = vdwg.mxu0
    %3022 = vmatpush.msra.mxu0 0.0
    %3023 = vmatpush.msra.mxu0 0.0
    %3024 = vmatpush.msra.mxu0 0.0
    %3025 = vmatpush.msra.mxu0 0.0
    %3026 = vmatpush.msra.mxu0 0.0
    %3027 = vmatpush.msra.mxu0 0.0
    %3028 = vmatpush.msra.mxu0 0.0
    %3029 = vmatpush.msra.mxu0 0.0
    %3030 = vmatpush.msra.mxu0 0.0
    %3031 = vmatpush.msra.mxu0 0.0
    %3032 = vmatpush.msra.mxu0 %v52
    %3033 = vmatpush.msra.mxu0 %v36
    %3034 = vmatpush.msra.mxu0 %v2907
    %3035 = vmatpush.msra.mxu0 %v2891
    %3036 = vmatpush.msra.mxu0 %v2875
    %3037 = vmatpush.msra.mxu0 %v2859
    %3038 = vmatmul.f32.gmra.mxu0 %v2953
    %v3039 = vpop.f32.mrf.mxu0
    %v3040 = vadd.f32 %v2934, %v3039
    %3041 = vmatmul.f32.gmra.mxu0 %v2956
    %v3042 = vpop.f32.mrf.mxu0
    %v3043 = vadd.f32 %v2939, %v3042
    %3044 = vmatmul.f32.gmra.mxu0 %v2959
    %v3045 = vpop.f32.mrf.mxu0
    %v3046 = vadd.f32 %v2944, %v3045
    %3047 = vmatmul.f32.gmra.mxu0 %v2962
    %v3048 = vpop.f32.mrf.mxu0
    %v3049 = vadd.f32 %v2949, %v3048
    %3050 = vdwg.mxu0
    %3051 = vmatpush.msra.mxu0 0.0
    %3052 = vmatpush.msra.mxu0 0.0
    %3053 = vmatpush.msra.mxu0 0.0
    %3054 = vmatpush.msra.mxu0 0.0
    %3055 = vmatpush.msra.mxu0 0.0
    %3056 = vmatpush.msra.mxu0 0.0
    %3057 = vmatpush.msra.mxu0 0.0
    %3058 = vmatpush.msra.mxu0 0.0
    %3059 = vmatpush.msra.mxu0 0.0
    %3060 = vmatpush.msra.mxu0 0.0
    %3061 = vmatpush.msra.mxu0 %v53
    %3062 = vmatpush.msra.mxu0 %v37
    %3063 = vmatpush.msra.mxu0 %v2908
    %3064 = vmatpush.msra.mxu0 %v2892
    %3065 = vmatpush.msra.mxu0 %v2876
    %3066 = vmatpush.msra.mxu0 %v2860
    %3067 = vmatmul.f32.gmra.mxu0 %v2953
    %v3068 = vpop.f32.mrf.mxu0
    %v3069 = vadd.f32 %v2934, %v3068
    %3070 = vmatmul.f32.gmra.mxu0 %v2956
    %v3071 = vpop.f32.mrf.mxu0
    %v3072 = vadd.f32 %v2939, %v3071
    %3073 = vmatmul.f32.gmra.mxu0 %v2959
    %v3074 = vpop.f32.mrf.mxu0
    %v3075 = vadd.f32 %v2944, %v3074
    %3076 = vmatmul.f32.gmra.mxu0 %v2962
    %v3077 = vpop.f32.mrf.mxu0
    %v3078 = vadd.f32 %v2949, %v3077
    %3079 = vdwg.mxu0
    %3080 = vmatpush.msra.mxu0 0.0
    %3081 = vmatpush.msra.mxu0 0.0
    %3082 = vmatpush.msra.mxu0 0.0
    %3083 = vmatpush.msra.mxu0 0.0
    %3084 = vmatpush.msra.mxu0 0.0
    %3085 = vmatpush.msra.mxu0 0.0
    %3086 = vmatpush.msra.mxu0 0.0
    %3087 = vmatpush.msra.mxu0 0.0
    %3088 = vmatpush.msra.mxu0 0.0
    %3089 = vmatpush.msra.mxu0 0.0
    %3090 = vmatpush.msra.mxu0 %v54
    %3091 = vmatpush.msra.mxu0 %v38
    %3092 = vmatpush.msra.mxu0 %v2909
    %3093 = vmatpush.msra.mxu0 %v2893
    %3094 = vmatpush.msra.mxu0 %v2877
    %3095 = vmatpush.msra.mxu0 %v2861
    %3096 = vmatmul.f32.gmra.mxu0 %v2953
    %v3097 = vpop.f32.mrf.mxu0
    %v3098 = vadd.f32 %v2934, %v3097
    %3099 = vmatmul.f32.gmra.mxu0 %v2956
    %v3100 = vpop.f32.mrf.mxu0
    %v3101 = vadd.f32 %v2939, %v3100
    %3102 = vmatmul.f32.gmra.mxu0 %v2959
    %v3103 = vpop.f32.mrf.mxu0
    %v3104 = vadd.f32 %v2944, %v3103
    %3105 = vmatmul.f32.gmra.mxu0 %v2962
    %v3106 = vpop.f32.mrf.mxu0
    %v3107 = vadd.f32 %v2949, %v3106
    %3108 = vdwg.mxu0
    %3109 = vmatpush.msra.mxu0 0.0
    %3110 = vmatpush.msra.mxu0 0.0
    %3111 = vmatpush.msra.mxu0 0.0
    %3112 = vmatpush.msra.mxu0 0.0
    %3113 = vmatpush.msra.mxu0 0.0
    %3114 = vmatpush.msra.mxu0 0.0
    %3115 = vmatpush.msra.mxu0 0.0
    %3116 = vmatpush.msra.mxu0 0.0
    %3117 = vmatpush.msra.mxu0 0.0
    %3118 = vmatpush.msra.mxu0 0.0
    %3119 = vmatpush.msra.mxu0 %v55
    %3120 = vmatpush.msra.mxu0 %v39
    %3121 = vmatpush.msra.mxu0 %v2910
    %3122 = vmatpush.msra.mxu0 %v2894
    %3123 = vmatpush.msra.mxu0 %v2878
    %3124 = vmatpush.msra.mxu0 %v2862
    %3125 = vmatmul.f32.gmra.mxu0 %v2953
    %v3126 = vpop.f32.mrf.mxu0
    %v3127 = vadd.f32 %v2934, %v3126
    %3128 = vmatmul.f32.gmra.mxu0 %v2956
    %v3129 = vpop.f32.mrf.mxu0
    %v3130 = vadd.f32 %v2939, %v3129
    %3131 = vmatmul.f32.gmra.mxu0 %v2959
    %v3132 = vpop.f32.mrf.mxu0
    %v3133 = vadd.f32 %v2944, %v3132
    %3134 = vmatmul.f32.gmra.mxu0 %v2962
    %v3135 = vpop.f32.mrf.mxu0
    %v3136 = vadd.f32 %v2949, %v3135
    %3137 = vdwg.mxu0
    %3138 = vmatpush.msra.mxu0 0.0
    %3139 = vmatpush.msra.mxu0 0.0
    %3140 = vmatpush.msra.mxu0 0.0
    %3141 = vmatpush.msra.mxu0 0.0
    %3142 = vmatpush.msra.mxu0 0.0
    %3143 = vmatpush.msra.mxu0 0.0
    %3144 = vmatpush.msra.mxu0 0.0
    %3145 = vmatpush.msra.mxu0 0.0
    %3146 = vmatpush.msra.mxu0 0.0
    %3147 = vmatpush.msra.mxu0 0.0
    %3148 = vmatpush.msra.mxu0 %v56
    %3149 = vmatpush.msra.mxu0 %v40
    %3150 = vmatpush.msra.mxu0 %v2911
    %3151 = vmatpush.msra.mxu0 %v2895
    %3152 = vmatpush.msra.mxu0 %v2879
    %3153 = vmatpush.msra.mxu0 %v2863
    %3154 = vmatmul.f32.gmra.mxu0 %v2953
    %v3155 = vpop.f32.mrf.mxu0
    %v3156 = vadd.f32 %v2934, %v3155
    %3157 = vmatmul.f32.gmra.mxu0 %v2956
    %v3158 = vpop.f32.mrf.mxu0
    %v3159 = vadd.f32 %v2939, %v3158
    %3160 = vmatmul.f32.gmra.mxu0 %v2959
    %v3161 = vpop.f32.mrf.mxu0
    %v3162 = vadd.f32 %v2944, %v3161
    %3163 = vmatmul.f32.gmra.mxu0 %v2962
    %v3164 = vpop.f32.mrf.mxu0
    %v3165 = vadd.f32 %v2949, %v3164
    %3166 = vdwg.mxu0
    %3167 = vmatpush.msra.mxu0 0.0
    %3168 = vmatpush.msra.mxu0 0.0
    %3169 = vmatpush.msra.mxu0 0.0
    %3170 = vmatpush.msra.mxu0 0.0
    %3171 = vmatpush.msra.mxu0 0.0
    %3172 = vmatpush.msra.mxu0 0.0
    %3173 = vmatpush.msra.mxu0 0.0
    %3174 = vmatpush.msra.mxu0 0.0
    %3175 = vmatpush.msra.mxu0 0.0
    %3176 = vmatpush.msra.mxu0 0.0
    %3177 = vmatpush.msra.mxu0 %v57
    %3178 = vmatpush.msra.mxu0 %v41
    %3179 = vmatpush.msra.mxu0 %v2912
    %3180 = vmatpush.msra.mxu0 %v2896
    %3181 = vmatpush.msra.mxu0 %v2880
    %3182 = vmatpush.msra.mxu0 %v2864
    %3183 = vmatmul.f32.gmra.mxu0 %v2953
    %v3184 = vpop.f32.mrf.mxu0
    %v3185 = vadd.f32 %v2934, %v3184
    %3186 = vmatmul.f32.gmra.mxu0 %v2956
    %v3187 = vpop.f32.mrf.mxu0
    %v3188 = vadd.f32 %v2939, %v3187
    %3189 = vmatmul.f32.gmra.mxu0 %v2959
    %v3190 = vpop.f32.mrf.mxu0
    %v3191 = vadd.f32 %v2944, %v3190
    %3192 = vmatmul.f32.gmra.mxu0 %v2962
    %v3193 = vpop.f32.mrf.mxu0
    %v3194 = vadd.f32 %v2949, %v3193
    %3195 = vdwg.mxu0
    %3196 = vmatpush.msra.mxu0 0.0
    %3197 = vmatpush.msra.mxu0 0.0
    %3198 = vmatpush.msra.mxu0 0.0
    %3199 = vmatpush.msra.mxu0 0.0
    %3200 = vmatpush.msra.mxu0 0.0
    %3201 = vmatpush.msra.mxu0 0.0
    %3202 = vmatpush.msra.mxu0 0.0
    %3203 = vmatpush.msra.mxu0 0.0
    %3204 = vmatpush.msra.mxu0 0.0
    %3205 = vmatpush.msra.mxu0 0.0
    %3206 = vmatpush.msra.mxu0 %v58
    %3207 = vmatpush.msra.mxu0 %v42
    %3208 = vmatpush.msra.mxu0 %v2913
    %3209 = vmatpush.msra.mxu0 %v2897
    %3210 = vmatpush.msra.mxu0 %v2881
    %3211 = vmatpush.msra.mxu0 %v2865
    %3212 = vmatmul.f32.gmra.mxu0 %v2953
    %v3213 = vpop.f32.mrf.mxu0
    %v3214 = vadd.f32 %v2934, %v3213
    %3215 = vmatmul.f32.gmra.mxu0 %v2956
    %v3216 = vpop.f32.mrf.mxu0
    %v3217 = vadd.f32 %v2939, %v3216
    %3218 = vmatmul.f32.gmra.mxu0 %v2959
    %v3219 = vpop.f32.mrf.mxu0
    %v3220 = vadd.f32 %v2944, %v3219
    %3221 = vmatmul.f32.gmra.mxu0 %v2962
    %v3222 = vpop.f32.mrf.mxu0
    %v3223 = vadd.f32 %v2949, %v3222
    %3224 = vdwg.mxu0
    %3225 = vmatpush.msra.mxu0 0.0
    %3226 = vmatpush.msra.mxu0 0.0
    %3227 = vmatpush.msra.mxu0 0.0
    %3228 = vmatpush.msra.mxu0 0.0
    %3229 = vmatpush.msra.mxu0 0.0
    %3230 = vmatpush.msra.mxu0 0.0
    %3231 = vmatpush.msra.mxu0 0.0
    %3232 = vmatpush.msra.mxu0 0.0
    %3233 = vmatpush.msra.mxu0 0.0
    %3234 = vmatpush.msra.mxu0 0.0
    %3235 = vmatpush.msra.mxu0 %v59
    %3236 = vmatpush.msra.mxu0 %v43
    %3237 = vmatpush.msra.mxu0 %v2914
    %3238 = vmatpush.msra.mxu0 %v2898
    %3239 = vmatpush.msra.mxu0 %v2882
    %3240 = vmatpush.msra.mxu0 %v2866
    %3241 = vmatmul.f32.gmra.mxu0 %v2953
    %v3242 = vpop.f32.mrf.mxu0
    %v3243 = vadd.f32 %v2934, %v3242
    %3244 = vmatmul.f32.gmra.mxu0 %v2956
    %v3245 = vpop.f32.mrf.mxu0
    %v3246 = vadd.f32 %v2939, %v3245
    %3247 = vmatmul.f32.gmra.mxu0 %v2959
    %v3248 = vpop.f32.mrf.mxu0
    %v3249 = vadd.f32 %v2944, %v3248
    %3250 = vmatmul.f32.gmra.mxu0 %v2962
    %v3251 = vpop.f32.mrf.mxu0
    %v3252 = vadd.f32 %v2949, %v3251
    %3253 = vdwg.mxu0
    %3254 = vmatpush.msra.mxu0 0.0
    %3255 = vmatpush.msra.mxu0 0.0
    %3256 = vmatpush.msra.mxu0 0.0
    %3257 = vmatpush.msra.mxu0 0.0
    %3258 = vmatpush.msra.mxu0 0.0
    %3259 = vmatpush.msra.mxu0 0.0
    %3260 = vmatpush.msra.mxu0 0.0
    %3261 = vmatpush.msra.mxu0 0.0
    %3262 = vmatpush.msra.mxu0 0.0
    %3263 = vmatpush.msra.mxu0 0.0
    %3264 = vmatpush.msra.mxu0 %v60
    %3265 = vmatpush.msra.mxu0 %v44
    %3266 = vmatpush.msra.mxu0 %v2915
    %3267 = vmatpush.msra.mxu0 %v2899
    %3268 = vmatpush.msra.mxu0 %v2883
    %3269 = vmatpush.msra.mxu0 %v2867
    %3270 = vmatmul.f32.gmra.mxu0 %v2953
    %v3271 = vpop.f32.mrf.mxu0
    %v3272 = vadd.f32 %v2934, %v3271
    %3273 = vmatmul.f32.gmra.mxu0 %v2956
    %v3274 = vpop.f32.mrf.mxu0
    %v3275 = vadd.f32 %v2939, %v3274
    %3276 = vmatmul.f32.gmra.mxu0 %v2959
    %v3277 = vpop.f32.mrf.mxu0
    %v3278 = vadd.f32 %v2944, %v3277
    %3279 = vmatmul.f32.gmra.mxu0 %v2962
    %v3280 = vpop.f32.mrf.mxu0
    %v3281 = vadd.f32 %v2949, %v3280
    %3282 = vdwg.mxu0
    %3283 = vmatpush.msra.mxu0 0.0
    %3284 = vmatpush.msra.mxu0 0.0
    %3285 = vmatpush.msra.mxu0 0.0
    %3286 = vmatpush.msra.mxu0 0.0
    %3287 = vmatpush.msra.mxu0 0.0
    %3288 = vmatpush.msra.mxu0 0.0
    %3289 = vmatpush.msra.mxu0 0.0
    %3290 = vmatpush.msra.mxu0 0.0
    %3291 = vmatpush.msra.mxu0 0.0
    %3292 = vmatpush.msra.mxu0 0.0
    %3293 = vmatpush.msra.mxu0 %v61
    %3294 = vmatpush.msra.mxu0 %v45
    %3295 = vmatpush.msra.mxu0 %v2916
    %3296 = vmatpush.msra.mxu0 %v2900
    %3297 = vmatpush.msra.mxu0 %v2884
    %3298 = vmatpush.msra.mxu0 %v2868
    %3299 = vmatmul.f32.gmra.mxu0 %v2953
    %v3300 = vpop.f32.mrf.mxu0
    %v3301 = vadd.f32 %v2934, %v3300
    %3302 = vmatmul.f32.gmra.mxu0 %v2956
    %v3303 = vpop.f32.mrf.mxu0
    %v3304 = vadd.f32 %v2939, %v3303
    %3305 = vmatmul.f32.gmra.mxu0 %v2959
    %v3306 = vpop.f32.mrf.mxu0
    %v3307 = vadd.f32 %v2944, %v3306
    %3308 = vmatmul.f32.gmra.mxu0 %v2962
    %v3309 = vpop.f32.mrf.mxu0
    %v3310 = vadd.f32 %v2949, %v3309
    %3311 = vdwg.mxu0
    %3312 = vmatpush.msra.mxu0 0.0
    %3313 = vmatpush.msra.mxu0 0.0
    %3314 = vmatpush.msra.mxu0 0.0
    %3315 = vmatpush.msra.mxu0 0.0
    %3316 = vmatpush.msra.mxu0 0.0
    %3317 = vmatpush.msra.mxu0 0.0
    %3318 = vmatpush.msra.mxu0 0.0
    %3319 = vmatpush.msra.mxu0 0.0
    %3320 = vmatpush.msra.mxu0 0.0
    %3321 = vmatpush.msra.mxu0 0.0
    %3322 = vmatpush.msra.mxu0 %v62
    %3323 = vmatpush.msra.mxu0 %v46
    %3324 = vmatpush.msra.mxu0 %v2917
    %3325 = vmatpush.msra.mxu0 %v2901
    %3326 = vmatpush.msra.mxu0 %v2885
    %3327 = vmatpush.msra.mxu0 %v2869
    %3328 = vmatmul.f32.gmra.mxu0 %v2953
    %v3329 = vpop.f32.mrf.mxu0
    %v3330 = vadd.f32 %v2934, %v3329
    %3331 = vmatmul.f32.gmra.mxu0 %v2956
    %v3332 = vpop.f32.mrf.mxu0
    %v3333 = vadd.f32 %v2939, %v3332
    %3334 = vmatmul.f32.gmra.mxu0 %v2959
    %v3335 = vpop.f32.mrf.mxu0
    %v3336 = vadd.f32 %v2944, %v3335
    %3337 = vmatmul.f32.gmra.mxu0 %v2962
    %v3338 = vpop.f32.mrf.mxu0
    %v3339 = vadd.f32 %v2949, %v3338
    %3340 = vdwg.mxu0
    %3341 = vmatpush.msra.mxu0 0.0
    %3342 = vmatpush.msra.mxu0 0.0
    %3343 = vmatpush.msra.mxu0 0.0
    %3344 = vmatpush.msra.mxu0 0.0
    %3345 = vmatpush.msra.mxu0 0.0
    %3346 = vmatpush.msra.mxu0 0.0
    %3347 = vmatpush.msra.mxu0 0.0
    %3348 = vmatpush.msra.mxu0 0.0
    %3349 = vmatpush.msra.mxu0 0.0
    %3350 = vmatpush.msra.mxu0 0.0
    %3351 = vmatpush.msra.mxu0 %v63
    %3352 = vmatpush.msra.mxu0 %v47
    %3353 = vmatpush.msra.mxu0 %v2918
    %3354 = vmatpush.msra.mxu0 %v2902
    %3355 = vmatpush.msra.mxu0 %v2886
    %3356 = vmatpush.msra.mxu0 %v2870
    %3357 = vmatmul.f32.gmra.mxu0 %v2953
    %v3358 = vpop.f32.mrf.mxu0
    %v3359 = vadd.f32 %v2934, %v3358
    %3360 = vmatmul.f32.gmra.mxu0 %v2956
    %v3361 = vpop.f32.mrf.mxu0
    %v3362 = vadd.f32 %v2939, %v3361
    %3363 = vmatmul.f32.gmra.mxu0 %v2959
    %v3364 = vpop.f32.mrf.mxu0
    %v3365 = vadd.f32 %v2944, %v3364
    %3366 = vmatmul.f32.gmra.mxu0 %v2962
    %v3367 = vpop.f32.mrf.mxu0
    %v3368 = vadd.f32 %v2949, %v3367
    %3369 = vdwg.mxu0
    %3370 = vmatpush.msra.mxu0 0.0
    %3371 = vmatpush.msra.mxu0 0.0
    %3372 = vmatpush.msra.mxu0 0.0
    %3373 = vmatpush.msra.mxu0 0.0
    %3374 = vmatpush.msra.mxu0 0.0
    %3375 = vmatpush.msra.mxu0 0.0
    %3376 = vmatpush.msra.mxu0 0.0
    %3377 = vmatpush.msra.mxu0 0.0
    %3378 = vmatpush.msra.mxu0 0.0
    %3379 = vmatpush.msra.mxu0 0.0
    %3380 = vmatpush.msra.mxu0 %v64
    %3381 = vmatpush.msra.mxu0 %v48
    %3382 = vmatpush.msra.mxu0 %v2919
    %3383 = vmatpush.msra.mxu0 %v2903
    %3384 = vmatpush.msra.mxu0 %v2887
    %3385 = vmatpush.msra.mxu0 %v2871
    %3386 = vmatmul.f32.gmra.mxu0 %v2953
    %v3387 = vpop.f32.mrf.mxu0
    %v3388 = vadd.f32 %v2934, %v3387
    %3389 = vmatmul.f32.gmra.mxu0 %v2956
    %v3390 = vpop.f32.mrf.mxu0
    %v3391 = vadd.f32 %v2939, %v3390
    %3392 = vmatmul.f32.gmra.mxu0 %v2959
    %v3393 = vpop.f32.mrf.mxu0
    %v3394 = vadd.f32 %v2944, %v3393
    %3395 = vmatmul.f32.gmra.mxu0 %v2962
    %v3396 = vpop.f32.mrf.mxu0
    %v3397 = vadd.f32 %v2949, %v3396
    %3398 = vdwg.mxu0
    %3399 = vmatpush.msra.mxu0 0.0
    %3400 = vmatpush.msra.mxu0 0.0
    %3401 = vmatpush.msra.mxu0 0.0
    %3402 = vmatpush.msra.mxu0 0.0
    %3403 = vmatpush.msra.mxu0 0.0
    %3404 = vmatpush.msra.mxu0 0.0
    %3405 = vmatpush.msra.mxu0 0.0
    %3406 = vmatpush.msra.mxu0 0.0
    %3407 = vmatpush.msra.mxu0 0.0
    %3408 = vmatpush.msra.mxu0 0.0
    %3409 = vmatpush.msra.mxu0 %v65
    %3410 = vmatpush.msra.mxu0 %v49
    %3411 = vmatpush.msra.mxu0 %v2920
    %3412 = vmatpush.msra.mxu0 %v2904
    %3413 = vmatpush.msra.mxu0 %v2888
    %3414 = vmatpush.msra.mxu0 %v2872
    %3415 = vmatmul.f32.gmra.mxu0 %v2953
    %v3416 = vpop.f32.mrf.mxu0
    %v3417 = vadd.f32 %v2934, %v3416
    %3418 = vmatmul.f32.gmra.mxu0 %v2956
    %v3419 = vpop.f32.mrf.mxu0
    %v3420 = vadd.f32 %v2939, %v3419
    %3421 = vmatmul.f32.gmra.mxu0 %v2959
    %v3422 = vpop.f32.mrf.mxu0
    %v3423 = vadd.f32 %v2944, %v3422
    %3424 = vmatmul.f32.gmra.mxu0 %v2962
    %v3425 = vpop.f32.mrf.mxu0
    %v3426 = vadd.f32 %v2949, %v3425
    %3427 = vdwg.mxu0
    %v3428 = vmax.f32 %v2982, 0.0
    %v3429 = vmax.f32 %v3011, 0.0
    %v3430 = vmax.f32 %v3040, 0.0
    %v3431 = vmax.f32 %v3069, 0.0
    %v3432 = vmax.f32 %v3098, 0.0
    %v3433 = vmax.f32 %v3127, 0.0
    %v3434 = vmax.f32 %v3156, 0.0
    %v3435 = vmax.f32 %v3185, 0.0
    %v3436 = vmax.f32 %v3214, 0.0
    %v3437 = vmax.f32 %v3243, 0.0
    %v3438 = vmax.f32 %v3272, 0.0
    %v3439 = vmax.f32 %v3301, 0.0
    %v3440 = vmax.f32 %v3330, 0.0
    %v3441 = vmax.f32 %v3359, 0.0
    %v3442 = vmax.f32 %v3388, 0.0
    %v3443 = vmax.f32 %v3417, 0.0
    %v3444 = vmax.f32 %v2985, 0.0
    %v3445 = vmax.f32 %v3014, 0.0
    %v3446 = vmax.f32 %v3043, 0.0
    %v3447 = vmax.f32 %v3072, 0.0
    %v3448 = vmax.f32 %v3101, 0.0
    %v3449 = vmax.f32 %v3130, 0.0
    %v3450 = vmax.f32 %v3159, 0.0
    %v3451 = vmax.f32 %v3188, 0.0
    %v3452 = vmax.f32 %v3217, 0.0
    %v3453 = vmax.f32 %v3246, 0.0
    %v3454 = vmax.f32 %v3275, 0.0
    %v3455 = vmax.f32 %v3304, 0.0
    %v3456 = vmax.f32 %v3333, 0.0
    %v3457 = vmax.f32 %v3362, 0.0
    %v3458 = vmax.f32 %v3391, 0.0
    %v3459 = vmax.f32 %v3420, 0.0
    %v3460 = vmax.f32 %v2988, 0.0
    %v3461 = vmax.f32 %v3017, 0.0
    %v3462 = vmax.f32 %v3046, 0.0
    %v3463 = vmax.f32 %v3075, 0.0
    %v3464 = vmax.f32 %v3104, 0.0
    %v3465 = vmax.f32 %v3133, 0.0
    %v3466 = vmax.f32 %v3162, 0.0
    %v3467 = vmax.f32 %v3191, 0.0
    %v3468 = vmax.f32 %v3220, 0.0
    %v3469 = vmax.f32 %v3249, 0.0
    %v3470 = vmax.f32 %v3278, 0.0
    %v3471 = vmax.f32 %v3307, 0.0
    %v3472 = vmax.f32 %v3336, 0.0
    %v3473 = vmax.f32 %v3365, 0.0
    %v3474 = vmax.f32 %v3394, 0.0
    %v3475 = vmax.f32 %v3423, 0.0
    %v3476 = vmax.f32 %v2991, 0.0
    %v3477 = vmax.f32 %v3020, 0.0
    %v3478 = vmax.f32 %v3049, 0.0
    %v3479 = vmax.f32 %v3078, 0.0
    %v3480 = vmax.f32 %v3107, 0.0
    %v3481 = vmax.f32 %v3136, 0.0
    %v3482 = vmax.f32 %v3165, 0.0
    %v3483 = vmax.f32 %v3194, 0.0
    %v3484 = vmax.f32 %v3223, 0.0
    %v3485 = vmax.f32 %v3252, 0.0
    %v3486 = vmax.f32 %v3281, 0.0
    %v3487 = vmax.f32 %v3310, 0.0
    %v3488 = vmax.f32 %v3339, 0.0
    %v3489 = vmax.f32 %v3368, 0.0
    %v3490 = vmax.f32 %v3397, 0.0
    %v3491 = vmax.f32 %v3426, 0.0
    %3493 = vset.pattern.permute.xlu0 0
    %3494 = vperm.xlu0 %3493, %v66
    %v3495 = vpop.permute.xlu0 %3494
    %3498 = vset.pattern.permute.xlu0 0
    %3499 = vperm.xlu0 %3498, %v67
    %v3500 = vpop.permute.xlu0 %3499
    %3503 = vset.pattern.permute.xlu0 0
    %3504 = vperm.xlu0 %3503, %v68
    %v3505 = vpop.permute.xlu0 %3504
    %3508 = vset.pattern.permute.xlu0 0
    %3509 = vperm.xlu0 %3508, %v69
    %v3510 = vpop.permute.xlu0 %3509
    %v3512 = vmul.f32 %v3428, %v3495
    %v3513 = vmul.f32 %v3429, %v3495
    %v3514 = vmul.f32 %v3430, %v3495
    %v3515 = vmul.f32 %v3431, %v3495
    %v3516 = vmul.f32 %v3432, %v3495
    %v3517 = vmul.f32 %v3433, %v3495
    %v3518 = vmul.f32 %v3434, %v3495
    %v3519 = vmul.f32 %v3435, %v3495
    %v3520 = vmul.f32 %v3436, %v3495
    %v3521 = vmul.f32 %v3437, %v3495
    %v3522 = vmul.f32 %v3438, %v3495
    %v3523 = vmul.f32 %v3439, %v3495
    %v3524 = vmul.f32 %v3440, %v3495
    %v3525 = vmul.f32 %v3441, %v3495
    %v3526 = vmul.f32 %v3442, %v3495
    %v3527 = vmul.f32 %v3443, %v3495
    %v3528 = vmul.f32 %v3444, %v3500
    %v3529 = vmul.f32 %v3445, %v3500
    %v3530 = vmul.f32 %v3446, %v3500
    %v3531 = vmul.f32 %v3447, %v3500
    %v3532 = vmul.f32 %v3448, %v3500
    %v3533 = vmul.f32 %v3449, %v3500
    %v3534 = vmul.f32 %v3450, %v3500
    %v3535 = vmul.f32 %v3451, %v3500
    %v3536 = vmul.f32 %v3452, %v3500
    %v3537 = vmul.f32 %v3453, %v3500
    %v3538 = vmul.f32 %v3454, %v3500
    %v3539 = vmul.f32 %v3455, %v3500
    %v3540 = vmul.f32 %v3456, %v3500
    %v3541 = vmul.f32 %v3457, %v3500
    %v3542 = vmul.f32 %v3458, %v3500
    %v3543 = vmul.f32 %v3459, %v3500
    %v3544 = vmul.f32 %v3460, %v3505
    %v3545 = vmul.f32 %v3461, %v3505
    %v3546 = vmul.f32 %v3462, %v3505
    %v3547 = vmul.f32 %v3463, %v3505
    %v3548 = vmul.f32 %v3464, %v3505
    %v3549 = vmul.f32 %v3465, %v3505
    %v3550 = vmul.f32 %v3466, %v3505
    %v3551 = vmul.f32 %v3467, %v3505
    %v3552 = vmul.f32 %v3468, %v3505
    %v3553 = vmul.f32 %v3469, %v3505
    %v3554 = vmul.f32 %v3470, %v3505
    %v3555 = vmul.f32 %v3471, %v3505
    %v3556 = vmul.f32 %v3472, %v3505
    %v3557 = vmul.f32 %v3473, %v3505
    %v3558 = vmul.f32 %v3474, %v3505
    %v3559 = vmul.f32 %v3475, %v3505
    %v3560 = vmul.f32 %v3476, %v3510
    %v3561 = vmul.f32 %v3477, %v3510
    %v3562 = vmul.f32 %v3478, %v3510
    %v3563 = vmul.f32 %v3479, %v3510
    %v3564 = vmul.f32 %v3480, %v3510
    %v3565 = vmul.f32 %v3481, %v3510
    %v3566 = vmul.f32 %v3482, %v3510
    %v3567 = vmul.f32 %v3483, %v3510
    %v3568 = vmul.f32 %v3484, %v3510
    %v3569 = vmul.f32 %v3485, %v3510
    %v3570 = vmul.f32 %v3486, %v3510
    %v3571 = vmul.f32 %v3487, %v3510
    %v3572 = vmul.f32 %v3488, %v3510
    %v3573 = vmul.f32 %v3489, %v3510
    %v3574 = vmul.f32 %v3490, %v3510
    %v3575 = vmul.f32 %v3491, %v3510
    %v3576 = vadd.f32 %v3512, %v3528
    %v3577 = vadd.f32 %v3576, %v3544
    %v3578 = vadd.f32 %v3577, %v3560
    %v3579 = vrot.slane %v3578, 4
    %v3580 = vadd.f32 %v3578, %v3579
    %v3581 = vrot.slane %v3580, 2
    %v3582 = vadd.f32 %v3580, %v3581
    %v3583 = vrot.slane %v3582, 1
    %v3584 = vadd.f32 %v3582, %v3583
    %v3585 = vadd.f32 %v3513, %v3529
    %v3586 = vadd.f32 %v3585, %v3545
    %v3587 = vadd.f32 %v3586, %v3561
    %v3588 = vrot.slane %v3587, 4
    %v3589 = vadd.f32 %v3587, %v3588
    %v3590 = vrot.slane %v3589, 2
    %v3591 = vadd.f32 %v3589, %v3590
    %v3592 = vrot.slane %v3591, 1
    %v3593 = vadd.f32 %v3591, %v3592
    %v3594 = vadd.f32 %v3514, %v3530
    %v3595 = vadd.f32 %v3594, %v3546
    %v3596 = vadd.f32 %v3595, %v3562
    %v3597 = vrot.slane %v3596, 4
    %v3598 = vadd.f32 %v3596, %v3597
    %v3599 = vrot.slane %v3598, 2
    %v3600 = vadd.f32 %v3598, %v3599
    %v3601 = vrot.slane %v3600, 1
    %v3602 = vadd.f32 %v3600, %v3601
    %v3603 = vadd.f32 %v3515, %v3531
    %v3604 = vadd.f32 %v3603, %v3547
    %v3605 = vadd.f32 %v3604, %v3563
    %v3606 = vrot.slane %v3605, 4
    %v3607 = vadd.f32 %v3605, %v3606
    %v3608 = vrot.slane %v3607, 2
    %v3609 = vadd.f32 %v3607, %v3608
    %v3610 = vrot.slane %v3609, 1
    %v3611 = vadd.f32 %v3609, %v3610
    %v3612 = vadd.f32 %v3516, %v3532
    %v3613 = vadd.f32 %v3612, %v3548
    %v3614 = vadd.f32 %v3613, %v3564
    %v3615 = vrot.slane %v3614, 4
    %v3616 = vadd.f32 %v3614, %v3615
    %v3617 = vrot.slane %v3616, 2
    %v3618 = vadd.f32 %v3616, %v3617
    %v3619 = vrot.slane %v3618, 1
    %v3620 = vadd.f32 %v3618, %v3619
    %v3621 = vadd.f32 %v3517, %v3533
    %v3622 = vadd.f32 %v3621, %v3549
    %v3623 = vadd.f32 %v3622, %v3565
    %v3624 = vrot.slane %v3623, 4
    %v3625 = vadd.f32 %v3623, %v3624
    %v3626 = vrot.slane %v3625, 2
    %v3627 = vadd.f32 %v3625, %v3626
    %v3628 = vrot.slane %v3627, 1
    %v3629 = vadd.f32 %v3627, %v3628
    %v3630 = vadd.f32 %v3518, %v3534
    %v3631 = vadd.f32 %v3630, %v3550
    %v3632 = vadd.f32 %v3631, %v3566
    %v3633 = vrot.slane %v3632, 4
    %v3634 = vadd.f32 %v3632, %v3633
    %v3635 = vrot.slane %v3634, 2
    %v3636 = vadd.f32 %v3634, %v3635
    %v3637 = vrot.slane %v3636, 1
    %v3638 = vadd.f32 %v3636, %v3637
    %v3639 = vadd.f32 %v3519, %v3535
    %v3640 = vadd.f32 %v3639, %v3551
    %v3641 = vadd.f32 %v3640, %v3567
    %v3642 = vrot.slane %v3641, 4
    %v3643 = vadd.f32 %v3641, %v3642
    %v3644 = vrot.slane %v3643, 2
    %v3645 = vadd.f32 %v3643, %v3644
    %v3646 = vrot.slane %v3645, 1
    %v3647 = vadd.f32 %v3645, %v3646
    %v3648 = vadd.f32 %v3520, %v3536
    %v3649 = vadd.f32 %v3648, %v3552
    %v3650 = vadd.f32 %v3649, %v3568
    %v3651 = vrot.slane %v3650, 4
    %v3652 = vadd.f32 %v3650, %v3651
    %v3653 = vrot.slane %v3652, 2
    %v3654 = vadd.f32 %v3652, %v3653
    %v3655 = vrot.slane %v3654, 1
    %v3656 = vadd.f32 %v3654, %v3655
    %v3657 = vadd.f32 %v3521, %v3537
    %v3658 = vadd.f32 %v3657, %v3553
    %v3659 = vadd.f32 %v3658, %v3569
    %v3660 = vrot.slane %v3659, 4
    %v3661 = vadd.f32 %v3659, %v3660
    %v3662 = vrot.slane %v3661, 2
    %v3663 = vadd.f32 %v3661, %v3662
    %v3664 = vrot.slane %v3663, 1
    %v3665 = vadd.f32 %v3663, %v3664
    %v3666 = vadd.f32 %v3522, %v3538
    %v3667 = vadd.f32 %v3666, %v3554
    %v3668 = vadd.f32 %v3667, %v3570
    %v3669 = vrot.slane %v3668, 4
    %v3670 = vadd.f32 %v3668, %v3669
    %v3671 = vrot.slane %v3670, 2
    %v3672 = vadd.f32 %v3670, %v3671
    %v3673 = vrot.slane %v3672, 1
    %v3674 = vadd.f32 %v3672, %v3673
    %v3675 = vadd.f32 %v3523, %v3539
    %v3676 = vadd.f32 %v3675, %v3555
    %v3677 = vadd.f32 %v3676, %v3571
    %v3678 = vrot.slane %v3677, 4
    %v3679 = vadd.f32 %v3677, %v3678
    %v3680 = vrot.slane %v3679, 2
    %v3681 = vadd.f32 %v3679, %v3680
    %v3682 = vrot.slane %v3681, 1
    %v3683 = vadd.f32 %v3681, %v3682
    %v3684 = vadd.f32 %v3524, %v3540
    %v3685 = vadd.f32 %v3684, %v3556
    %v3686 = vadd.f32 %v3685, %v3572
    %v3687 = vrot.slane %v3686, 4
    %v3688 = vadd.f32 %v3686, %v3687
    %v3689 = vrot.slane %v3688, 2
    %v3690 = vadd.f32 %v3688, %v3689
    %v3691 = vrot.slane %v3690, 1
    %v3692 = vadd.f32 %v3690, %v3691
    %v3693 = vadd.f32 %v3525, %v3541
    %v3694 = vadd.f32 %v3693, %v3557
    %v3695 = vadd.f32 %v3694, %v3573
    %v3696 = vrot.slane %v3695, 4
    %v3697 = vadd.f32 %v3695, %v3696
    %v3698 = vrot.slane %v3697, 2
    %v3699 = vadd.f32 %v3697, %v3698
    %v3700 = vrot.slane %v3699, 1
    %v3701 = vadd.f32 %v3699, %v3700
    %v3702 = vadd.f32 %v3526, %v3542
    %v3703 = vadd.f32 %v3702, %v3558
    %v3704 = vadd.f32 %v3703, %v3574
    %v3705 = vrot.slane %v3704, 4
    %v3706 = vadd.f32 %v3704, %v3705
    %v3707 = vrot.slane %v3706, 2
    %v3708 = vadd.f32 %v3706, %v3707
    %v3709 = vrot.slane %v3708, 1
    %v3710 = vadd.f32 %v3708, %v3709
    %v3711 = vadd.f32 %v3527, %v3543
    %v3712 = vadd.f32 %v3711, %v3559
    %v3713 = vadd.f32 %v3712, %v3575
    %v3714 = vrot.slane %v3713, 4
    %v3715 = vadd.f32 %v3713, %v3714
    %v3716 = vrot.slane %v3715, 2
    %v3717 = vadd.f32 %v3715, %v3716
    %v3718 = vrot.slane %v3717, 1
    %v3719 = vadd.f32 %v3717, %v3718
    %3721 = vset.pattern.permute.xlu0 1
    %3722 = vperm.xlu0 %3721, %v70
    %v3723 = vpop.permute.xlu0 %3722
    %v3725 = vadd.f32 %v3584, %v3723
    %v3726 = vadd.f32 %v3593, %v3723
    %v3727 = vadd.f32 %v3602, %v3723
    %v3728 = vadd.f32 %v3611, %v3723
    %v3729 = vadd.f32 %v3620, %v3723
    %v3730 = vadd.f32 %v3629, %v3723
    %v3731 = vadd.f32 %v3638, %v3723
    %v3732 = vadd.f32 %v3647, %v3723
    %v3733 = vadd.f32 %v3656, %v3723
    %v3734 = vadd.f32 %v3665, %v3723
    %v3735 = vadd.f32 %v3674, %v3723
    %v3736 = vadd.f32 %v3683, %v3723
    %v3737 = vadd.f32 %v3692, %v3723
    %v3738 = vadd.f32 %v3701, %v3723
    %v3739 = vadd.f32 %v3710, %v3723
    %v3740 = vadd.f32 %v3719, %v3723
    %v3757 = vrot.slane %v3726, 7
    %v3758 = vrot.slane %v3727, 6
    %v3759 = vrot.slane %v3728, 5
    %v3760 = vrot.slane %v3729, 4
    %v3761 = vrot.slane %v3730, 3
    %v3762 = vrot.slane %v3731, 2
    %v3763 = vrot.slane %v3732, 1
    %v3764 = vrot.slane %v3734, 7
    %v3765 = vrot.slane %v3735, 6
    %v3766 = vrot.slane %v3736, 5
    %v3767 = vrot.slane %v3737, 4
    %v3768 = vrot.slane %v3738, 3
    %v3769 = vrot.slane %v3739, 2
    %v3770 = vrot.slane %v3740, 1
    %vm3771 = vcmask 1040384
    %v3772 = vsel %vm3771, %v3725, %v3757
    %vm3773 = vcmask 1042434
    %v3774 = vsel %vm3773, %v3758, %v3759
    %vm3775 = vcmask 1041408
    %v3776 = vsel %vm3775, %v3772, %v3774
    %vm3777 = vcmask 1044484
    %v3778 = vsel %vm3777, %v3760, %v3761
    %vm3779 = vcmask 1046534
    %v3780 = vsel %vm3779, %v3762, %v3763
    %vm3781 = vcmask 1045508
    %v3782 = vsel %vm3781, %v3778, %v3780
    %vm3783 = vcmask 1043456
    %v3784 = vsel %vm3783, %v3776, %v3782
    %v3785 = vsel %vm3771, %v3733, %v3764
    %v3786 = vsel %vm3773, %v3765, %v3766
    %v3787 = vsel %vm3775, %v3785, %v3786
    %v3788 = vsel %vm3777, %v3767, %v3768
    %v3789 = vsel %vm3779, %v3769, %v3770
    %v3790 = vsel %vm3781, %v3788, %v3789
    %v3791 = vsel %vm3783, %v3787, %v3790
    %3794 = vst [vmem:[#allocation5] sm:$0xff] %v3784
    %3795 = vst [vmem:[#allocation5 + $0x8] sm:$0xff] %v3791
    // Predicated region
    $region22: #{tpu_custom_call.1} parent=1 // pred_check
      _
    $region23: #{tpu_custom_call.1} parent=1 // pred_check_branch
      %3797 = sbr.rel (0) target = $region25
    $region24: #{tpu_custom_call.1} parent=1 // pred_region
      %3799 = vsyncadd [#allocation4], 0
      %s3801 = sshll.u32 [#allocation5], 4
      %s3802 = int_to_ptr.vmem [resolvable:$true] %s3801
      %s3803 = sshll.u32 %s4, 4
      %s3804 = int_to_ptr.hbm [resolvable:$true] %s3803
      %3806 = dma.vmem_to_hbm [thread:$0]  %s3802, 256, %s3804, [#allocation4]
    $region25: #{tpu_custom_call.1} parent=1 // pred_fallthru
      _
    // Predicated region
    $region26: #{tpu_custom_call.1} parent=1 // pred_check
      _
    $region27: #{tpu_custom_call.1} parent=1 // pred_check_branch
      %3808 = sbr.rel (0) target = $region29
    $region28: #{tpu_custom_call.1} parent=1 // pred_region
      %3810 = dma.done [#allocation4], 256
    $region29: #{tpu_custom_call.1} parent=1 // pred_fallthru
      _
    %3811 = vsyncpa [#allocation3], 1
    %3812 = vsyncpa [#allocation4], 1

</llo_original>
